<compile_context>
chip_gen: v6e
topology: v6e:2x2x1
jax: 0.10.0
libtpu: 0.0.40
codegen_flags: <defaults>
</compile_context>

<pallas_src>
import jax
import jax.numpy as jnp
from jax.experimental import pallas as pl
from jax.experimental.pallas import tpu as pltpu

# ---------------- problem sizes (consistent with the module) ----------------
N = 8                     # nodes per graph
IN_CH = 16                # in_channels
HIDDEN = 32               # hidden_channels
OUT_CH = 32               # out_channels
HEADS = 4                 # attention heads
C = HIDDEN // HEADS       # per-head channels
BN_EPS = 1e-5

GRAPHS_PER_BLOCK = 16                 # graphs stacked per grid step
GN = GRAPHS_PER_BLOCK * N             # 128 node rows per block (full sublane/lane tile)
LANE = 128                            # lane-dense (padded) output width


def _bn_elu(v, m_avg, gamma, beta):
    """Per-graph BatchNorm (training-style, biased var) + ELU, all 2-D ops.

    m_avg is the block-diagonal per-graph averaging operator (rows sum to 1 with 1/N
    weights inside each graph), so mu/var are constant within a graph and per-column.
    """
    mu = jnp.dot(m_avg, v, preferred_element_type=jnp.float32)          # per-graph mean
    d = v - mu
    var = jnp.dot(m_avg, d * d, preferred_element_type=jnp.float32)     # biased variance
    vn = d * jax.lax.rsqrt(var + BN_EPS) * gamma + beta
    # ELU(alpha=1). exp only on the clamped non-positive branch (== expm1 there up to rounding).
    return jnp.where(vn > 0, vn, jnp.exp(jnp.minimum(vn, 0.0)) - 1.0)


def gnn_encoder_kernel(x_ref, adj_gat_ref, adj_gin_ref, m_avg_ref,
                       w_gat_ref, a_cat_ref, b_gat_ref,
                       g1_ref, be1_ref,
                       w_gin_ref, b_gin_ref,
                       g2_ref, be2_ref,
                       eps_ref,
                       out_ref):
    f32 = jnp.float32
    bf16 = jnp.bfloat16

    x = x_ref[...]                          # (GN, IN_CH) bf16 node features (block of 16 graphs)
    edge_mask = adj_gat_ref[...] > 0        # (GN, GN) block-diag adjacency with self-loops
    m_avg = m_avg_ref[...]                  # (GN, GN) f32 per-graph averaging operator

    # ---------------- GATConv ----------------
    # Feature transform + fused (src|dst) attention projections: bf16 MXU, f32 accumulate.
    h = jnp.dot(x, w_gat_ref[...], preferred_element_type=f32)              # (GN, HIDDEN)
    h_bf = h.astype(bf16)
    alpha = jnp.dot(h_bf, a_cat_ref[...], preferred_element_type=f32)       # (GN, 2*HEADS)
    alpha_src_t = alpha[:, :HEADS].T                                        # (HEADS, GN): one small transpose
    alpha_dst = alpha[:, HEADS:]                                            # (GN, HEADS)

    # Per-head masked softmax. With 16 graphs stacked block-diagonally each head's logit
    # matrix is a full (128, 128) tile, so the unrolled loop is full-vreg VPU/XLU/EUP work.
    # The heads are packed lane-block-wise into one wide P so aggregation is a single matmul.
    p_blocks = []
    for hd in range(HEADS):
        e = alpha_dst[:, hd:hd + 1] + alpha_src_t[hd:hd + 1, :]             # (GN, GN)
        e = jnp.where(e > 0, e, 0.2 * e)                                    # LeakyReLU(0.2)
        e = jnp.where(edge_mask, e, -1e9)                                   # mask non-edges
        e = e - jnp.max(e, axis=1, keepdims=True)
        p = jnp.where(edge_mask, jnp.exp(e), 0.0)
        denom = jnp.sum(p, axis=1, keepdims=True)                           # >=1 (self-loop) -> no /0
        p = p * pl.reciprocal(denom, approx=True)                           # EUP reciprocal
        p_blocks.append(p.astype(bf16))
    p_wide = jnp.concatenate(p_blocks, axis=1)                              # (GN, HEADS*GN) bf16

    # Head-block-diagonal stack of h: row block hd keeps only head hd's C feature columns,
    # so one (GN, HEADS*GN) @ (HEADS*GN, HIDDEN) matmul does all heads + the concat.
    lane_id = jax.lax.broadcasted_iota(jnp.int32, (1, HIDDEN), 1)           # (1, HIDDEN)
    h_stack = jnp.concatenate(
        [jnp.where((lane_id >= hd * C) & (lane_id < (hd + 1) * C), h_bf, 0)
         for hd in range(HEADS)], axis=0)                                   # (HEADS*GN, HIDDEN) bf16

    x1 = jnp.dot(p_wide, h_stack, preferred_element_type=f32) + b_gat_ref[...]   # (GN, HIDDEN)

    # ---------------- BatchNorm1d(hidden) + ELU (per graph) ----------------
    x1 = _bn_elu(x1, m_avg, g1_ref[...], be1_ref[...])

    # ---------------- GINConv(Linear(HIDDEN, OUT), train_eps=True) ----------------
    agg = jnp.dot(adj_gin_ref[...], x1.astype(bf16), preferred_element_type=f32)  # neighbor sum
    z = (1.0 + eps_ref[0, 0]) * x1 + agg
    # W_gin/b_gin are zero-padded to 128 output lanes -> y is a lane-dense slab.
    y = jnp.dot(z.astype(bf16), w_gin_ref[...], preferred_element_type=f32) + b_gin_ref[...]  # (GN, LANE)

    # ---------------- BatchNorm1d(out) + ELU (per graph) ----------------
    # gamma/beta are zero in the pad lanes, so pad columns stay exactly zero.
    y = _bn_elu(y, m_avg, g2_ref[...], be2_ref[...])

    out_ref[...] = y.astype(out_ref.dtype)                                  # full-width unmasked stores


def _block_diag(blocks):
    """(NB, G, n, n) per-graph adjacencies -> (NB, G*n, G*n) block-diagonal adjacency."""
    nb, g, n, _ = blocks.shape
    eye = jnp.eye(g, dtype=blocks.dtype)
    out = blocks[:, :, :, None, :] * eye[None, :, None, :, None]            # (nb, g, n, g, n)
    return out.reshape(nb, g * n, g * n)


def gnn_encoder(x, adj, params):
    """x: (B, N, IN_CH) f32;  adj: (B, N, N) dense A[dst, src] (no self-loops required)."""
    B = x.shape[0]
    assert B % GRAPHS_PER_BLOCK == 0, "number of graphs must be a multiple of GRAPHS_PER_BLOCK"
    nb = B // GRAPHS_PER_BLOCK

    # Block-diagonal dense adjacencies (bf16 is exact for 0/1, halves DMA bytes). No
    # cross-graph edges -> attention softmax, GIN sums and BN stats stay per graph.
    adj_gat = jnp.maximum(adj, jnp.eye(N, dtype=adj.dtype))                 # GATConv adds self-loops
    adj_gat_b = _block_diag(adj_gat.reshape(nb, GRAPHS_PER_BLOCK, N, N)).astype(jnp.bfloat16)
    adj_gin_b = _block_diag(adj.reshape(nb, GRAPHS_PER_BLOCK, N, N)).astype(jnp.bfloat16)

    # Block-diagonal per-graph averaging operator used for BatchNorm statistics.
    m_avg = jnp.kron(jnp.eye(GRAPHS_PER_BLOCK, dtype=jnp.float32),
                     jnp.full((N, N), 1.0 / N, jnp.float32))                # (GN, GN)

    x_flat = x.reshape(B * N, IN_CH).astype(jnp.bfloat16)

    def full(a):  # whole-array block, refetched only once (constant index map)
        return pl.BlockSpec(a.shape, lambda g, _nd=a.ndim: (0,) * _nd)

    out = pl.pallas_call(
        gnn_encoder_kernel,
        out_shape=jax.ShapeDtypeStruct((B * N, LANE), jnp.float32),
        grid=(nb,),
        in_specs=[
            pl.BlockSpec((GN, IN_CH), lambda g: (g, 0)),                    # x (node block)
            pl.BlockSpec((None, GN, GN), lambda g: (g, 0, 0)),              # adj_gat block
            pl.BlockSpec((None, GN, GN), lambda g: (g, 0, 0)),              # adj_gin block
            full(m_avg),
            full(params["w_gat"]), full(params["a_cat"]), full(params["b_gat"]),
            full(params["bn1_gamma"]), full(params["bn1_beta"]),
            full(params["w_gin"]), full(params["b_gin"]),
            full(params["bn2_gamma"]), full(params["bn2_beta"]),
            pl.BlockSpec((1, 1), lambda g: (0, 0),
                         memory_space=pltpu.MemorySpace.SMEM),              # GIN eps scalar
        ],
        out_specs=pl.BlockSpec((GN, LANE), lambda g: (g, 0)),
        compiler_params=pltpu.CompilerParams(dimension_semantics=("parallel",)),
    )(x_flat, adj_gat_b, adj_gin_b, m_avg,
      params["w_gat"], params["a_cat"], params["b_gat"],
      params["bn1_gamma"], params["bn1_beta"],
      params["w_gin"], params["b_gin"],
      params["bn2_gamma"], params["bn2_beta"],
      params["gin_eps"])

    return out[:, :OUT_CH].reshape(B, N, OUT_CH)                            # drop lane padding


def make_params(key):
    ks = jax.random.split(key, 5)
    w_gat = (0.1 * jax.random.normal(ks[0], (IN_CH, HIDDEN))).astype(jnp.float32)
    att_src = 0.1 * jax.random.normal(ks[1], (HEADS, C))
    att_dst = 0.1 * jax.random.normal(ks[2], (HEADS, C))

    # Block-diagonal per-head projection columns so both attention scalars come from a
    # single fused (HIDDEN, 2*HEADS) matmul inside the kernel.
    def block_diag_att(att):
        m = jnp.zeros((HIDDEN, HEADS), jnp.float32)
        for hd in range(HEADS):
            m = m.at[hd * C:(hd + 1) * C, hd].set(att[hd])
        return m

    a_cat = jnp.concatenate([block_diag_att(att_src), block_diag_att(att_dst)], axis=1)

    w_gin = (0.1 * jax.random.normal(ks[3], (HIDDEN, OUT_CH))).astype(jnp.float32)
    b_gin = (0.01 * jax.random.normal(ks[4], (1, OUT_CH))).astype(jnp.float32)
    pad = LANE - OUT_CH

    return {
        # bf16 MXU operands (weights); f32 elsewhere.
        "w_gat": w_gat.astype(jnp.bfloat16),
        "a_cat": a_cat.astype(jnp.bfloat16),
        "b_gat": jnp.zeros((1, HIDDEN), jnp.float32),
        "bn1_gamma": jnp.ones((1, HIDDEN), jnp.float32),
        "bn1_beta": jnp.zeros((1, HIDDEN), jnp.float32),
        # GIN linear + BN2 zero-padded to 128 lanes -> lane-dense output, pad lanes stay 0.
        "w_gin": jnp.pad(w_gin, ((0, 0), (0, pad))).astype(jnp.bfloat16),
        "b_gin": jnp.pad(b_gin, ((0, 0), (0, pad))),
        "bn2_gamma": jnp.pad(jnp.ones((1, OUT_CH), jnp.float32), ((0, 0), (0, pad))),
        "bn2_beta": jnp.zeros((1, LANE), jnp.float32),
        "gin_eps": jnp.zeros((1, 1), jnp.float32),   # train_eps=True, eps initialized to 0
    }


if __name__ == "__main__":
    key = jax.random.PRNGKey(0)
    kx, ka, kp = jax.random.split(key, 3)

    B = 32   # graphs in the batch (2 grid steps of 16 block-diagonally packed graphs)
    x = jax.random.normal(kx, (B, N, IN_CH), jnp.float32)
    # deterministic random directed graphs, A[dst, src] = 1, no explicit self-loops
    adj = (jax.random.uniform(ka, (B, N, N)) < 0.35).astype(jnp.float32)
    adj = adj * (1.0 - jnp.eye(N, dtype=jnp.float32))

    params = make_params(kp)

    out = gnn_encoder(x, adj, params)
    out = jax.block_until_ready(out)

    assert out.shape == (B, N, OUT_CH) and out.dtype == jnp.float32
    assert bool(jnp.all(jnp.isfinite(out)))
    print("KERNEL_OK")
</pallas_src>

<mosaic_0001>
module attributes {stable_mosaic.version = 11 : i64} {
  func.func @gnn_encoder_kernel(%arg0: i32, %arg1: memref<128x16xbf16, #tpu.memory_space<vmem>>, %arg2: memref<1x128x128xbf16, #tpu.memory_space<vmem>>, %arg3: memref<1x128x128xbf16, #tpu.memory_space<vmem>>, %arg4: memref<128x128xf32, #tpu.memory_space<vmem>>, %arg5: memref<16x32xbf16, #tpu.memory_space<vmem>>, %arg6: memref<32x8xbf16, #tpu.memory_space<vmem>>, %arg7: memref<1x32xf32, #tpu.memory_space<vmem>>, %arg8: memref<1x32xf32, #tpu.memory_space<vmem>>, %arg9: memref<1x32xf32, #tpu.memory_space<vmem>>, %arg10: memref<32x128xbf16, #tpu.memory_space<vmem>>, %arg11: memref<1x128xf32, #tpu.memory_space<vmem>>, %arg12: memref<1x128xf32, #tpu.memory_space<vmem>>, %arg13: memref<1x128xf32, #tpu.memory_space<vmem>>, %arg14: memref<1x1xf32, #tpu.memory_space<smem>>, %arg15: memref<128x128xf32, #tpu.memory_space<vmem>>) attributes {dimension_semantics = [#tpu.dimension_semantics<parallel>], iteration_bounds = array<i64: 2>, scalar_prefetch = 0 : i64, scratch_operands = 0 : i64, tpu.core_type = #tpu.core_type<tc>, window_params = [{transform_indices = @transform_0, window_bounds = array<i64: 128, 16>}, {transform_indices = @transform_1, window_bounds = array<i64: 1, 128, 128>}, {transform_indices = @transform_2, window_bounds = array<i64: 1, 128, 128>}, {pipeline_mode = #tpu.pipeline_mode<synchronous>, transform_indices = @transform_3, window_bounds = array<i64: 128, 128>}, {pipeline_mode = #tpu.pipeline_mode<synchronous>, transform_indices = @transform_4, window_bounds = array<i64: 16, 32>}, {pipeline_mode = #tpu.pipeline_mode<synchronous>, transform_indices = @transform_5, window_bounds = array<i64: 32, 8>}, {pipeline_mode = #tpu.pipeline_mode<synchronous>, transform_indices = @transform_6, window_bounds = array<i64: 1, 32>}, {pipeline_mode = #tpu.pipeline_mode<synchronous>, transform_indices = @transform_7, window_bounds = array<i64: 1, 32>}, {pipeline_mode = #tpu.pipeline_mode<synchronous>, transform_indices = @transform_8, window_bounds = array<i64: 1, 32>}, {pipeline_mode = #tpu.pipeline_mode<synchronous>, transform_indices = @transform_9, window_bounds = array<i64: 32, 128>}, {pipeline_mode = #tpu.pipeline_mode<synchronous>, transform_indices = @transform_10, window_bounds = array<i64: 1, 128>}, {pipeline_mode = #tpu.pipeline_mode<synchronous>, transform_indices = @transform_11, window_bounds = array<i64: 1, 128>}, {pipeline_mode = #tpu.pipeline_mode<synchronous>, transform_indices = @transform_12, window_bounds = array<i64: 1, 128>}, {transform_indices = @transform_13, window_bounds = array<i64: 1, 1>}, {transform_indices = @transform_14, window_bounds = array<i64: 128, 128>}]} {
    %c0 = arith.constant 0 : index
    %c0_0 = arith.constant 0 : index
    %0 = vector.load %arg1[%c0, %c0_0] : memref<128x16xbf16, #tpu.memory_space<vmem>>, vector<128x16xbf16>
    %c0_1 = arith.constant 0 : index
    %c0_2 = arith.constant 0 : index
    %c0_3 = arith.constant 0 : index
    %1 = vector.load %arg2[%c0_1, %c0_2, %c0_3] : memref<1x128x128xbf16, #tpu.memory_space<vmem>>, vector<1x128x128xbf16>
    %2 = vector.shape_cast %1 : vector<1x128x128xbf16> to vector<128x128xbf16>
    %cst = arith.constant 0.000000e+00 : bf16
    %3 = vector.broadcast %cst : bf16 to vector<128x128xbf16>
    %4 = arith.cmpf ogt, %2, %3 : vector<128x128xbf16>
    %c0_4 = arith.constant 0 : index
    %c0_5 = arith.constant 0 : index
    %5 = vector.load %arg4[%c0_4, %c0_5] : memref<128x128xf32, #tpu.memory_space<vmem>>, vector<128x128xf32>
    %c0_6 = arith.constant 0 : index
    %c0_7 = arith.constant 0 : index
    %6 = vector.load %arg5[%c0_6, %c0_7] : memref<16x32xbf16, #tpu.memory_space<vmem>>, vector<16x32xbf16>
    %cst_8 = arith.constant dense<0.000000e+00> : vector<128x32xf32>
    %7 = tpu.matmul %0, %6, %cst_8 {dimension_numbers = #tpu.dot_dimension_numbers<[1], [0], [0], [1], [0, 0, 1, 1], [], []>} : vector<128x16xbf16>, vector<16x32xbf16>, vector<128x32xf32> -> vector<128x32xf32>
    %8 = arith.truncf %7 : vector<128x32xf32> to vector<128x32xbf16>
    %c0_9 = arith.constant 0 : index
    %c0_10 = arith.constant 0 : index
    %9 = vector.load %arg6[%c0_9, %c0_10] : memref<32x8xbf16, #tpu.memory_space<vmem>>, vector<32x8xbf16>
    %cst_11 = arith.constant dense<0.000000e+00> : vector<128x8xf32>
    %10 = tpu.matmul %8, %9, %cst_11 {dimension_numbers = #tpu.dot_dimension_numbers<[1], [0], [0], [1], [0, 0, 1, 1], [], []>} : vector<128x32xbf16>, vector<32x8xbf16>, vector<128x8xf32> -> vector<128x8xf32>
    %11 = vector.extract_strided_slice %10 {offsets = [0, 0], sizes = [128, 4], strides = [1, 1]} : vector<128x8xf32> to vector<128x4xf32>
    %12 = tpu.transpose %11, [1, 0] : vector<128x4xf32> -> vector<4x128xf32>
    %13 = vector.extract_strided_slice %10 {offsets = [0, 4], sizes = [128, 4], strides = [1, 1]} : vector<128x8xf32> to vector<128x4xf32>
    %14 = vector.extract_strided_slice %13 {offsets = [0, 0], sizes = [128, 1], strides = [1, 1]} : vector<128x4xf32> to vector<128x1xf32>
    %15 = vector.extract_strided_slice %12 {offsets = [0, 0], sizes = [1, 128], strides = [1, 1]} : vector<4x128xf32> to vector<1x128xf32>
    %16 = vector.broadcast %14 : vector<128x1xf32> to vector<128x128xf32>
    %17 = vector.broadcast %15 : vector<1x128xf32> to vector<128x128xf32>
    %18 = arith.addf %16, %17 : vector<128x128xf32>
    %cst_12 = arith.constant 0.000000e+00 : f32
    %19 = vector.broadcast %cst_12 : f32 to vector<128x128xf32>
    %20 = arith.cmpf ogt, %18, %19 : vector<128x128xf32>
    %cst_13 = arith.constant 2.000000e-01 : f32
    %21 = vector.broadcast %cst_13 : f32 to vector<128x128xf32>
    %22 = arith.mulf %21, %18 : vector<128x128xf32>
    %23 = arith.select %20, %18, %22 : vector<128x128xi1>, vector<128x128xf32>
    %cst_14 = arith.constant -1.000000e+09 : f32
    %24 = vector.broadcast %cst_14 : f32 to vector<128x128xf32>
    %25 = arith.select %4, %23, %24 : vector<128x128xi1>, vector<128x128xf32>
    %cst_15 = arith.constant dense<0xFF800000> : vector<128xf32>
    %26 = vector.multi_reduction <maximumf>, %25, %cst_15 [1] : vector<128x128xf32> to vector<128xf32>
    %27 = vector.shape_cast %26 : vector<128xf32> to vector<128x1xf32>
    %28 = vector.broadcast %27 : vector<128x1xf32> to vector<128x128xf32>
    %29 = arith.subf %25, %28 : vector<128x128xf32>
    %30 = math.exp %29 : vector<128x128xf32>
    %cst_16 = arith.constant 0.000000e+00 : f32
    %31 = vector.broadcast %cst_16 : f32 to vector<128x128xf32>
    %32 = arith.select %4, %30, %31 : vector<128x128xi1>, vector<128x128xf32>
    %cst_17 = arith.constant dense<0.000000e+00> : vector<128xf32>
    %33 = vector.multi_reduction <add>, %32, %cst_17 [1] : vector<128x128xf32> to vector<128xf32>
    %34 = vector.shape_cast %33 : vector<128xf32> to vector<128x1xf32>
    %35 = tpu.reciprocal %34 {approx = true} : vector<128x1xf32> -> vector<128x1xf32>
    %36 = vector.broadcast %35 : vector<128x1xf32> to vector<128x128xf32>
    %37 = arith.mulf %32, %36 : vector<128x128xf32>
    %38 = arith.truncf %37 : vector<128x128xf32> to vector<128x128xbf16>
    %39 = vector.extract_strided_slice %13 {offsets = [0, 1], sizes = [128, 1], strides = [1, 1]} : vector<128x4xf32> to vector<128x1xf32>
    %40 = vector.extract_strided_slice %12 {offsets = [1, 0], sizes = [1, 128], strides = [1, 1]} : vector<4x128xf32> to vector<1x128xf32>
    %41 = vector.broadcast %39 : vector<128x1xf32> to vector<128x128xf32>
    %42 = vector.broadcast %40 : vector<1x128xf32> to vector<128x128xf32>
    %43 = arith.addf %41, %42 : vector<128x128xf32>
    %cst_18 = arith.constant 0.000000e+00 : f32
    %44 = vector.broadcast %cst_18 : f32 to vector<128x128xf32>
    %45 = arith.cmpf ogt, %43, %44 : vector<128x128xf32>
    %cst_19 = arith.constant 2.000000e-01 : f32
    %46 = vector.broadcast %cst_19 : f32 to vector<128x128xf32>
    %47 = arith.mulf %46, %43 : vector<128x128xf32>
    %48 = arith.select %45, %43, %47 : vector<128x128xi1>, vector<128x128xf32>
    %cst_20 = arith.constant -1.000000e+09 : f32
    %49 = vector.broadcast %cst_20 : f32 to vector<128x128xf32>
    %50 = arith.select %4, %48, %49 : vector<128x128xi1>, vector<128x128xf32>
    %cst_21 = arith.constant dense<0xFF800000> : vector<128xf32>
    %51 = vector.multi_reduction <maximumf>, %50, %cst_21 [1] : vector<128x128xf32> to vector<128xf32>
    %52 = vector.shape_cast %51 : vector<128xf32> to vector<128x1xf32>
    %53 = vector.broadcast %52 : vector<128x1xf32> to vector<128x128xf32>
    %54 = arith.subf %50, %53 : vector<128x128xf32>
    %55 = math.exp %54 : vector<128x128xf32>
    %cst_22 = arith.constant 0.000000e+00 : f32
    %56 = vector.broadcast %cst_22 : f32 to vector<128x128xf32>
    %57 = arith.select %4, %55, %56 : vector<128x128xi1>, vector<128x128xf32>
    %cst_23 = arith.constant dense<0.000000e+00> : vector<128xf32>
    %58 = vector.multi_reduction <add>, %57, %cst_23 [1] : vector<128x128xf32> to vector<128xf32>
    %59 = vector.shape_cast %58 : vector<128xf32> to vector<128x1xf32>
    %60 = tpu.reciprocal %59 {approx = true} : vector<128x1xf32> -> vector<128x1xf32>
    %61 = vector.broadcast %60 : vector<128x1xf32> to vector<128x128xf32>
    %62 = arith.mulf %57, %61 : vector<128x128xf32>
    %63 = arith.truncf %62 : vector<128x128xf32> to vector<128x128xbf16>
    %64 = vector.extract_strided_slice %13 {offsets = [0, 2], sizes = [128, 1], strides = [1, 1]} : vector<128x4xf32> to vector<128x1xf32>
    %65 = vector.extract_strided_slice %12 {offsets = [2, 0], sizes = [1, 128], strides = [1, 1]} : vector<4x128xf32> to vector<1x128xf32>
    %66 = vector.broadcast %64 : vector<128x1xf32> to vector<128x128xf32>
    %67 = vector.broadcast %65 : vector<1x128xf32> to vector<128x128xf32>
    %68 = arith.addf %66, %67 : vector<128x128xf32>
    %cst_24 = arith.constant 0.000000e+00 : f32
    %69 = vector.broadcast %cst_24 : f32 to vector<128x128xf32>
    %70 = arith.cmpf ogt, %68, %69 : vector<128x128xf32>
    %cst_25 = arith.constant 2.000000e-01 : f32
    %71 = vector.broadcast %cst_25 : f32 to vector<128x128xf32>
    %72 = arith.mulf %71, %68 : vector<128x128xf32>
    %73 = arith.select %70, %68, %72 : vector<128x128xi1>, vector<128x128xf32>
    %cst_26 = arith.constant -1.000000e+09 : f32
    %74 = vector.broadcast %cst_26 : f32 to vector<128x128xf32>
    %75 = arith.select %4, %73, %74 : vector<128x128xi1>, vector<128x128xf32>
    %cst_27 = arith.constant dense<0xFF800000> : vector<128xf32>
    %76 = vector.multi_reduction <maximumf>, %75, %cst_27 [1] : vector<128x128xf32> to vector<128xf32>
    %77 = vector.shape_cast %76 : vector<128xf32> to vector<128x1xf32>
    %78 = vector.broadcast %77 : vector<128x1xf32> to vector<128x128xf32>
    %79 = arith.subf %75, %78 : vector<128x128xf32>
    %80 = math.exp %79 : vector<128x128xf32>
    %cst_28 = arith.constant 0.000000e+00 : f32
    %81 = vector.broadcast %cst_28 : f32 to vector<128x128xf32>
    %82 = arith.select %4, %80, %81 : vector<128x128xi1>, vector<128x128xf32>
    %cst_29 = arith.constant dense<0.000000e+00> : vector<128xf32>
    %83 = vector.multi_reduction <add>, %82, %cst_29 [1] : vector<128x128xf32> to vector<128xf32>
    %84 = vector.shape_cast %83 : vector<128xf32> to vector<128x1xf32>
    %85 = tpu.reciprocal %84 {approx = true} : vector<128x1xf32> -> vector<128x1xf32>
    %86 = vector.broadcast %85 : vector<128x1xf32> to vector<128x128xf32>
    %87 = arith.mulf %82, %86 : vector<128x128xf32>
    %88 = arith.truncf %87 : vector<128x128xf32> to vector<128x128xbf16>
    %89 = vector.extract_strided_slice %13 {offsets = [0, 3], sizes = [128, 1], strides = [1, 1]} : vector<128x4xf32> to vector<128x1xf32>
    %90 = vector.extract_strided_slice %12 {offsets = [3, 0], sizes = [1, 128], strides = [1, 1]} : vector<4x128xf32> to vector<1x128xf32>
    %91 = vector.broadcast %89 : vector<128x1xf32> to vector<128x128xf32>
    %92 = vector.broadcast %90 : vector<1x128xf32> to vector<128x128xf32>
    %93 = arith.addf %91, %92 : vector<128x128xf32>
    %cst_30 = arith.constant 0.000000e+00 : f32
    %94 = vector.broadcast %cst_30 : f32 to vector<128x128xf32>
    %95 = arith.cmpf ogt, %93, %94 : vector<128x128xf32>
    %cst_31 = arith.constant 2.000000e-01 : f32
    %96 = vector.broadcast %cst_31 : f32 to vector<128x128xf32>
    %97 = arith.mulf %96, %93 : vector<128x128xf32>
    %98 = arith.select %95, %93, %97 : vector<128x128xi1>, vector<128x128xf32>
    %cst_32 = arith.constant -1.000000e+09 : f32
    %99 = vector.broadcast %cst_32 : f32 to vector<128x128xf32>
    %100 = arith.select %4, %98, %99 : vector<128x128xi1>, vector<128x128xf32>
    %cst_33 = arith.constant dense<0xFF800000> : vector<128xf32>
    %101 = vector.multi_reduction <maximumf>, %100, %cst_33 [1] : vector<128x128xf32> to vector<128xf32>
    %102 = vector.shape_cast %101 : vector<128xf32> to vector<128x1xf32>
    %103 = vector.broadcast %102 : vector<128x1xf32> to vector<128x128xf32>
    %104 = arith.subf %100, %103 : vector<128x128xf32>
    %105 = math.exp %104 : vector<128x128xf32>
    %cst_34 = arith.constant 0.000000e+00 : f32
    %106 = vector.broadcast %cst_34 : f32 to vector<128x128xf32>
    %107 = arith.select %4, %105, %106 : vector<128x128xi1>, vector<128x128xf32>
    %cst_35 = arith.constant dense<0.000000e+00> : vector<128xf32>
    %108 = vector.multi_reduction <add>, %107, %cst_35 [1] : vector<128x128xf32> to vector<128xf32>
    %109 = vector.shape_cast %108 : vector<128xf32> to vector<128x1xf32>
    %110 = tpu.reciprocal %109 {approx = true} : vector<128x1xf32> -> vector<128x1xf32>
    %111 = vector.broadcast %110 : vector<128x1xf32> to vector<128x128xf32>
    %112 = arith.mulf %107, %111 : vector<128x128xf32>
    %113 = arith.truncf %112 : vector<128x128xf32> to vector<128x128xbf16>
    %114 = tpu.concatenate %38, %63, %88, %113 in 1 : vector<128x128xbf16>, vector<128x128xbf16>, vector<128x128xbf16>, vector<128x128xbf16> -> vector<128x512xbf16>
    %115 = tpu.iota {dimensions = array<i32: 1>} : vector<1x32xi32>
    %c0_i32 = arith.constant 0 : i32
    %116 = vector.broadcast %c0_i32 : i32 to vector<1x32xi32>
    %117 = arith.cmpi sge, %115, %116 : vector<1x32xi32>
    %c8_i32 = arith.constant 8 : i32
    %118 = vector.broadcast %c8_i32 : i32 to vector<1x32xi32>
    %119 = arith.cmpi slt, %115, %118 : vector<1x32xi32>
    %120 = arith.andi %117, %119 : vector<1x32xi1>
    %c0_i32_36 = arith.constant 0 : i32
    %121 = arith.sitofp %c0_i32_36 : i32 to bf16
    %122 = vector.shape_cast %120 : vector<1x32xi1> to vector<1x32xi1>
    %123 = vector.broadcast %122 : vector<1x32xi1> to vector<128x32xi1>
    %124 = vector.broadcast %121 : bf16 to vector<128x32xbf16>
    %125 = arith.select %123, %8, %124 : vector<128x32xi1>, vector<128x32xbf16>
    %c8_i32_37 = arith.constant 8 : i32
    %126 = vector.broadcast %c8_i32_37 : i32 to vector<1x32xi32>
    %127 = arith.cmpi sge, %115, %126 : vector<1x32xi32>
    %c16_i32 = arith.constant 16 : i32
    %128 = vector.broadcast %c16_i32 : i32 to vector<1x32xi32>
    %129 = arith.cmpi slt, %115, %128 : vector<1x32xi32>
    %130 = arith.andi %127, %129 : vector<1x32xi1>
    %c0_i32_38 = arith.constant 0 : i32
    %131 = arith.sitofp %c0_i32_38 : i32 to bf16
    %132 = vector.shape_cast %130 : vector<1x32xi1> to vector<1x32xi1>
    %133 = vector.broadcast %132 : vector<1x32xi1> to vector<128x32xi1>
    %134 = vector.broadcast %131 : bf16 to vector<128x32xbf16>
    %135 = arith.select %133, %8, %134 : vector<128x32xi1>, vector<128x32xbf16>
    %c16_i32_39 = arith.constant 16 : i32
    %136 = vector.broadcast %c16_i32_39 : i32 to vector<1x32xi32>
    %137 = arith.cmpi sge, %115, %136 : vector<1x32xi32>
    %c24_i32 = arith.constant 24 : i32
    %138 = vector.broadcast %c24_i32 : i32 to vector<1x32xi32>
    %139 = arith.cmpi slt, %115, %138 : vector<1x32xi32>
    %140 = arith.andi %137, %139 : vector<1x32xi1>
    %c0_i32_40 = arith.constant 0 : i32
    %141 = arith.sitofp %c0_i32_40 : i32 to bf16
    %142 = vector.shape_cast %140 : vector<1x32xi1> to vector<1x32xi1>
    %143 = vector.broadcast %142 : vector<1x32xi1> to vector<128x32xi1>
    %144 = vector.broadcast %141 : bf16 to vector<128x32xbf16>
    %145 = arith.select %143, %8, %144 : vector<128x32xi1>, vector<128x32xbf16>
    %c24_i32_41 = arith.constant 24 : i32
    %146 = vector.broadcast %c24_i32_41 : i32 to vector<1x32xi32>
    %147 = arith.cmpi sge, %115, %146 : vector<1x32xi32>
    %c32_i32 = arith.constant 32 : i32
    %148 = vector.broadcast %c32_i32 : i32 to vector<1x32xi32>
    %149 = arith.cmpi slt, %115, %148 : vector<1x32xi32>
    %150 = arith.andi %147, %149 : vector<1x32xi1>
    %c0_i32_42 = arith.constant 0 : i32
    %151 = arith.sitofp %c0_i32_42 : i32 to bf16
    %152 = vector.shape_cast %150 : vector<1x32xi1> to vector<1x32xi1>
    %153 = vector.broadcast %152 : vector<1x32xi1> to vector<128x32xi1>
    %154 = vector.broadcast %151 : bf16 to vector<128x32xbf16>
    %155 = arith.select %153, %8, %154 : vector<128x32xi1>, vector<128x32xbf16>
    %156 = tpu.concatenate %125, %135, %145, %155 in 0 : vector<128x32xbf16>, vector<128x32xbf16>, vector<128x32xbf16>, vector<128x32xbf16> -> vector<512x32xbf16>
    %cst_43 = arith.constant dense<0.000000e+00> : vector<128x32xf32>
    %157 = tpu.matmul %114, %156, %cst_43 {dimension_numbers = #tpu.dot_dimension_numbers<[1], [0], [0], [1], [0, 0, 1, 1], [], []>} : vector<128x512xbf16>, vector<512x32xbf16>, vector<128x32xf32> -> vector<128x32xf32>
    %c0_44 = arith.constant 0 : index
    %c0_45 = arith.constant 0 : index
    %158 = vector.load %arg7[%c0_44, %c0_45] : memref<1x32xf32, #tpu.memory_space<vmem>>, vector<1x32xf32>
    %159 = vector.broadcast %158 : vector<1x32xf32> to vector<128x32xf32>
    %160 = arith.addf %157, %159 : vector<128x32xf32>
    %c0_46 = arith.constant 0 : index
    %c0_47 = arith.constant 0 : index
    %161 = vector.load %arg8[%c0_46, %c0_47] : memref<1x32xf32, #tpu.memory_space<vmem>>, vector<1x32xf32>
    %c0_48 = arith.constant 0 : index
    %c0_49 = arith.constant 0 : index
    %162 = vector.load %arg9[%c0_48, %c0_49] : memref<1x32xf32, #tpu.memory_space<vmem>>, vector<1x32xf32>
    %cst_50 = arith.constant dense<0.000000e+00> : vector<128x32xf32>
    %163 = tpu.matmul %5, %160, %cst_50 {dimension_numbers = #tpu.dot_dimension_numbers<[1], [0], [0], [1], [0, 0, 1, 1], [], []>} : vector<128x128xf32>, vector<128x32xf32>, vector<128x32xf32> -> vector<128x32xf32>
    %164 = arith.subf %160, %163 : vector<128x32xf32>
    %165 = arith.mulf %164, %164 : vector<128x32xf32>
    %cst_51 = arith.constant dense<0.000000e+00> : vector<128x32xf32>
    %166 = tpu.matmul %5, %165, %cst_51 {dimension_numbers = #tpu.dot_dimension_numbers<[1], [0], [0], [1], [0, 0, 1, 1], [], []>} : vector<128x128xf32>, vector<128x32xf32>, vector<128x32xf32> -> vector<128x32xf32>
    %cst_52 = arith.constant 9.99999974E-6 : f32
    %167 = vector.broadcast %cst_52 : f32 to vector<128x32xf32>
    %168 = arith.addf %166, %167 : vector<128x32xf32>
    %169 = math.rsqrt %168 : vector<128x32xf32>
    %170 = arith.mulf %164, %169 : vector<128x32xf32>
    %171 = vector.broadcast %161 : vector<1x32xf32> to vector<128x32xf32>
    %172 = arith.mulf %170, %171 : vector<128x32xf32>
    %173 = vector.broadcast %162 : vector<1x32xf32> to vector<128x32xf32>
    %174 = arith.addf %172, %173 : vector<128x32xf32>
    %cst_53 = arith.constant 0.000000e+00 : f32
    %175 = vector.broadcast %cst_53 : f32 to vector<128x32xf32>
    %176 = arith.cmpf ogt, %174, %175 : vector<128x32xf32>
    %cst_54 = arith.constant 0.000000e+00 : f32
    %177 = vector.broadcast %cst_54 : f32 to vector<128x32xf32>
    %178 = arith.minimumf %174, %177 : vector<128x32xf32>
    %179 = math.exp %178 : vector<128x32xf32>
    %cst_55 = arith.constant 1.000000e+00 : f32
    %180 = vector.broadcast %cst_55 : f32 to vector<128x32xf32>
    %181 = arith.subf %179, %180 : vector<128x32xf32>
    %182 = arith.select %176, %174, %181 : vector<128x32xi1>, vector<128x32xf32>
    %c0_56 = arith.constant 0 : index
    %c0_57 = arith.constant 0 : index
    %c0_58 = arith.constant 0 : index
    %183 = vector.load %arg3[%c0_56, %c0_57, %c0_58] : memref<1x128x128xbf16, #tpu.memory_space<vmem>>, vector<1x128x128xbf16>
    %184 = vector.shape_cast %183 : vector<1x128x128xbf16> to vector<128x128xbf16>
    %185 = arith.truncf %182 : vector<128x32xf32> to vector<128x32xbf16>
    %cst_59 = arith.constant dense<0.000000e+00> : vector<128x32xf32>
    %186 = tpu.matmul %184, %185, %cst_59 {dimension_numbers = #tpu.dot_dimension_numbers<[1], [0], [0], [1], [0, 0, 1, 1], [], []>} : vector<128x128xbf16>, vector<128x32xbf16>, vector<128x32xf32> -> vector<128x32xf32>
    %c0_60 = arith.constant 0 : index
    %c0_61 = arith.constant 0 : index
    %187 = memref.load %arg14[%c0_60, %c0_61] : memref<1x1xf32, #tpu.memory_space<smem>>
    %cst_62 = arith.constant 1.000000e+00 : f32
    %188 = arith.addf %cst_62, %187 : f32
    %189 = vector.broadcast %188 : f32 to vector<128x32xf32>
    %190 = arith.mulf %189, %182 : vector<128x32xf32>
    %191 = arith.addf %190, %186 : vector<128x32xf32>
    %192 = arith.truncf %191 : vector<128x32xf32> to vector<128x32xbf16>
    %c0_63 = arith.constant 0 : index
    %c0_64 = arith.constant 0 : index
    %193 = vector.load %arg10[%c0_63, %c0_64] : memref<32x128xbf16, #tpu.memory_space<vmem>>, vector<32x128xbf16>
    %cst_65 = arith.constant dense<0.000000e+00> : vector<128x128xf32>
    %194 = tpu.matmul %192, %193, %cst_65 {dimension_numbers = #tpu.dot_dimension_numbers<[1], [0], [0], [1], [0, 0, 1, 1], [], []>} : vector<128x32xbf16>, vector<32x128xbf16>, vector<128x128xf32> -> vector<128x128xf32>
    %c0_66 = arith.constant 0 : index
    %c0_67 = arith.constant 0 : index
    %195 = vector.load %arg11[%c0_66, %c0_67] : memref<1x128xf32, #tpu.memory_space<vmem>>, vector<1x128xf32>
    %196 = vector.broadcast %195 : vector<1x128xf32> to vector<128x128xf32>
    %197 = arith.addf %194, %196 : vector<128x128xf32>
    %c0_68 = arith.constant 0 : index
    %c0_69 = arith.constant 0 : index
    %198 = vector.load %arg12[%c0_68, %c0_69] : memref<1x128xf32, #tpu.memory_space<vmem>>, vector<1x128xf32>
    %c0_70 = arith.constant 0 : index
    %c0_71 = arith.constant 0 : index
    %199 = vector.load %arg13[%c0_70, %c0_71] : memref<1x128xf32, #tpu.memory_space<vmem>>, vector<1x128xf32>
    %cst_72 = arith.constant dense<0.000000e+00> : vector<128x128xf32>
    %200 = tpu.matmul %5, %197, %cst_72 {dimension_numbers = #tpu.dot_dimension_numbers<[1], [0], [0], [1], [0, 0, 1, 1], [], []>} : vector<128x128xf32>, vector<128x128xf32>, vector<128x128xf32> -> vector<128x128xf32>
    %201 = arith.subf %197, %200 : vector<128x128xf32>
    %202 = arith.mulf %201, %201 : vector<128x128xf32>
    %cst_73 = arith.constant dense<0.000000e+00> : vector<128x128xf32>
    %203 = tpu.matmul %5, %202, %cst_73 {dimension_numbers = #tpu.dot_dimension_numbers<[1], [0], [0], [1], [0, 0, 1, 1], [], []>} : vector<128x128xf32>, vector<128x128xf32>, vector<128x128xf32> -> vector<128x128xf32>
    %cst_74 = arith.constant 9.99999974E-6 : f32
    %204 = vector.broadcast %cst_74 : f32 to vector<128x128xf32>
    %205 = arith.addf %203, %204 : vector<128x128xf32>
    %206 = math.rsqrt %205 : vector<128x128xf32>
    %207 = arith.mulf %201, %206 : vector<128x128xf32>
    %208 = vector.broadcast %198 : vector<1x128xf32> to vector<128x128xf32>
    %209 = arith.mulf %207, %208 : vector<128x128xf32>
    %210 = vector.broadcast %199 : vector<1x128xf32> to vector<128x128xf32>
    %211 = arith.addf %209, %210 : vector<128x128xf32>
    %cst_75 = arith.constant 0.000000e+00 : f32
    %212 = vector.broadcast %cst_75 : f32 to vector<128x128xf32>
    %213 = arith.cmpf ogt, %211, %212 : vector<128x128xf32>
    %cst_76 = arith.constant 0.000000e+00 : f32
    %214 = vector.broadcast %cst_76 : f32 to vector<128x128xf32>
    %215 = arith.minimumf %211, %214 : vector<128x128xf32>
    %216 = math.exp %215 : vector<128x128xf32>
    %cst_77 = arith.constant 1.000000e+00 : f32
    %217 = vector.broadcast %cst_77 : f32 to vector<128x128xf32>
    %218 = arith.subf %216, %217 : vector<128x128xf32>
    %219 = arith.select %213, %211, %218 : vector<128x128xi1>, vector<128x128xf32>
    %c0_78 = arith.constant 0 : index
    %c0_79 = arith.constant 0 : index
    %220 = vector.load %arg15[%c0_78, %c0_79] : memref<128x128xf32, #tpu.memory_space<vmem>>, vector<128x128xf32>
    tpu.vector_store %arg15[%c0_78, %c0_79], %219 {strides = array<i32>} : memref<128x128xf32, #tpu.memory_space<vmem>>, vector<128x128xf32>,
    return
  }
  func.func @transform_0(%arg0: i32) -> (i32, i32) {
    %c0_i32 = arith.constant 0 : i32
    %c0_i32_0 = arith.constant 0 : i32
    return %arg0, %c0_i32 : i32, i32
  }
  func.func @transform_1(%arg0: i32) -> (i32, i32, i32) {
    %c0_i32 = arith.constant 0 : i32
    %c0_i32_0 = arith.constant 0 : i32
    %c0_i32_1 = arith.constant 0 : i32
    return %arg0, %c0_i32, %c0_i32_0 : i32, i32, i32
  }
  func.func @transform_2(%arg0: i32) -> (i32, i32, i32) {
    %c0_i32 = arith.constant 0 : i32
    %c0_i32_0 = arith.constant 0 : i32
    %c0_i32_1 = arith.constant 0 : i32
    return %arg0, %c0_i32, %c0_i32_0 : i32, i32, i32
  }
  func.func @transform_3(%arg0: i32) -> (i32, i32) {
    %c0_i32 = arith.constant 0 : i32
    %c0_i32_0 = arith.constant 0 : i32
    %c0_i32_1 = arith.constant 0 : i32
    return %c0_i32, %c0_i32_0 : i32, i32
  }
  func.func @transform_4(%arg0: i32) -> (i32, i32) {
    %c0_i32 = arith.constant 0 : i32
    %c0_i32_0 = arith.constant 0 : i32
    %c0_i32_1 = arith.constant 0 : i32
    return %c0_i32, %c0_i32_0 : i32, i32
  }
  func.func @transform_5(%arg0: i32) -> (i32, i32) {
    %c0_i32 = arith.constant 0 : i32
    %c0_i32_0 = arith.constant 0 : i32
    %c0_i32_1 = arith.constant 0 : i32
    return %c0_i32, %c0_i32_0 : i32, i32
  }
  func.func @transform_6(%arg0: i32) -> (i32, i32) {
    %c0_i32 = arith.constant 0 : i32
    %c0_i32_0 = arith.constant 0 : i32
    %c0_i32_1 = arith.constant 0 : i32
    return %c0_i32, %c0_i32_0 : i32, i32
  }
  func.func @transform_7(%arg0: i32) -> (i32, i32) {
    %c0_i32 = arith.constant 0 : i32
    %c0_i32_0 = arith.constant 0 : i32
    %c0_i32_1 = arith.constant 0 : i32
    return %c0_i32, %c0_i32_0 : i32, i32
  }
  func.func @transform_8(%arg0: i32) -> (i32, i32) {
    %c0_i32 = arith.constant 0 : i32
    %c0_i32_0 = arith.constant 0 : i32
    %c0_i32_1 = arith.constant 0 : i32
    return %c0_i32, %c0_i32_0 : i32, i32
  }
  func.func @transform_9(%arg0: i32) -> (i32, i32) {
    %c0_i32 = arith.constant 0 : i32
    %c0_i32_0 = arith.constant 0 : i32
    %c0_i32_1 = arith.constant 0 : i32
    return %c0_i32, %c0_i32_0 : i32, i32
  }
  func.func @transform_10(%arg0: i32) -> (i32, i32) {
    %c0_i32 = arith.constant 0 : i32
    %c0_i32_0 = arith.constant 0 : i32
    %c0_i32_1 = arith.constant 0 : i32
    return %c0_i32, %c0_i32_0 : i32, i32
  }
  func.func @transform_11(%arg0: i32) -> (i32, i32) {
    %c0_i32 = arith.constant 0 : i32
    %c0_i32_0 = arith.constant 0 : i32
    %c0_i32_1 = arith.constant 0 : i32
    return %c0_i32, %c0_i32_0 : i32, i32
  }
  func.func @transform_12(%arg0: i32) -> (i32, i32) {
    %c0_i32 = arith.constant 0 : i32
    %c0_i32_0 = arith.constant 0 : i32
    %c0_i32_1 = arith.constant 0 : i32
    return %c0_i32, %c0_i32_0 : i32, i32
  }
  func.func @transform_13(%arg0: i32) -> (i32, i32) {
    %c0_i32 = arith.constant 0 : i32
    %c0_i32_0 = arith.constant 0 : i32
    %c0_i32_1 = arith.constant 0 : i32
    return %c0_i32, %c0_i32_0 : i32, i32
  }
  func.func @transform_14(%arg0: i32) -> (i32, i32) {
    %c0_i32 = arith.constant 0 : i32
    %c0_i32_0 = arith.constant 0 : i32
    return %arg0, %c0_i32 : i32, i32
  }
}

</mosaic_0001>

<llo_original>
// kernel: tpu_custom_call.1
$region0: #{tpu_custom_call.1}
  #allocation0 [shape = 'u32[]', space=smem, size = 0x4, offset = 0x4, fixed_abs, tag = 'smem constant byte address 0x4 - core index']
  #allocation1 [shape = 'u32[144,128]{1,0:T(1,128)}', space=vmem, size = 0x12000, scoped, tag = 'internal scratch']
  #allocation2 [shape = 'f32[1,1]{1,0:T(1,128)S(6)}', space=smem, size = 0x200, scoped, tag = 'scoped memory for tpu_custom_call.1']
  %s0 = inlined_call_operand.vmem [shape: bf16[256,16], index: 0, kind: input, shape index: {}]
  %s1 = inlined_call_operand.vmem [shape: bf16[2,128,128], index: 1, kind: input, shape index: {}]
  %s2 = inlined_call_operand.hbm [shape: bf16[2,128,128], index: 2, kind: input, shape index: {}]
  %s3 = inlined_call_operand.hbm [shape: f32[128,128], index: 3, kind: input, shape index: {}]
  %s4 = inlined_call_operand.vmem [shape: bf16[16,32], index: 4, kind: input, shape index: {}]
  %s5 = inlined_call_operand.vmem [shape: bf16[32,8], index: 5, kind: input, shape index: {}]
  %s6 = inlined_call_operand.vmem [shape: f32[1,32], index: 6, kind: input, shape index: {}]
  %s7 = inlined_call_operand.vmem [shape: f32[1,32], index: 7, kind: input, shape index: {}]
  %s8 = inlined_call_operand.vmem [shape: f32[1,32], index: 8, kind: input, shape index: {}]
  %s9 = inlined_call_operand.vmem [shape: bf16[32,128], index: 9, kind: input, shape index: {}]
  %s10 = inlined_call_operand.vmem [shape: f32[1,128], index: 10, kind: input, shape index: {}]
  %s11 = inlined_call_operand.vmem [shape: f32[1,128], index: 11, kind: input, shape index: {}]
  %s12 = inlined_call_operand.vmem [shape: f32[1,128], index: 12, kind: input, shape index: {}]
  %s13 = inlined_call_operand.<no memory space> [shape: f32[1,1], index: 13, kind: input, shape index: {}]
  %s14 = inlined_call_operand.hbm [shape: f32[256,128], index: 14, kind: output, shape index: {}]
  %s15 = sld [smem:[#allocation0]]
  $region97: #{tpu_custom_call.1} parent=0
    _
  %s17 = ssub.s32 1, %s15
  %s18 = scalar_select 0, %s17, %s15
  %19 = sst [smem:[#allocation2]] %s13
  $region1: #{tpu_custom_call.1} parent=0
    #allocation3 [shape = 'u8[65536]{0}', space=vmem, size = 0x10000, scoped, tag = 'input window, operand 2']
    #allocation4 [shape = 's32[2]{0}', space=sflag, size = 0x8, scoped, tag = 'scoped memory for tpu_custom_call.1']
    #allocation5 [shape = 's32[2]{0}', space=sflag, size = 0x8, scoped, tag = 'scoped memory for tpu_custom_call.1']
    #allocation6 [shape = 'u8[65536]{0}', space=vmem, size = 0x10000, scoped, tag = 'input window, operand 3, single buffered']
    #allocation7 [shape = 's32[1]{0}', space=sflag, size = 0x4, scoped, tag = 'scoped memory for tpu_custom_call.1']
    #allocation8 [shape = 'u8[131072]{0}', space=vmem, size = 0x20000, scoped, tag = 'output window, operand 0']
    %20 = vsyncpa [#allocation4], 0
    %s21 = scalar_lea.sflag [#allocation4], 1
    %22 = vsyncpa %s21, 0
    %23 = vsyncpa [#allocation7], 0
    %24 = vsyncpa [#allocation5], 0
    %s25 = scalar_lea.sflag [#allocation5], 1
    %26 = vsyncpa %s25, 0
    loop: start=0, step=1, limit=4
    $region2: #{tpu_custom_call.1} parent=1 // loop_pre_header
      _
    $region3: #{tpu_custom_call.1} parent=1 // loop_header
      %s28 = sphi 0, %s32
      %p29 = scmp.ge.s32.totalorder %s28, 4
      %s38 = sphi 0, %s40
      %s41 = sphi 0, %s38
      %s42 = sphi 0, %s41
      %s58 = sphi 0, %s42
      %s64 = sphi 0, %s66
      %s67 = sphi 0, %s64
      %s68 = sphi 0, %s67
      %s84 = sphi 0, %s68
      %s90 = sphi 0, %s92
      %s93 = sphi 0, %s90
      %s94 = sphi 0, %s93
      %s110 = sphi 0, %s94
      %s114 = sphi 0, %s114
      %s116 = sphi 0, %s114
      %s117 = sphi 0, %s116
      %s131 = sphi 0, %s117
      %s135 = sphi 0, %s135
      %s137 = sphi 0, %s135
      %s138 = sphi 0, %s137
      %s152 = sphi 0, %s138
      %s156 = sphi 0, %s156
      %s158 = sphi 0, %s156
      %s159 = sphi 0, %s158
      %s173 = sphi 0, %s159
      %s177 = sphi 0, %s177
      %s179 = sphi 0, %s177
      %s180 = sphi 0, %s179
      %s194 = sphi 0, %s180
      %s198 = sphi 0, %s198
      %s200 = sphi 0, %s198
      %s201 = sphi 0, %s200
      %s215 = sphi 0, %s201
      %s219 = sphi 0, %s219
      %s221 = sphi 0, %s219
      %s222 = sphi 0, %s221
      %s236 = sphi 0, %s222
      %s240 = sphi 0, %s240
      %s242 = sphi 0, %s240
      %s243 = sphi 0, %s242
      %s257 = sphi 0, %s243
      %s261 = sphi 0, %s261
      %s263 = sphi 0, %s261
      %s264 = sphi 0, %s263
      %s278 = sphi 0, %s264
      %s282 = sphi 0, %s282
      %s284 = sphi 0, %s282
      %s285 = sphi 0, %s284
      %s299 = sphi 0, %s285
      %s303 = sphi 0, %s303
      %s305 = sphi 0, %s303
      %s306 = sphi 0, %s305
      %s320 = sphi 0, %s306
      %s324 = sphi 0, %s324
      %s326 = sphi 0, %s324
      %s327 = sphi 0, %s326
      %s341 = sphi 0, %s327
      %s347 = sphi 0, %s349
      %s350 = sphi 0, %s347
      %s351 = sphi 0, %s350
      %s367 = sphi 0, %s351
    $region4: #{tpu_custom_call.1} parent=1 // loop_header_branch
      %31 = sbr.rel (%p29) target = $region8
    $region5: #{tpu_custom_call.1} parent=1 // loop_body
      %s33 = ssub.s32 %s28, 1
      %s34 = ssub.s32 %s28, 2
      %s35 = sadd.s32 %s28, 1
      %s36 = ssub.s32 %s28, %s35
      %p37 = scmp.eq.s32.totalorder %s36, 0
      %s39 = sadd.s32 %s38, 1
      %s40 = scalar_select %p37, %s38, %s39
      %p43 = pneg %p37
      %p44 = scmp.eq.s32.totalorder %s28, 1
      %p45 = por %p43, %p44
      %p46 = scmp.ne.s32.totalorder %s38, %s41
      %p47 = scmp.eq.s32.totalorder %s28, 0
      %p48 = por %p46, %p47
      %p49 = scmp.ne.s32.totalorder %s38, %s41
      %p50 = scmp.eq.s32.totalorder %s33, 1
      %p51 = por %p49, %p50
      %p52 = scmp.ne.s32.totalorder %s41, %s42
      %p53 = scmp.eq.s32.totalorder %s33, 0
      %p54 = por %p52, %p53
      %p55 = scmp.ne.s32.totalorder %s41, %s42
      %p56 = scmp.eq.s32.totalorder %s34, 1
      %p57 = por %p55, %p56
      %p59 = scmp.ne.s32.totalorder %s42, %s58
      %p60 = scmp.eq.s32.totalorder %s34, 0
      %p61 = por %p59, %p60
      %s62 = ssub.s32 %s28, %s35
      %p63 = scmp.eq.s32.totalorder %s62, 0
      %s65 = sadd.s32 %s64, 1
      %s66 = scalar_select %p63, %s64, %s65
      %p69 = pneg %p63
      %p70 = scmp.eq.s32.totalorder %s28, 1
      %p71 = por %p69, %p70
      %p72 = scmp.ne.s32.totalorder %s64, %s67
      %p73 = scmp.eq.s32.totalorder %s28, 0
      %p74 = por %p72, %p73
      %p75 = scmp.ne.s32.totalorder %s64, %s67
      %p76 = scmp.eq.s32.totalorder %s33, 1
      %p77 = por %p75, %p76
      %p78 = scmp.ne.s32.totalorder %s67, %s68
      %p79 = scmp.eq.s32.totalorder %s33, 0
      %p80 = por %p78, %p79
      %p81 = scmp.ne.s32.totalorder %s67, %s68
      %p82 = scmp.eq.s32.totalorder %s34, 1
      %p83 = por %p81, %p82
      %p85 = scmp.ne.s32.totalorder %s68, %s84
      %p86 = scmp.eq.s32.totalorder %s34, 0
      %p87 = por %p85, %p86
      %s88 = ssub.s32 %s28, %s35
      %p89 = scmp.eq.s32.totalorder %s88, 0
      %s91 = sadd.s32 %s90, 1
      %s92 = scalar_select %p89, %s90, %s91
      %p95 = pneg %p89
      %p96 = scmp.eq.s32.totalorder %s28, 1
      %p97 = por %p95, %p96
      %p98 = scmp.ne.s32.totalorder %s90, %s93
      %p99 = scmp.eq.s32.totalorder %s28, 0
      %p100 = por %p98, %p99
      %p101 = scmp.ne.s32.totalorder %s90, %s93
      %p102 = scmp.eq.s32.totalorder %s33, 1
      %p103 = por %p101, %p102
      %p104 = scmp.ne.s32.totalorder %s93, %s94
      %p105 = scmp.eq.s32.totalorder %s33, 0
      %p106 = por %p104, %p105
      %p107 = scmp.ne.s32.totalorder %s93, %s94
      %p108 = scmp.eq.s32.totalorder %s34, 1
      %p109 = por %p107, %p108
      %p111 = scmp.ne.s32.totalorder %s94, %s110
      %p112 = scmp.eq.s32.totalorder %s34, 0
      %p113 = por %p111, %p112
      %s115 = sadd.s32 %s114, 1
      %p118 = scmp.eq.s32.totalorder %s28, 1
      %p119 = scmp.ne.s32.totalorder %s114, %s116
      %p120 = scmp.eq.s32.totalorder %s28, 0
      %p121 = por %p119, %p120
      %p122 = scmp.ne.s32.totalorder %s114, %s116
      %p123 = scmp.eq.s32.totalorder %s33, 1
      %p124 = por %p122, %p123
      %p125 = scmp.ne.s32.totalorder %s116, %s117
      %p126 = scmp.eq.s32.totalorder %s33, 0
      %p127 = por %p125, %p126
      %p128 = scmp.ne.s32.totalorder %s116, %s117
      %p129 = scmp.eq.s32.totalorder %s34, 1
      %p130 = por %p128, %p129
      %p132 = scmp.ne.s32.totalorder %s117, %s131
      %p133 = scmp.eq.s32.totalorder %s34, 0
      %p134 = por %p132, %p133
      %s136 = sadd.s32 %s135, 1
      %p139 = scmp.eq.s32.totalorder %s28, 1
      %p140 = scmp.ne.s32.totalorder %s135, %s137
      %p141 = scmp.eq.s32.totalorder %s28, 0
      %p142 = por %p140, %p141
      %p143 = scmp.ne.s32.totalorder %s135, %s137
      %p144 = scmp.eq.s32.totalorder %s33, 1
      %p145 = por %p143, %p144
      %p146 = scmp.ne.s32.totalorder %s137, %s138
      %p147 = scmp.eq.s32.totalorder %s33, 0
      %p148 = por %p146, %p147
      %p149 = scmp.ne.s32.totalorder %s137, %s138
      %p150 = scmp.eq.s32.totalorder %s34, 1
      %p151 = por %p149, %p150
      %p153 = scmp.ne.s32.totalorder %s138, %s152
      %p154 = scmp.eq.s32.totalorder %s34, 0
      %p155 = por %p153, %p154
      %s157 = sadd.s32 %s156, 1
      %p160 = scmp.eq.s32.totalorder %s28, 1
      %p161 = scmp.ne.s32.totalorder %s156, %s158
      %p162 = scmp.eq.s32.totalorder %s28, 0
      %p163 = por %p161, %p162
      %p164 = scmp.ne.s32.totalorder %s156, %s158
      %p165 = scmp.eq.s32.totalorder %s33, 1
      %p166 = por %p164, %p165
      %p167 = scmp.ne.s32.totalorder %s158, %s159
      %p168 = scmp.eq.s32.totalorder %s33, 0
      %p169 = por %p167, %p168
      %p170 = scmp.ne.s32.totalorder %s158, %s159
      %p171 = scmp.eq.s32.totalorder %s34, 1
      %p172 = por %p170, %p171
      %p174 = scmp.ne.s32.totalorder %s159, %s173
      %p175 = scmp.eq.s32.totalorder %s34, 0
      %p176 = por %p174, %p175
      %s178 = sadd.s32 %s177, 1
      %p181 = scmp.eq.s32.totalorder %s28, 1
      %p182 = scmp.ne.s32.totalorder %s177, %s179
      %p183 = scmp.eq.s32.totalorder %s28, 0
      %p184 = por %p182, %p183
      %p185 = scmp.ne.s32.totalorder %s177, %s179
      %p186 = scmp.eq.s32.totalorder %s33, 1
      %p187 = por %p185, %p186
      %p188 = scmp.ne.s32.totalorder %s179, %s180
      %p189 = scmp.eq.s32.totalorder %s33, 0
      %p190 = por %p188, %p189
      %p191 = scmp.ne.s32.totalorder %s179, %s180
      %p192 = scmp.eq.s32.totalorder %s34, 1
      %p193 = por %p191, %p192
      %p195 = scmp.ne.s32.totalorder %s180, %s194
      %p196 = scmp.eq.s32.totalorder %s34, 0
      %p197 = por %p195, %p196
      %s199 = sadd.s32 %s198, 1
      %p202 = scmp.eq.s32.totalorder %s28, 1
      %p203 = scmp.ne.s32.totalorder %s198, %s200
      %p204 = scmp.eq.s32.totalorder %s28, 0
      %p205 = por %p203, %p204
      %p206 = scmp.ne.s32.totalorder %s198, %s200
      %p207 = scmp.eq.s32.totalorder %s33, 1
      %p208 = por %p206, %p207
      %p209 = scmp.ne.s32.totalorder %s200, %s201
      %p210 = scmp.eq.s32.totalorder %s33, 0
      %p211 = por %p209, %p210
      %p212 = scmp.ne.s32.totalorder %s200, %s201
      %p213 = scmp.eq.s32.totalorder %s34, 1
      %p214 = por %p212, %p213
      %p216 = scmp.ne.s32.totalorder %s201, %s215
      %p217 = scmp.eq.s32.totalorder %s34, 0
      %p218 = por %p216, %p217
      %s220 = sadd.s32 %s219, 1
      %p223 = scmp.eq.s32.totalorder %s28, 1
      %p224 = scmp.ne.s32.totalorder %s219, %s221
      %p225 = scmp.eq.s32.totalorder %s28, 0
      %p226 = por %p224, %p225
      %p227 = scmp.ne.s32.totalorder %s219, %s221
      %p228 = scmp.eq.s32.totalorder %s33, 1
      %p229 = por %p227, %p228
      %p230 = scmp.ne.s32.totalorder %s221, %s222
      %p231 = scmp.eq.s32.totalorder %s33, 0
      %p232 = por %p230, %p231
      %p233 = scmp.ne.s32.totalorder %s221, %s222
      %p234 = scmp.eq.s32.totalorder %s34, 1
      %p235 = por %p233, %p234
      %p237 = scmp.ne.s32.totalorder %s222, %s236
      %p238 = scmp.eq.s32.totalorder %s34, 0
      %p239 = por %p237, %p238
      %s241 = sadd.s32 %s240, 1
      %p244 = scmp.eq.s32.totalorder %s28, 1
      %p245 = scmp.ne.s32.totalorder %s240, %s242
      %p246 = scmp.eq.s32.totalorder %s28, 0
      %p247 = por %p245, %p246
      %p248 = scmp.ne.s32.totalorder %s240, %s242
      %p249 = scmp.eq.s32.totalorder %s33, 1
      %p250 = por %p248, %p249
      %p251 = scmp.ne.s32.totalorder %s242, %s243
      %p252 = scmp.eq.s32.totalorder %s33, 0
      %p253 = por %p251, %p252
      %p254 = scmp.ne.s32.totalorder %s242, %s243
      %p255 = scmp.eq.s32.totalorder %s34, 1
      %p256 = por %p254, %p255
      %p258 = scmp.ne.s32.totalorder %s243, %s257
      %p259 = scmp.eq.s32.totalorder %s34, 0
      %p260 = por %p258, %p259
      %s262 = sadd.s32 %s261, 1
      %p265 = scmp.eq.s32.totalorder %s28, 1
      %p266 = scmp.ne.s32.totalorder %s261, %s263
      %p267 = scmp.eq.s32.totalorder %s28, 0
      %p268 = por %p266, %p267
      %p269 = scmp.ne.s32.totalorder %s261, %s263
      %p270 = scmp.eq.s32.totalorder %s33, 1
      %p271 = por %p269, %p270
      %p272 = scmp.ne.s32.totalorder %s263, %s264
      %p273 = scmp.eq.s32.totalorder %s33, 0
      %p274 = por %p272, %p273
      %p275 = scmp.ne.s32.totalorder %s263, %s264
      %p276 = scmp.eq.s32.totalorder %s34, 1
      %p277 = por %p275, %p276
      %p279 = scmp.ne.s32.totalorder %s264, %s278
      %p280 = scmp.eq.s32.totalorder %s34, 0
      %p281 = por %p279, %p280
      %s283 = sadd.s32 %s282, 1
      %p286 = scmp.eq.s32.totalorder %s28, 1
      %p287 = scmp.ne.s32.totalorder %s282, %s284
      %p288 = scmp.eq.s32.totalorder %s28, 0
      %p289 = por %p287, %p288
      %p290 = scmp.ne.s32.totalorder %s282, %s284
      %p291 = scmp.eq.s32.totalorder %s33, 1
      %p292 = por %p290, %p291
      %p293 = scmp.ne.s32.totalorder %s284, %s285
      %p294 = scmp.eq.s32.totalorder %s33, 0
      %p295 = por %p293, %p294
      %p296 = scmp.ne.s32.totalorder %s284, %s285
      %p297 = scmp.eq.s32.totalorder %s34, 1
      %p298 = por %p296, %p297
      %p300 = scmp.ne.s32.totalorder %s285, %s299
      %p301 = scmp.eq.s32.totalorder %s34, 0
      %p302 = por %p300, %p301
      %s304 = sadd.s32 %s303, 1
      %p307 = scmp.eq.s32.totalorder %s28, 1
      %p308 = scmp.ne.s32.totalorder %s303, %s305
      %p309 = scmp.eq.s32.totalorder %s28, 0
      %p310 = por %p308, %p309
      %p311 = scmp.ne.s32.totalorder %s303, %s305
      %p312 = scmp.eq.s32.totalorder %s33, 1
      %p313 = por %p311, %p312
      %p314 = scmp.ne.s32.totalorder %s305, %s306
      %p315 = scmp.eq.s32.totalorder %s33, 0
      %p316 = por %p314, %p315
      %p317 = scmp.ne.s32.totalorder %s305, %s306
      %p318 = scmp.eq.s32.totalorder %s34, 1
      %p319 = por %p317, %p318
      %p321 = scmp.ne.s32.totalorder %s306, %s320
      %p322 = scmp.eq.s32.totalorder %s34, 0
      %p323 = por %p321, %p322
      %s325 = sadd.s32 %s324, 1
      %p328 = scmp.eq.s32.totalorder %s28, 1
      %p329 = scmp.ne.s32.totalorder %s324, %s326
      %p330 = scmp.eq.s32.totalorder %s28, 0
      %p331 = por %p329, %p330
      %p332 = scmp.ne.s32.totalorder %s324, %s326
      %p333 = scmp.eq.s32.totalorder %s33, 1
      %p334 = por %p332, %p333
      %p335 = scmp.ne.s32.totalorder %s326, %s327
      %p336 = scmp.eq.s32.totalorder %s33, 0
      %p337 = por %p335, %p336
      %p338 = scmp.ne.s32.totalorder %s326, %s327
      %p339 = scmp.eq.s32.totalorder %s34, 1
      %p340 = por %p338, %p339
      %p342 = scmp.ne.s32.totalorder %s327, %s341
      %p343 = scmp.eq.s32.totalorder %s34, 0
      %p344 = por %p342, %p343
      %s345 = ssub.s32 %s28, %s35
      %p346 = scmp.eq.s32.totalorder %s345, 0
      %s348 = sadd.s32 %s347, 1
      %s349 = scalar_select %p346, %s347, %s348
      %p352 = pneg %p346
      %p353 = scmp.eq.s32.totalorder %s28, 1
      %p354 = por %p352, %p353
      %p355 = scmp.ne.s32.totalorder %s347, %s350
      %p356 = scmp.eq.s32.totalorder %s28, 0
      %p357 = por %p355, %p356
      %p358 = scmp.ne.s32.totalorder %s347, %s350
      %p359 = scmp.eq.s32.totalorder %s33, 1
      %p360 = por %p358, %p359
      %p361 = scmp.ne.s32.totalorder %s350, %s351
      %p362 = scmp.eq.s32.totalorder %s33, 0
      %p363 = por %p361, %p362
      %p364 = scmp.ne.s32.totalorder %s350, %s351
      %p365 = scmp.eq.s32.totalorder %s34, 1
      %p366 = por %p364, %p365
      %p368 = scmp.ne.s32.totalorder %s351, %s367
      %p369 = scmp.eq.s32.totalorder %s34, 0
      %p370 = por %p368, %p369
      %p371 = scmp.le.s32.totalorder 1, %s28
      %p372 = scmp.lt.s32.totalorder %s28, 3
      %p373 = pnand %p371, %p372
      %p374 = pneg %p373
      // Predicated region
      $region9: #{tpu_custom_call.1} parent=5 // pred_check
        _
      $region10: #{tpu_custom_call.1} parent=5 // pred_check_branch
        %376 = sbr.rel (%p373) target = $region12
      $region11: #{tpu_custom_call.1} parent=5 // pred_region
        %s377 = ssub.s32 %s28, 1
        // Predicated region
        $region13: #{tpu_custom_call.1} parent=11 // pred_check
          %p378 = pneg %p127
        $region14: #{tpu_custom_call.1} parent=11 // pred_check_branch
          %380 = sbr.rel (%p378) target = $region16
        $region15: #{tpu_custom_call.1} parent=11 // pred_region
          %s382 = ssub.s32 2048, 2048
          %383 = vsyncadd [#allocation7], %s382
          %s384 = sshll.u32 [#allocation6], 4
          %s385 = int_to_ptr.vmem [resolvable:$true] %s384
          %390 = dma.hbm_to_vmem [thread:$0]  %s3, 2048, %s385, [#allocation7], 128, 128, 8
        $region16: #{tpu_custom_call.1} parent=11 // pred_fallthru
          _
        // Predicated region
        $region17: #{tpu_custom_call.1} parent=11 // pred_check
          %p391 = pneg %p148
        $region18: #{tpu_custom_call.1} parent=11 // pred_check_branch
          %393 = sbr.rel (%p391) target = $region20
        $region19: #{tpu_custom_call.1} parent=11 // pred_region
          _
        $region20: #{tpu_custom_call.1} parent=11 // pred_fallthru
          _
        // Predicated region
        $region21: #{tpu_custom_call.1} parent=11 // pred_check
          %p394 = pneg %p169
        $region22: #{tpu_custom_call.1} parent=11 // pred_check_branch
          %396 = sbr.rel (%p394) target = $region24
        $region23: #{tpu_custom_call.1} parent=11 // pred_region
          _
        $region24: #{tpu_custom_call.1} parent=11 // pred_fallthru
          _
        // Predicated region
        $region25: #{tpu_custom_call.1} parent=11 // pred_check
          %p397 = pneg %p190
        $region26: #{tpu_custom_call.1} parent=11 // pred_check_branch
          %399 = sbr.rel (%p397) target = $region28
        $region27: #{tpu_custom_call.1} parent=11 // pred_region
          _
        $region28: #{tpu_custom_call.1} parent=11 // pred_fallthru
          _
        // Predicated region
        $region29: #{tpu_custom_call.1} parent=11 // pred_check
          %p400 = pneg %p211
        $region30: #{tpu_custom_call.1} parent=11 // pred_check_branch
          %402 = sbr.rel (%p400) target = $region32
        $region31: #{tpu_custom_call.1} parent=11 // pred_region
          _
        $region32: #{tpu_custom_call.1} parent=11 // pred_fallthru
          _
        // Predicated region
        $region33: #{tpu_custom_call.1} parent=11 // pred_check
          %p403 = pneg %p232
        $region34: #{tpu_custom_call.1} parent=11 // pred_check_branch
          %405 = sbr.rel (%p403) target = $region36
        $region35: #{tpu_custom_call.1} parent=11 // pred_region
          _
        $region36: #{tpu_custom_call.1} parent=11 // pred_fallthru
          _
        // Predicated region
        $region37: #{tpu_custom_call.1} parent=11 // pred_check
          %p406 = pneg %p253
        $region38: #{tpu_custom_call.1} parent=11 // pred_check_branch
          %408 = sbr.rel (%p406) target = $region40
        $region39: #{tpu_custom_call.1} parent=11 // pred_region
          _
        $region40: #{tpu_custom_call.1} parent=11 // pred_fallthru
          _
        // Predicated region
        $region41: #{tpu_custom_call.1} parent=11 // pred_check
          %p409 = pneg %p274
        $region42: #{tpu_custom_call.1} parent=11 // pred_check_branch
          %411 = sbr.rel (%p409) target = $region44
        $region43: #{tpu_custom_call.1} parent=11 // pred_region
          _
        $region44: #{tpu_custom_call.1} parent=11 // pred_fallthru
          _
        // Predicated region
        $region45: #{tpu_custom_call.1} parent=11 // pred_check
          %p412 = pneg %p295
        $region46: #{tpu_custom_call.1} parent=11 // pred_check_branch
          %414 = sbr.rel (%p412) target = $region48
        $region47: #{tpu_custom_call.1} parent=11 // pred_region
          _
        $region48: #{tpu_custom_call.1} parent=11 // pred_fallthru
          _
        // Predicated region
        $region49: #{tpu_custom_call.1} parent=11 // pred_check
          %p415 = pneg %p316
        $region50: #{tpu_custom_call.1} parent=11 // pred_check_branch
          %417 = sbr.rel (%p415) target = $region52
        $region51: #{tpu_custom_call.1} parent=11 // pred_region
          _
        $region52: #{tpu_custom_call.1} parent=11 // pred_fallthru
          _
        // Predicated region
        $region53: #{tpu_custom_call.1} parent=11 // pred_check
          %p418 = pneg %p337
        $region54: #{tpu_custom_call.1} parent=11 // pred_check_branch
          %420 = sbr.rel (%p418) target = $region56
        $region55: #{tpu_custom_call.1} parent=11 // pred_region
          _
        $region56: #{tpu_custom_call.1} parent=11 // pred_fallthru
          _
      $region12: #{tpu_custom_call.1} parent=5 // pred_fallthru
        _
      %p421 = scmp.lt.s32.totalorder %s28, 2
      // Predicated region
      $region57: #{tpu_custom_call.1} parent=5 // pred_check
        %p422 = pneg %p421
      $region58: #{tpu_custom_call.1} parent=5 // pred_check_branch
        %424 = sbr.rel (%p422) target = $region60
      $region59: #{tpu_custom_call.1} parent=5 // pred_region
        // Predicated region
        $region61: #{tpu_custom_call.1} parent=59 // pred_check
          %p425 = pneg %p48
        $region62: #{tpu_custom_call.1} parent=59 // pred_check_branch
          %427 = sbr.rel (%p425) target = $region64
        $region63: #{tpu_custom_call.1} parent=59 // pred_region
          %s428 = smul.u32 16, %s28
          %p429 = scmp.lt.s32.totalorder %s428, 31
          %s430 = scalar_select %p429, %s428, 31
          %s431 = smul.addr %s430, 4
          %s432 = scalar_lea.vmem %s0, %s431
          %s433 = smul.u32 16, %s28
        $region64: #{tpu_custom_call.1} parent=59 // pred_fallthru
          _
        // Predicated region
        $region65: #{tpu_custom_call.1} parent=59 // pred_check
          %p434 = pneg %p74
        $region66: #{tpu_custom_call.1} parent=59 // pred_check_branch
          %436 = sbr.rel (%p434) target = $region68
        $region67: #{tpu_custom_call.1} parent=59 // pred_region
          %p437 = scmp.lt.s32.totalorder %s28, 1
          %s438 = scalar_select %p437, %s28, 1
          %s439 = smul.addr %s438, 16
          %s440 = smul.addr %s439, 4
          %s441 = scalar_lea.vmem %s1, %s440
        $region68: #{tpu_custom_call.1} parent=59 // pred_fallthru
          _
        // Predicated region
        $region69: #{tpu_custom_call.1} parent=59 // pred_check
          %p442 = pneg %p100
        $region70: #{tpu_custom_call.1} parent=59 // pred_check_branch
          %444 = sbr.rel (%p442) target = $region72
        $region71: #{tpu_custom_call.1} parent=59 // pred_region
          %s445 = sand.u32 %s90, 1
          %s446 = scalar_lea.sflag [#allocation4], %s445
          %s447 = sand.u32 %s90, 1
          %s448 = smul.addr %s447, 64
          %s449 = scalar_lea.vmem [#allocation3], %s448
          %s451 = ssub.s32 1024, 1024
          %452 = vsyncadd %s446, %s451
          %s453 = smul.addr %s28, 16
          %s454 = smul.addr %s453, 64
          %s455 = scalar_lea.hbm %s2, %s454
          %s456 = sshll.u32 %s449, 4
          %s457 = int_to_ptr.vmem [resolvable:$true] %s456
          %462 = dma.hbm_to_vmem [thread:$0]  %s455, 1024, %s457, %s446, 64, 64, 4
        $region72: #{tpu_custom_call.1} parent=59 // pred_fallthru
          _
      $region60: #{tpu_custom_call.1} parent=5 // pred_fallthru
        _
      %p463 = scmp.le.s32.totalorder 1, %s28
      %p464 = scmp.lt.s32.totalorder %s28, 3
      %p465 = pnand %p463, %p464
      %p466 = pneg %p465
      // Predicated region
      $region73: #{tpu_custom_call.1} parent=5 // pred_check
        _
      $region74: #{tpu_custom_call.1} parent=5 // pred_check_branch
        %468 = sbr.rel (%p465) target = $region76
      $region75: #{tpu_custom_call.1} parent=5 // pred_region
        %s469 = ssub.s32 %s28, 1
        %s470 = sand.u32 %s93, 1
        %s471 = scalar_lea.sflag [#allocation4], %s470
        %s472 = sand.u32 %s93, 1
        %s473 = smul.addr %s472, 64
        %s474 = scalar_lea.vmem [#allocation3], %s473
        // Predicated region
        $region77: #{tpu_custom_call.1} parent=75 // pred_check
          %p475 = pneg %p106
        $region78: #{tpu_custom_call.1} parent=75 // pred_check_branch
          %477 = sbr.rel (%p475) target = $region80
        $region79: #{tpu_custom_call.1} parent=75 // pred_region
          %478 = dma.done %s471, 1024
        $region80: #{tpu_custom_call.1} parent=75 // pred_fallthru
          _
        // Predicated region
        $region81: #{tpu_custom_call.1} parent=75 // pred_check
          %p479 = pneg %p127
        $region82: #{tpu_custom_call.1} parent=75 // pred_check_branch
          %481 = sbr.rel (%p479) target = $region84
        $region83: #{tpu_custom_call.1} parent=75 // pred_region
          %482 = dma.done [#allocation7], 2048
        $region84: #{tpu_custom_call.1} parent=75 // pred_fallthru
          _
        %s483 = smul.u32 16, %s33
        %p484 = scmp.lt.s32.totalorder %s483, 31
        %s485 = scalar_select %p484, %s483, 31
        %s486 = smul.addr %s485, 4
        %s487 = scalar_lea.vmem %s0, %s486
        %p488 = pneg %p54
        %p489 = pneg %p51
        %p490 = scmp.lt.s32.totalorder %s33, 1
        %s491 = scalar_select %p490, %s33, 1
        %s492 = smul.addr %s491, 16
        %s493 = smul.addr %s492, 4
        %s494 = scalar_lea.vmem %s1, %s493
        %p495 = pneg %p80
        %p496 = pneg %p77
        %s497 = sand.u32 %s93, 1
        %s498 = scalar_lea.sflag [#allocation4], %s497
        %s499 = sand.u32 %s93, 1
        %s500 = smul.addr %s499, 64
        %s501 = scalar_lea.vmem [#allocation3], %s500
        %p502 = pneg %p106
        %p503 = pneg %p103
        %p504 = pneg %p127
        %p505 = pneg %p124
        %p506 = pneg %p148
        %p507 = pneg %p145
        %p508 = pneg %p169
        %p509 = pneg %p166
        %p510 = pneg %p190
        %p511 = pneg %p187
        %p512 = pneg %p211
        %p513 = pneg %p208
        %p514 = pneg %p232
        %p515 = pneg %p229
        %p516 = pneg %p253
        %p517 = pneg %p250
        %p518 = pneg %p274
        %p519 = pneg %p271
        %p520 = pneg %p295
        %p521 = pneg %p292
        %p522 = pneg %p316
        %p523 = pneg %p313
        %p524 = pneg %p337
        %p525 = pneg %p334
        %p526 = pneg %p363
        %p527 = pneg %p360
        %s528 = sand.u32 %s350, 1
        %s529 = scalar_lea.sflag [#allocation5], %s528
        %s530 = sand.u32 %s350, 1
        %s531 = smul.addr %s530, 128
        %s532 = scalar_lea.vmem [#allocation8], %s531
        %s533 = smul.u32 16, %s33
        %p534 = scmp.lt.s32.totalorder %s533, 31
        %s535 = scalar_select %p534, %s533, 31
        %s536 = smul.addr %s535, 4
        %s537 = scalar_lea.vmem %s0, %s536
        %s538 = smul.u32 16, %s33
        %p539 = scmp.lt.s32.totalorder %s33, 1
        %s540 = scalar_select %p539, %s33, 1
        %s541 = smul.addr %s540, 16
        %s542 = smul.addr %s541, 4
        %s543 = scalar_lea.vmem %s1, %s542
        %s544 = smul.u32 16, %s33
        %v548 = vld [vmem:[%s537] sm:$0xf]
        %v549 = vld [vmem:[%s537 + $0x4] sm:$0xf]
        %v550 = vld [vmem:[%s537 + $0x8] sm:$0xf]
        %v551 = vld [vmem:[%s537 + $0xc] sm:$0xf]
        %v552 = vld [vmem:[%s537 + $0x10] sm:$0xf]
        %v553 = vld [vmem:[%s537 + $0x14] sm:$0xf]
        %v554 = vld [vmem:[%s537 + $0x18] sm:$0xf]
        %v555 = vld [vmem:[%s537 + $0x1c] sm:$0xf]
        %v556 = vld [vmem:[%s537 + $0x20] sm:$0xf]
        %v557 = vld [vmem:[%s537 + $0x24] sm:$0xf]
        %v558 = vld [vmem:[%s537 + $0x28] sm:$0xf]
        %v559 = vld [vmem:[%s537 + $0x2c] sm:$0xf]
        %v560 = vld [vmem:[%s537 + $0x30] sm:$0xf]
        %v561 = vld [vmem:[%s537 + $0x34] sm:$0xf]
        %v562 = vld [vmem:[%s537 + $0x38] sm:$0xf]
        %v563 = vld [vmem:[%s537 + $0x3c] sm:$0xf]
        %v564 = vld [vmem:[%s543] sm:$0xf]
        %v565 = vld [vmem:[%s543 + $0x4] sm:$0xf]
        %v566 = vld [vmem:[%s543 + $0x8] sm:$0xf]
        %v567 = vld [vmem:[%s543 + $0xc] sm:$0xf]
        %v568 = vld [vmem:[%s543 + $0x10] sm:$0xf]
        %v569 = vld [vmem:[%s543 + $0x14] sm:$0xf]
        %v570 = vld [vmem:[%s543 + $0x18] sm:$0xf]
        %v571 = vld [vmem:[%s543 + $0x1c] sm:$0xf]
        %v572 = vld [vmem:[%s543 + $0x20] sm:$0xf]
        %v573 = vld [vmem:[%s543 + $0x24] sm:$0xf]
        %v574 = vld [vmem:[%s543 + $0x28] sm:$0xf]
        %v575 = vld [vmem:[%s543 + $0x2c] sm:$0xf]
        %v576 = vld [vmem:[%s543 + $0x30] sm:$0xf]
        %v577 = vld [vmem:[%s543 + $0x34] sm:$0xf]
        %v578 = vld [vmem:[%s543 + $0x38] sm:$0xf]
        %v579 = vld [vmem:[%s543 + $0x3c] sm:$0xf]
        %vm580 = vcmp.gt.bf16.partialorder %v564, 0
        %vm581 = vcmp.gt.bf16.partialorder %v565, 0
        %vm582 = vcmp.gt.bf16.partialorder %v566, 0
        %vm583 = vcmp.gt.bf16.partialorder %v567, 0
        %vm584 = vcmp.gt.bf16.partialorder %v568, 0
        %vm585 = vcmp.gt.bf16.partialorder %v569, 0
        %vm586 = vcmp.gt.bf16.partialorder %v570, 0
        %vm587 = vcmp.gt.bf16.partialorder %v571, 0
        %vm588 = vcmp.gt.bf16.partialorder %v572, 0
        %vm589 = vcmp.gt.bf16.partialorder %v573, 0
        %vm590 = vcmp.gt.bf16.partialorder %v574, 0
        %vm591 = vcmp.gt.bf16.partialorder %v575, 0
        %vm592 = vcmp.gt.bf16.partialorder %v576, 0
        %vm593 = vcmp.gt.bf16.partialorder %v577, 0
        %vm594 = vcmp.gt.bf16.partialorder %v578, 0
        %vm595 = vcmp.gt.bf16.partialorder %v579, 0
        %v596 = vld [vmem:[#allocation6] sm:$0xff]
        %v597 = vld [vmem:[#allocation6 + $0x8] sm:$0xff]
        %v598 = vld [vmem:[#allocation6 + $0x10] sm:$0xff]
        %v599 = vld [vmem:[#allocation6 + $0x18] sm:$0xff]
        %v600 = vld [vmem:[#allocation6 + $0x20] sm:$0xff]
        %v601 = vld [vmem:[#allocation6 + $0x28] sm:$0xff]
        %v602 = vld [vmem:[#allocation6 + $0x30] sm:$0xff]
        %v603 = vld [vmem:[#allocation6 + $0x38] sm:$0xff]
        %v604 = vld [vmem:[#allocation6 + $0x40] sm:$0xff]
        %v605 = vld [vmem:[#allocation6 + $0x48] sm:$0xff]
        %v606 = vld [vmem:[#allocation6 + $0x50] sm:$0xff]
        %v607 = vld [vmem:[#allocation6 + $0x58] sm:$0xff]
        %v608 = vld [vmem:[#allocation6 + $0x60] sm:$0xff]
        %v609 = vld [vmem:[#allocation6 + $0x68] sm:$0xff]
        %v610 = vld [vmem:[#allocation6 + $0x70] sm:$0xff]
        %v611 = vld [vmem:[#allocation6 + $0x78] sm:$0xff]
        %v612 = vld [vmem:[%s4] sm:$0xf]
        %v613 = vld [vmem:[%s4 + $0x4] sm:$0xf]
        %v630 = vunpack.c.l.b16 %v548
        %v631 = vunpack.c.l.b16 %v549
        %v632 = vunpack.c.l.b16 %v550
        %v633 = vunpack.c.l.b16 %v551
        %v634 = vunpack.c.l.b16 %v552
        %v635 = vunpack.c.l.b16 %v553
        %v636 = vunpack.c.l.b16 %v554
        %v637 = vunpack.c.l.b16 %v555
        %v638 = vunpack.c.l.b16 %v556
        %v639 = vunpack.c.l.b16 %v557
        %v640 = vunpack.c.l.b16 %v558
        %v641 = vunpack.c.l.b16 %v559
        %v642 = vunpack.c.l.b16 %v560
        %v643 = vunpack.c.l.b16 %v561
        %v644 = vunpack.c.l.b16 %v562
        %v645 = vunpack.c.l.b16 %v563
        %v646 = vpack.c.b16 %v631, %v630
        %v647 = vpack.c.b16 %v633, %v632
        %v648 = vpack.c.b16 %v635, %v634
        %v649 = vpack.c.b16 %v637, %v636
        %v650 = vpack.c.b16 %v639, %v638
        %v651 = vpack.c.b16 %v641, %v640
        %v652 = vpack.c.b16 %v643, %v642
        %v653 = vpack.c.b16 %v645, %v644
        %v656 = vunpack.c.l.b16 %v612
        %v657 = vunpack.c.l.b16 %v613
        %v658 = vpack.c.b16 %v657, %v656
        %vm660 = vcmask 130048
        %v662 = vsel %vm660, %v646, 0
        %v665 = vsel %vm660, %v647, 0
        %v668 = vsel %vm660, %v648, 0
        %v671 = vsel %vm660, %v649, 0
        %v674 = vsel %vm660, %v650, 0
        %v677 = vsel %vm660, %v651, 0
        %v680 = vsel %vm660, %v652, 0
        %v683 = vsel %vm660, %v653, 0
        %685 = vmatprep.subr.bf16.mxu0 0
        %686 = vmatpush1.bf16.msra.mxu0 0
        %687 = vmatprep.subr.bf16.mxu0 0
        %688 = vmatpush1.bf16.msra.mxu0 0
        %689 = vmatprep.subr.bf16.mxu0 0
        %690 = vmatpush1.bf16.msra.mxu0 0
        %691 = vmatprep.subr.bf16.mxu0 0
        %692 = vmatpush1.bf16.msra.mxu0 0
        %693 = vmatprep.subr.bf16.mxu0 0
        %694 = vmatpush1.bf16.msra.mxu0 0
        %695 = vmatprep.subr.bf16.mxu0 0
        %696 = vmatpush1.bf16.msra.mxu0 0
        %697 = vmatprep.subr.bf16.mxu0 0
        %698 = vmatpush1.bf16.msra.mxu0 0
        %699 = vmatprep.subr.bf16.mxu0 0
        %700 = vmatpush1.bf16.msra.mxu0 %v658
        %701 = vmatprep.subr.bf16.mxu0 0
        %702 = vmatpush2.bf16.msra.mxu0 0
        %703 = vmatprep.subr.bf16.mxu0 0
        %704 = vmatpush2.bf16.msra.mxu0 0
        %705 = vmatprep.subr.bf16.mxu0 0
        %706 = vmatpush2.bf16.msra.mxu0 0
        %707 = vmatprep.subr.bf16.mxu0 0
        %708 = vmatpush2.bf16.msra.mxu0 0
        %709 = vmatprep.subr.bf16.mxu0 0
        %710 = vmatpush2.bf16.msra.mxu0 0
        %711 = vmatprep.subr.bf16.mxu0 0
        %712 = vmatpush2.bf16.msra.mxu0 0
        %713 = vmatprep.subr.bf16.mxu0 0
        %714 = vmatpush2.bf16.msra.mxu0 0
        %715 = vmatprep.subr.bf16.mxu0 0
        %716 = vmatpush2.bf16.msra.mxu0 0
        %717 = vmatprep.mubr.bf16.mxu0 0
        %718 = vmatmul.mubr.bf16.gmra.mxu0 %v662
        %v719 = vpop.f32.mrf.mxu0
        %v720 = vadd.f32 0.0, %v719
        %v721 = vpop.f32.mrf.mxu0
        %v722 = vpop.f32.mrf.mxu0
        %v723 = vadd.f32 0.0, %v722
        %v724 = vpop.f32.mrf.mxu0
        %725 = vmatprep.mubr.bf16.mxu0 0
        %726 = vmatmul.mubr.bf16.gmra.mxu0 %v665
        %v727 = vpop.f32.mrf.mxu0
        %v728 = vadd.f32 0.0, %v727
        %v729 = vpop.f32.mrf.mxu0
        %v730 = vpop.f32.mrf.mxu0
        %v731 = vadd.f32 0.0, %v730
        %v732 = vpop.f32.mrf.mxu0
        %733 = vmatprep.mubr.bf16.mxu0 0
        %734 = vmatmul.mubr.bf16.gmra.mxu0 %v668
        %v735 = vpop.f32.mrf.mxu0
        %v736 = vadd.f32 0.0, %v735
        %v737 = vpop.f32.mrf.mxu0
        %v738 = vpop.f32.mrf.mxu0
        %v739 = vadd.f32 0.0, %v738
        %v740 = vpop.f32.mrf.mxu0
        %741 = vmatprep.mubr.bf16.mxu0 0
        %742 = vmatmul.mubr.bf16.gmra.mxu0 %v671
        %v743 = vpop.f32.mrf.mxu0
        %v744 = vadd.f32 0.0, %v743
        %v745 = vpop.f32.mrf.mxu0
        %v746 = vpop.f32.mrf.mxu0
        %v747 = vadd.f32 0.0, %v746
        %v748 = vpop.f32.mrf.mxu0
        %749 = vmatprep.mubr.bf16.mxu0 0
        %750 = vmatmul.mubr.bf16.gmra.mxu0 %v674
        %v751 = vpop.f32.mrf.mxu0
        %v752 = vadd.f32 0.0, %v751
        %v753 = vpop.f32.mrf.mxu0
        %v754 = vpop.f32.mrf.mxu0
        %v755 = vadd.f32 0.0, %v754
        %v756 = vpop.f32.mrf.mxu0
        %757 = vmatprep.mubr.bf16.mxu0 0
        %758 = vmatmul.mubr.bf16.gmra.mxu0 %v677
        %v759 = vpop.f32.mrf.mxu0
        %v760 = vadd.f32 0.0, %v759
        %v761 = vpop.f32.mrf.mxu0
        %v762 = vpop.f32.mrf.mxu0
        %v763 = vadd.f32 0.0, %v762
        %v764 = vpop.f32.mrf.mxu0
        %765 = vmatprep.mubr.bf16.mxu0 0
        %766 = vmatmul.mubr.bf16.gmra.mxu0 %v680
        %v767 = vpop.f32.mrf.mxu0
        %v768 = vadd.f32 0.0, %v767
        %v769 = vpop.f32.mrf.mxu0
        %v770 = vpop.f32.mrf.mxu0
        %v771 = vadd.f32 0.0, %v770
        %v772 = vpop.f32.mrf.mxu0
        %773 = vmatprep.mubr.bf16.mxu0 0
        %774 = vmatmul.mubr.bf16.gmra.mxu0 %v683
        %v775 = vpop.f32.mrf.mxu0
        %v776 = vadd.f32 0.0, %v775
        %v777 = vpop.f32.mrf.mxu0
        %v778 = vpop.f32.mrf.mxu0
        %v779 = vadd.f32 0.0, %v778
        %v780 = vpop.f32.mrf.mxu0
        %781 = vdwg.mxu0
        %v782 = vpack.c.bf16 %v723, %v720
        %v783 = vpack.c.bf16 %v731, %v728
        %v784 = vpack.c.bf16 %v739, %v736
        %v785 = vpack.c.bf16 %v747, %v744
        %v786 = vpack.c.bf16 %v755, %v752
        %v787 = vpack.c.bf16 %v763, %v760
        %v788 = vpack.c.bf16 %v771, %v768
        %v789 = vpack.c.bf16 %v779, %v776
        %v790 = vld [vmem:[%s5] sm:$0xf]
        %v791 = vld [vmem:[%s5 + $0x4] sm:$0xf]
        %v792 = vld [vmem:[%s5 + $0x8] sm:$0xf]
        %v793 = vld [vmem:[%s5 + $0xc] sm:$0xf]
        %v798 = vunpack.c.l.b16 %v790
        %v799 = vunpack.c.l.b16 %v791
        %v800 = vunpack.c.l.b16 %v792
        %v801 = vunpack.c.l.b16 %v793
        %v802 = vpack.c.b16 %v799, %v798
        %v803 = vpack.c.b16 %v801, %v800
        %vm806 = vcmask 261120
        %v808 = vsel %vm806, %v782, 0
        %v811 = vsel %vm806, %v783, 0
        %v814 = vsel %vm806, %v784, 0
        %v817 = vsel %vm806, %v785, 0
        %v820 = vsel %vm806, %v786, 0
        %v823 = vsel %vm806, %v787, 0
        %v826 = vsel %vm806, %v788, 0
        %v829 = vsel %vm806, %v789, 0
        %831 = vmatprep.subr.bf16.mxu0 0
        %832 = vmatpush1.bf16.msra.mxu0 0
        %833 = vmatprep.subr.bf16.mxu0 0
        %834 = vmatpush1.bf16.msra.mxu0 0
        %835 = vmatprep.subr.bf16.mxu0 0
        %836 = vmatpush1.bf16.msra.mxu0 0
        %837 = vmatprep.subr.bf16.mxu0 0
        %838 = vmatpush1.bf16.msra.mxu0 0
        %839 = vmatprep.subr.bf16.mxu0 0
        %840 = vmatpush1.bf16.msra.mxu0 0
        %841 = vmatprep.subr.bf16.mxu0 0
        %842 = vmatpush1.bf16.msra.mxu0 0
        %843 = vmatprep.subr.bf16.mxu0 0
        %844 = vmatpush1.bf16.msra.mxu0 %v803
        %845 = vmatprep.subr.bf16.mxu0 0
        %846 = vmatpush1.bf16.msra.mxu0 %v802
        %847 = vmatprep.subr.bf16.mxu0 0
        %848 = vmatpush2.bf16.msra.mxu0 0
        %849 = vmatprep.subr.bf16.mxu0 0
        %850 = vmatpush2.bf16.msra.mxu0 0
        %851 = vmatprep.subr.bf16.mxu0 0
        %852 = vmatpush2.bf16.msra.mxu0 0
        %853 = vmatprep.subr.bf16.mxu0 0
        %854 = vmatpush2.bf16.msra.mxu0 0
        %855 = vmatprep.subr.bf16.mxu0 0
        %856 = vmatpush2.bf16.msra.mxu0 0
        %857 = vmatprep.subr.bf16.mxu0 0
        %858 = vmatpush2.bf16.msra.mxu0 0
        %859 = vmatprep.subr.bf16.mxu0 0
        %860 = vmatpush2.bf16.msra.mxu0 0
        %861 = vmatprep.subr.bf16.mxu0 0
        %862 = vmatpush2.bf16.msra.mxu0 0
        %863 = vmatprep.mubr.bf16.mxu0 0
        %864 = vmatmul.mubr.bf16.gmra.mxu0 %v808
        %v865 = vpop.f32.mrf.mxu0
        %v866 = vadd.f32 0.0, %v865
        %v867 = vpop.f32.mrf.mxu0
        %v868 = vpop.f32.mrf.mxu0
        %v869 = vadd.f32 0.0, %v868
        %v870 = vpop.f32.mrf.mxu0
        %871 = vmatprep.mubr.bf16.mxu0 0
        %872 = vmatmul.mubr.bf16.gmra.mxu0 %v811
        %v873 = vpop.f32.mrf.mxu0
        %v874 = vadd.f32 0.0, %v873
        %v875 = vpop.f32.mrf.mxu0
        %v876 = vpop.f32.mrf.mxu0
        %v877 = vadd.f32 0.0, %v876
        %v878 = vpop.f32.mrf.mxu0
        %879 = vmatprep.mubr.bf16.mxu0 0
        %880 = vmatmul.mubr.bf16.gmra.mxu0 %v814
        %v881 = vpop.f32.mrf.mxu0
        %v882 = vadd.f32 0.0, %v881
        %v883 = vpop.f32.mrf.mxu0
        %v884 = vpop.f32.mrf.mxu0
        %v885 = vadd.f32 0.0, %v884
        %v886 = vpop.f32.mrf.mxu0
        %887 = vmatprep.mubr.bf16.mxu0 0
        %888 = vmatmul.mubr.bf16.gmra.mxu0 %v817
        %v889 = vpop.f32.mrf.mxu0
        %v890 = vadd.f32 0.0, %v889
        %v891 = vpop.f32.mrf.mxu0
        %v892 = vpop.f32.mrf.mxu0
        %v893 = vadd.f32 0.0, %v892
        %v894 = vpop.f32.mrf.mxu0
        %895 = vmatprep.mubr.bf16.mxu0 0
        %896 = vmatmul.mubr.bf16.gmra.mxu0 %v820
        %v897 = vpop.f32.mrf.mxu0
        %v898 = vadd.f32 0.0, %v897
        %v899 = vpop.f32.mrf.mxu0
        %v900 = vpop.f32.mrf.mxu0
        %v901 = vadd.f32 0.0, %v900
        %v902 = vpop.f32.mrf.mxu0
        %903 = vmatprep.mubr.bf16.mxu0 0
        %904 = vmatmul.mubr.bf16.gmra.mxu0 %v823
        %v905 = vpop.f32.mrf.mxu0
        %v906 = vadd.f32 0.0, %v905
        %v907 = vpop.f32.mrf.mxu0
        %v908 = vpop.f32.mrf.mxu0
        %v909 = vadd.f32 0.0, %v908
        %v910 = vpop.f32.mrf.mxu0
        %911 = vmatprep.mubr.bf16.mxu0 0
        %912 = vmatmul.mubr.bf16.gmra.mxu0 %v826
        %v913 = vpop.f32.mrf.mxu0
        %v914 = vadd.f32 0.0, %v913
        %v915 = vpop.f32.mrf.mxu0
        %v916 = vpop.f32.mrf.mxu0
        %v917 = vadd.f32 0.0, %v916
        %v918 = vpop.f32.mrf.mxu0
        %919 = vmatprep.mubr.bf16.mxu0 0
        %920 = vmatmul.mubr.bf16.gmra.mxu0 %v829
        %v921 = vpop.f32.mrf.mxu0
        %v922 = vadd.f32 0.0, %v921
        %v923 = vpop.f32.mrf.mxu0
        %v924 = vpop.f32.mrf.mxu0
        %v925 = vadd.f32 0.0, %v924
        %v926 = vpop.f32.mrf.mxu0
        %927 = vdwg.mxu0
        %928 = vxpose.xlu0.b32.start [1/16] %v866, 128
        %929 = vxpose.xlu0.b32.cont [2/16] %v869, 128
        %930 = vxpose.xlu0.b32.cont [3/16] %v874, 128
        %931 = vxpose.xlu0.b32.cont [4/16] %v877, 128
        %932 = vxpose.xlu0.b32.cont [5/16] %v882, 128
        %933 = vxpose.xlu0.b32.cont [6/16] %v885, 128
        %934 = vxpose.xlu0.b32.cont [7/16] %v890, 128
        %935 = vxpose.xlu0.b32.cont [8/16] %v893, 128
        %936 = vxpose.xlu0.b32.cont [9/16] %v898, 128
        %937 = vxpose.xlu0.b32.cont [10/16] %v901, 128
        %938 = vxpose.xlu0.b32.cont [11/16] %v906, 128
        %939 = vxpose.xlu0.b32.cont [12/16] %v909, 128
        %940 = vxpose.xlu0.b32.cont [13/16] %v914, 128
        %941 = vxpose.xlu0.b32.cont [14/16] %v917, 128
        %942 = vxpose.xlu0.b32.cont [15/16] %v922, 128
        %943 = vxpose.xlu0.b32.end [16/16] %v925, 128
        %v944 = vpop.trf.xlu0
        %v945 = vpop.trf.xlu0
        %v946 = vpop.trf.xlu0
        %v947 = vpop.trf.xlu0
        %v948 = vpop.trf.xlu0
        %v949 = vpop.trf.xlu0
        %v950 = vpop.trf.xlu0
        %v951 = vpop.trf.xlu0
        %v952 = vpop.trf.xlu0
        %v953 = vpop.trf.xlu0
        %v954 = vpop.trf.xlu0
        %v955 = vpop.trf.xlu0
        %v956 = vpop.trf.xlu0
        %v957 = vpop.trf.xlu0
        %v958 = vpop.trf.xlu0
        %v959 = vpop.trf.xlu0
        %961 = vset.pattern.permute.xlu0 4
        %962 = vperm.xlu0 %961, %v866
        %v963 = vpop.permute.xlu0 %962
        %966 = vset.pattern.permute.xlu0 4
        %967 = vperm.xlu0 %966, %v869
        %v968 = vpop.permute.xlu0 %967
        %971 = vset.pattern.permute.xlu0 4
        %972 = vperm.xlu0 %971, %v874
        %v973 = vpop.permute.xlu0 %972
        %976 = vset.pattern.permute.xlu0 4
        %977 = vperm.xlu0 %976, %v877
        %v978 = vpop.permute.xlu0 %977
        %981 = vset.pattern.permute.xlu0 4
        %982 = vperm.xlu0 %981, %v882
        %v983 = vpop.permute.xlu0 %982
        %986 = vset.pattern.permute.xlu0 4
        %987 = vperm.xlu0 %986, %v885
        %v988 = vpop.permute.xlu0 %987
        %991 = vset.pattern.permute.xlu0 4
        %992 = vperm.xlu0 %991, %v890
        %v993 = vpop.permute.xlu0 %992
        %996 = vset.pattern.permute.xlu0 4
        %997 = vperm.xlu0 %996, %v893
        %v998 = vpop.permute.xlu0 %997
        %1001 = vset.pattern.permute.xlu0 4
        %1002 = vperm.xlu0 %1001, %v898
        %v1003 = vpop.permute.xlu0 %1002
        %1006 = vset.pattern.permute.xlu0 4
        %1007 = vperm.xlu0 %1006, %v901
        %v1008 = vpop.permute.xlu0 %1007
        %1011 = vset.pattern.permute.xlu0 4
        %1012 = vperm.xlu0 %1011, %v906
        %v1013 = vpop.permute.xlu0 %1012
        %1016 = vset.pattern.permute.xlu0 4
        %1017 = vperm.xlu0 %1016, %v909
        %v1018 = vpop.permute.xlu0 %1017
        %1021 = vset.pattern.permute.xlu0 4
        %1022 = vperm.xlu0 %1021, %v914
        %v1023 = vpop.permute.xlu0 %1022
        %1026 = vset.pattern.permute.xlu0 4
        %1027 = vperm.xlu0 %1026, %v917
        %v1028 = vpop.permute.xlu0 %1027
        %1031 = vset.pattern.permute.xlu0 4
        %1032 = vperm.xlu0 %1031, %v922
        %v1033 = vpop.permute.xlu0 %1032
        %1036 = vset.pattern.permute.xlu0 4
        %1037 = vperm.xlu0 %1036, %v925
        %v1038 = vpop.permute.xlu0 %1037
        %v1040 = vlaneseq
        %v1041 = vshrl.u32 %v1040, 7
        %v1042 = vsub.s32 0, %v1041
        %v1043 = vrot.slane %v944, %v1042
        %v1044 = vadd.f32 %v963, %v1043
        %v1045 = vadd.f32 %v968, %v1043
        %v1046 = vadd.f32 %v973, %v1043
        %v1047 = vadd.f32 %v978, %v1043
        %v1048 = vadd.f32 %v983, %v1043
        %v1049 = vadd.f32 %v988, %v1043
        %v1050 = vadd.f32 %v993, %v1043
        %v1051 = vadd.f32 %v998, %v1043
        %v1052 = vadd.f32 %v1003, %v1043
        %v1053 = vadd.f32 %v1008, %v1043
        %v1054 = vadd.f32 %v1013, %v1043
        %v1055 = vadd.f32 %v1018, %v1043
        %v1056 = vadd.f32 %v1023, %v1043
        %v1057 = vadd.f32 %v1028, %v1043
        %v1058 = vadd.f32 %v1033, %v1043
        %v1059 = vadd.f32 %v1038, %v1043
        %vm1060 = vcmp.gt.f32.partialorder %v1044, 0.0
        %vm1061 = vcmp.gt.f32.partialorder %v1045, 0.0
        %vm1062 = vcmp.gt.f32.partialorder %v1046, 0.0
        %vm1063 = vcmp.gt.f32.partialorder %v1047, 0.0
        %vm1064 = vcmp.gt.f32.partialorder %v1048, 0.0
        %vm1065 = vcmp.gt.f32.partialorder %v1049, 0.0
        %vm1066 = vcmp.gt.f32.partialorder %v1050, 0.0
        %vm1067 = vcmp.gt.f32.partialorder %v1051, 0.0
        %vm1068 = vcmp.gt.f32.partialorder %v1052, 0.0
        %vm1069 = vcmp.gt.f32.partialorder %v1053, 0.0
        %vm1070 = vcmp.gt.f32.partialorder %v1054, 0.0
        %vm1071 = vcmp.gt.f32.partialorder %v1055, 0.0
        %vm1072 = vcmp.gt.f32.partialorder %v1056, 0.0
        %vm1073 = vcmp.gt.f32.partialorder %v1057, 0.0
        %vm1074 = vcmp.gt.f32.partialorder %v1058, 0.0
        %vm1075 = vcmp.gt.f32.partialorder %v1059, 0.0
        %v1076 = vmul.f32 %v1044, 0.2
        %v1077 = vmul.f32 %v1045, 0.2
        %v1078 = vmul.f32 %v1046, 0.2
        %v1079 = vmul.f32 %v1047, 0.2
        %v1080 = vmul.f32 %v1048, 0.2
        %v1081 = vmul.f32 %v1049, 0.2
        %v1082 = vmul.f32 %v1050, 0.2
        %v1083 = vmul.f32 %v1051, 0.2
        %v1084 = vmul.f32 %v1052, 0.2
        %v1085 = vmul.f32 %v1053, 0.2
        %v1086 = vmul.f32 %v1054, 0.2
        %v1087 = vmul.f32 %v1055, 0.2
        %v1088 = vmul.f32 %v1056, 0.2
        %v1089 = vmul.f32 %v1057, 0.2
        %v1090 = vmul.f32 %v1058, 0.2
        %v1091 = vmul.f32 %v1059, 0.2
        %v1092 = vsel %vm1060, %v1044, %v1076
        %v1093 = vsel %vm1061, %v1045, %v1077
        %v1094 = vsel %vm1062, %v1046, %v1078
        %v1095 = vsel %vm1063, %v1047, %v1079
        %v1096 = vsel %vm1064, %v1048, %v1080
        %v1097 = vsel %vm1065, %v1049, %v1081
        %v1098 = vsel %vm1066, %v1050, %v1082
        %v1099 = vsel %vm1067, %v1051, %v1083
        %v1100 = vsel %vm1068, %v1052, %v1084
        %v1101 = vsel %vm1069, %v1053, %v1085
        %v1102 = vsel %vm1070, %v1054, %v1086
        %v1103 = vsel %vm1071, %v1055, %v1087
        %v1104 = vsel %vm1072, %v1056, %v1088
        %v1105 = vsel %vm1073, %v1057, %v1089
        %v1106 = vsel %vm1074, %v1058, %v1090
        %v1107 = vsel %vm1075, %v1059, %v1091
        %v1108 = vsel %vm580, 65537, 0
        %v1109 = vsel %vm581, 65537, 0
        %v1110 = vsel %vm582, 65537, 0
        %v1111 = vsel %vm583, 65537, 0
        %v1112 = vsel %vm584, 65537, 0
        %v1113 = vsel %vm585, 65537, 0
        %v1114 = vsel %vm586, 65537, 0
        %v1115 = vsel %vm587, 65537, 0
        %v1116 = vsel %vm588, 65537, 0
        %v1117 = vsel %vm589, 65537, 0
        %v1118 = vsel %vm590, 65537, 0
        %v1119 = vsel %vm591, 65537, 0
        %v1120 = vsel %vm592, 65537, 0
        %v1121 = vsel %vm593, 65537, 0
        %v1122 = vsel %vm594, 65537, 0
        %v1123 = vsel %vm595, 65537, 0
        %v1124 = vunpack.c.l.b16 %v1108
        %v1125 = vunpack.c.l.b16 %v1109
        %v1126 = vunpack.c.l.b16 %v1110
        %v1127 = vunpack.c.l.b16 %v1111
        %v1128 = vunpack.c.l.b16 %v1112
        %v1129 = vunpack.c.l.b16 %v1113
        %v1130 = vunpack.c.l.b16 %v1114
        %v1131 = vunpack.c.l.b16 %v1115
        %v1132 = vunpack.c.l.b16 %v1116
        %v1133 = vunpack.c.l.b16 %v1117
        %v1134 = vunpack.c.l.b16 %v1118
        %v1135 = vunpack.c.l.b16 %v1119
        %v1136 = vunpack.c.l.b16 %v1120
        %v1137 = vunpack.c.l.b16 %v1121
        %v1138 = vunpack.c.l.b16 %v1122
        %v1139 = vunpack.c.l.b16 %v1123
        %vm1140 = vcmp.ne.s32.totalorder %v1124, 0
        %vm1141 = vcmp.ne.s32.totalorder %v1125, 0
        %vm1142 = vcmp.ne.s32.totalorder %v1126, 0
        %vm1143 = vcmp.ne.s32.totalorder %v1127, 0
        %vm1144 = vcmp.ne.s32.totalorder %v1128, 0
        %vm1145 = vcmp.ne.s32.totalorder %v1129, 0
        %vm1146 = vcmp.ne.s32.totalorder %v1130, 0
        %vm1147 = vcmp.ne.s32.totalorder %v1131, 0
        %vm1148 = vcmp.ne.s32.totalorder %v1132, 0
        %vm1149 = vcmp.ne.s32.totalorder %v1133, 0
        %vm1150 = vcmp.ne.s32.totalorder %v1134, 0
        %vm1151 = vcmp.ne.s32.totalorder %v1135, 0
        %vm1152 = vcmp.ne.s32.totalorder %v1136, 0
        %vm1153 = vcmp.ne.s32.totalorder %v1137, 0
        %vm1154 = vcmp.ne.s32.totalorder %v1138, 0
        %vm1155 = vcmp.ne.s32.totalorder %v1139, 0
        %v1156 = vsel %vm1140, %v1092, -1e+09
        %v1157 = vsel %vm1141, %v1093, -1e+09
        %v1158 = vsel %vm1142, %v1094, -1e+09
        %v1159 = vsel %vm1143, %v1095, -1e+09
        %v1160 = vsel %vm1144, %v1096, -1e+09
        %v1161 = vsel %vm1145, %v1097, -1e+09
        %v1162 = vsel %vm1146, %v1098, -1e+09
        %v1163 = vsel %vm1147, %v1099, -1e+09
        %v1164 = vsel %vm1148, %v1100, -1e+09
        %v1165 = vsel %vm1149, %v1101, -1e+09
        %v1166 = vsel %vm1150, %v1102, -1e+09
        %v1167 = vsel %vm1151, %v1103, -1e+09
        %v1168 = vsel %vm1152, %v1104, -1e+09
        %v1169 = vsel %vm1153, %v1105, -1e+09
        %v1170 = vsel %vm1154, %v1106, -1e+09
        %v1171 = vsel %vm1155, %v1107, -1e+09
        %1172 = vmax.xlane.f32.xlu0 %v1156
        %v1173 = vpop.xlane.xlu0 %1172
        %1174 = vmax.xlane.f32.xlu0 %v1157
        %v1175 = vpop.xlane.xlu0 %1174
        %1176 = vmax.xlane.f32.xlu0 %v1158
        %v1177 = vpop.xlane.xlu0 %1176
        %1178 = vmax.xlane.f32.xlu0 %v1159
        %v1179 = vpop.xlane.xlu0 %1178
        %1180 = vmax.xlane.f32.xlu0 %v1160
        %v1181 = vpop.xlane.xlu0 %1180
        %1182 = vmax.xlane.f32.xlu0 %v1161
        %v1183 = vpop.xlane.xlu0 %1182
        %1184 = vmax.xlane.f32.xlu0 %v1162
        %v1185 = vpop.xlane.xlu0 %1184
        %1186 = vmax.xlane.f32.xlu0 %v1163
        %v1187 = vpop.xlane.xlu0 %1186
        %1188 = vmax.xlane.f32.xlu0 %v1164
        %v1189 = vpop.xlane.xlu0 %1188
        %1190 = vmax.xlane.f32.xlu0 %v1165
        %v1191 = vpop.xlane.xlu0 %1190
        %1192 = vmax.xlane.f32.xlu0 %v1166
        %v1193 = vpop.xlane.xlu0 %1192
        %1194 = vmax.xlane.f32.xlu0 %v1167
        %v1195 = vpop.xlane.xlu0 %1194
        %1196 = vmax.xlane.f32.xlu0 %v1168
        %v1197 = vpop.xlane.xlu0 %1196
        %1198 = vmax.xlane.f32.xlu0 %v1169
        %v1199 = vpop.xlane.xlu0 %1198
        %1200 = vmax.xlane.f32.xlu0 %v1170
        %v1201 = vpop.xlane.xlu0 %1200
        %1202 = vmax.xlane.f32.xlu0 %v1171
        %v1203 = vpop.xlane.xlu0 %1202
        %v1204 = vsub.f32 %v1156, %v1173
        %v1205 = vsub.f32 %v1157, %v1175
        %v1206 = vsub.f32 %v1158, %v1177
        %v1207 = vsub.f32 %v1159, %v1179
        %v1208 = vsub.f32 %v1160, %v1181
        %v1209 = vsub.f32 %v1161, %v1183
        %v1210 = vsub.f32 %v1162, %v1185
        %v1211 = vsub.f32 %v1163, %v1187
        %v1212 = vsub.f32 %v1164, %v1189
        %v1213 = vsub.f32 %v1165, %v1191
        %v1214 = vsub.f32 %v1166, %v1193
        %v1215 = vsub.f32 %v1167, %v1195
        %v1216 = vsub.f32 %v1168, %v1197
        %v1217 = vsub.f32 %v1169, %v1199
        %v1218 = vsub.f32 %v1170, %v1201
        %v1219 = vsub.f32 %v1171, %v1203
        %v1220 = vmul.f32 %v1204, 1.442695
        %v1221 = vpow.pop %v1220
        %v1222 = vmul.f32 %v1205, 1.442695
        %v1223 = vpow.pop %v1222
        %v1224 = vmul.f32 %v1206, 1.442695
        %v1225 = vpow.pop %v1224
        %v1226 = vmul.f32 %v1207, 1.442695
        %v1227 = vpow.pop %v1226
        %v1228 = vmul.f32 %v1208, 1.442695
        %v1229 = vpow.pop %v1228
        %v1230 = vmul.f32 %v1209, 1.442695
        %v1231 = vpow.pop %v1230
        %v1232 = vmul.f32 %v1210, 1.442695
        %v1233 = vpow.pop %v1232
        %v1234 = vmul.f32 %v1211, 1.442695
        %v1235 = vpow.pop %v1234
        %v1236 = vmul.f32 %v1212, 1.442695
        %v1237 = vpow.pop %v1236
        %v1238 = vmul.f32 %v1213, 1.442695
        %v1239 = vpow.pop %v1238
        %v1240 = vmul.f32 %v1214, 1.442695
        %v1241 = vpow.pop %v1240
        %v1242 = vmul.f32 %v1215, 1.442695
        %v1243 = vpow.pop %v1242
        %v1244 = vmul.f32 %v1216, 1.442695
        %v1245 = vpow.pop %v1244
        %v1246 = vmul.f32 %v1217, 1.442695
        %v1247 = vpow.pop %v1246
        %v1248 = vmul.f32 %v1218, 1.442695
        %v1249 = vpow.pop %v1248
        %v1250 = vmul.f32 %v1219, 1.442695
        %v1251 = vpow.pop %v1250
        %v1252 = vsel %vm1140, %v1221, 0.0
        %v1253 = vsel %vm1141, %v1223, 0.0
        %v1254 = vsel %vm1142, %v1225, 0.0
        %v1255 = vsel %vm1143, %v1227, 0.0
        %v1256 = vsel %vm1144, %v1229, 0.0
        %v1257 = vsel %vm1145, %v1231, 0.0
        %v1258 = vsel %vm1146, %v1233, 0.0
        %v1259 = vsel %vm1147, %v1235, 0.0
        %v1260 = vsel %vm1148, %v1237, 0.0
        %v1261 = vsel %vm1149, %v1239, 0.0
        %v1262 = vsel %vm1150, %v1241, 0.0
        %v1263 = vsel %vm1151, %v1243, 0.0
        %v1264 = vsel %vm1152, %v1245, 0.0
        %v1265 = vsel %vm1153, %v1247, 0.0
        %v1266 = vsel %vm1154, %v1249, 0.0
        %v1267 = vsel %vm1155, %v1251, 0.0
        %1268 = vadd.xlane.f32.xlu0 %v1252
        %v1269 = vpop.xlane.xlu0 %1268
        %1270 = vadd.xlane.f32.xlu0 %v1253
        %v1271 = vpop.xlane.xlu0 %1270
        %1272 = vadd.xlane.f32.xlu0 %v1254
        %v1273 = vpop.xlane.xlu0 %1272
        %1274 = vadd.xlane.f32.xlu0 %v1255
        %v1275 = vpop.xlane.xlu0 %1274
        %1276 = vadd.xlane.f32.xlu0 %v1256
        %v1277 = vpop.xlane.xlu0 %1276
        %1278 = vadd.xlane.f32.xlu0 %v1257
        %v1279 = vpop.xlane.xlu0 %1278
        %1280 = vadd.xlane.f32.xlu0 %v1258
        %v1281 = vpop.xlane.xlu0 %1280
        %1282 = vadd.xlane.f32.xlu0 %v1259
        %v1283 = vpop.xlane.xlu0 %1282
        %1284 = vadd.xlane.f32.xlu0 %v1260
        %v1285 = vpop.xlane.xlu0 %1284
        %1286 = vadd.xlane.f32.xlu0 %v1261
        %v1287 = vpop.xlane.xlu0 %1286
        %1288 = vadd.xlane.f32.xlu0 %v1262
        %v1289 = vpop.xlane.xlu0 %1288
        %1290 = vadd.xlane.f32.xlu0 %v1263
        %v1291 = vpop.xlane.xlu0 %1290
        %1292 = vadd.xlane.f32.xlu0 %v1264
        %v1293 = vpop.xlane.xlu0 %1292
        %1294 = vadd.xlane.f32.xlu0 %v1265
        %v1295 = vpop.xlane.xlu0 %1294
        %1296 = vadd.xlane.f32.xlu0 %v1266
        %v1297 = vpop.xlane.xlu0 %1296
        %1298 = vadd.xlane.f32.xlu0 %v1267
        %v1299 = vpop.xlane.xlu0 %1298
        %v1300 = vrcp.pop %v1269
        %v1301 = vrcp.pop %v1271
        %v1302 = vrcp.pop %v1273
        %v1303 = vrcp.pop %v1275
        %v1304 = vrcp.pop %v1277
        %v1305 = vrcp.pop %v1279
        %v1306 = vrcp.pop %v1281
        %v1307 = vrcp.pop %v1283
        %v1308 = vrcp.pop %v1285
        %v1309 = vrcp.pop %v1287
        %v1310 = vrcp.pop %v1289
        %v1311 = vrcp.pop %v1291
        %v1312 = vrcp.pop %v1293
        %v1313 = vrcp.pop %v1295
        %v1314 = vrcp.pop %v1297
        %v1315 = vrcp.pop %v1299
        %v1316 = vmul.f32 %v1252, %v1300
        %v1317 = vmul.f32 %v1253, %v1301
        %v1318 = vmul.f32 %v1254, %v1302
        %v1319 = vmul.f32 %v1255, %v1303
        %v1320 = vmul.f32 %v1256, %v1304
        %v1321 = vmul.f32 %v1257, %v1305
        %v1322 = vmul.f32 %v1258, %v1306
        %v1323 = vmul.f32 %v1259, %v1307
        %v1324 = vmul.f32 %v1260, %v1308
        %v1325 = vmul.f32 %v1261, %v1309
        %v1326 = vmul.f32 %v1262, %v1310
        %v1327 = vmul.f32 %v1263, %v1311
        %v1328 = vmul.f32 %v1264, %v1312
        %v1329 = vmul.f32 %v1265, %v1313
        %v1330 = vmul.f32 %v1266, %v1314
        %v1331 = vmul.f32 %v1267, %v1315
        %v1332 = vpack.c.bf16 %v1317, %v1316
        %v1333 = vpack.c.bf16 %v1319, %v1318
        %v1334 = vpack.c.bf16 %v1321, %v1320
        %v1335 = vpack.c.bf16 %v1323, %v1322
        %v1336 = vpack.c.bf16 %v1325, %v1324
        %v1337 = vpack.c.bf16 %v1327, %v1326
        %v1338 = vpack.c.bf16 %v1329, %v1328
        %v1339 = vpack.c.bf16 %v1331, %v1330
        %1340 = vset.pattern.permute.xlu0 5
        %1341 = vperm.xlu0 %1340, %v866
        %v1342 = vpop.permute.xlu0 %1341
        %1344 = vset.pattern.permute.xlu0 5
        %1345 = vperm.xlu0 %1344, %v869
        %v1346 = vpop.permute.xlu0 %1345
        %1348 = vset.pattern.permute.xlu0 5
        %1349 = vperm.xlu0 %1348, %v874
        %v1350 = vpop.permute.xlu0 %1349
        %1352 = vset.pattern.permute.xlu0 5
        %1353 = vperm.xlu0 %1352, %v877
        %v1354 = vpop.permute.xlu0 %1353
        %1356 = vset.pattern.permute.xlu0 5
        %1357 = vperm.xlu0 %1356, %v882
        %v1358 = vpop.permute.xlu0 %1357
        %1360 = vset.pattern.permute.xlu0 5
        %1361 = vperm.xlu0 %1360, %v885
        %v1362 = vpop.permute.xlu0 %1361
        %1364 = vset.pattern.permute.xlu0 5
        %1365 = vperm.xlu0 %1364, %v890
        %v1366 = vpop.permute.xlu0 %1365
        %1368 = vset.pattern.permute.xlu0 5
        %1369 = vperm.xlu0 %1368, %v893
        %v1370 = vpop.permute.xlu0 %1369
        %1372 = vset.pattern.permute.xlu0 5
        %1373 = vperm.xlu0 %1372, %v898
        %v1374 = vpop.permute.xlu0 %1373
        %1376 = vset.pattern.permute.xlu0 5
        %1377 = vperm.xlu0 %1376, %v901
        %v1378 = vpop.permute.xlu0 %1377
        %1380 = vset.pattern.permute.xlu0 5
        %1381 = vperm.xlu0 %1380, %v906
        %v1382 = vpop.permute.xlu0 %1381
        %1384 = vset.pattern.permute.xlu0 5
        %1385 = vperm.xlu0 %1384, %v909
        %v1386 = vpop.permute.xlu0 %1385
        %1388 = vset.pattern.permute.xlu0 5
        %1389 = vperm.xlu0 %1388, %v914
        %v1390 = vpop.permute.xlu0 %1389
        %1392 = vset.pattern.permute.xlu0 5
        %1393 = vperm.xlu0 %1392, %v917
        %v1394 = vpop.permute.xlu0 %1393
        %1396 = vset.pattern.permute.xlu0 5
        %1397 = vperm.xlu0 %1396, %v922
        %v1398 = vpop.permute.xlu0 %1397
        %1400 = vset.pattern.permute.xlu0 5
        %1401 = vperm.xlu0 %1400, %v925
        %v1402 = vpop.permute.xlu0 %1401
        %v1404 = vlaneseq
        %v1405 = vshrl.u32 %v1404, 7
        %v1406 = vsub.s32 1, %v1405
        %v1407 = vrot.slane %v944, %v1406
        %v1408 = vadd.f32 %v1342, %v1407
        %v1409 = vadd.f32 %v1346, %v1407
        %v1410 = vadd.f32 %v1350, %v1407
        %v1411 = vadd.f32 %v1354, %v1407
        %v1412 = vadd.f32 %v1358, %v1407
        %v1413 = vadd.f32 %v1362, %v1407
        %v1414 = vadd.f32 %v1366, %v1407
        %v1415 = vadd.f32 %v1370, %v1407
        %v1416 = vadd.f32 %v1374, %v1407
        %v1417 = vadd.f32 %v1378, %v1407
        %v1418 = vadd.f32 %v1382, %v1407
        %v1419 = vadd.f32 %v1386, %v1407
        %v1420 = vadd.f32 %v1390, %v1407
        %v1421 = vadd.f32 %v1394, %v1407
        %v1422 = vadd.f32 %v1398, %v1407
        %v1423 = vadd.f32 %v1402, %v1407
        %vm1424 = vcmp.gt.f32.partialorder %v1408, 0.0
        %vm1425 = vcmp.gt.f32.partialorder %v1409, 0.0
        %vm1426 = vcmp.gt.f32.partialorder %v1410, 0.0
        %vm1427 = vcmp.gt.f32.partialorder %v1411, 0.0
        %vm1428 = vcmp.gt.f32.partialorder %v1412, 0.0
        %vm1429 = vcmp.gt.f32.partialorder %v1413, 0.0
        %vm1430 = vcmp.gt.f32.partialorder %v1414, 0.0
        %vm1431 = vcmp.gt.f32.partialorder %v1415, 0.0
        %vm1432 = vcmp.gt.f32.partialorder %v1416, 0.0
        %vm1433 = vcmp.gt.f32.partialorder %v1417, 0.0
        %vm1434 = vcmp.gt.f32.partialorder %v1418, 0.0
        %vm1435 = vcmp.gt.f32.partialorder %v1419, 0.0
        %vm1436 = vcmp.gt.f32.partialorder %v1420, 0.0
        %vm1437 = vcmp.gt.f32.partialorder %v1421, 0.0
        %vm1438 = vcmp.gt.f32.partialorder %v1422, 0.0
        %vm1439 = vcmp.gt.f32.partialorder %v1423, 0.0
        %v1440 = vmul.f32 %v1408, 0.2
        %v1441 = vmul.f32 %v1409, 0.2
        %v1442 = vmul.f32 %v1410, 0.2
        %v1443 = vmul.f32 %v1411, 0.2
        %v1444 = vmul.f32 %v1412, 0.2
        %v1445 = vmul.f32 %v1413, 0.2
        %v1446 = vmul.f32 %v1414, 0.2
        %v1447 = vmul.f32 %v1415, 0.2
        %v1448 = vmul.f32 %v1416, 0.2
        %v1449 = vmul.f32 %v1417, 0.2
        %v1450 = vmul.f32 %v1418, 0.2
        %v1451 = vmul.f32 %v1419, 0.2
        %v1452 = vmul.f32 %v1420, 0.2
        %v1453 = vmul.f32 %v1421, 0.2
        %v1454 = vmul.f32 %v1422, 0.2
        %v1455 = vmul.f32 %v1423, 0.2
        %v1456 = vsel %vm1424, %v1408, %v1440
        %v1457 = vsel %vm1425, %v1409, %v1441
        %v1458 = vsel %vm1426, %v1410, %v1442
        %v1459 = vsel %vm1427, %v1411, %v1443
        %v1460 = vsel %vm1428, %v1412, %v1444
        %v1461 = vsel %vm1429, %v1413, %v1445
        %v1462 = vsel %vm1430, %v1414, %v1446
        %v1463 = vsel %vm1431, %v1415, %v1447
        %v1464 = vsel %vm1432, %v1416, %v1448
        %v1465 = vsel %vm1433, %v1417, %v1449
        %v1466 = vsel %vm1434, %v1418, %v1450
        %v1467 = vsel %vm1435, %v1419, %v1451
        %v1468 = vsel %vm1436, %v1420, %v1452
        %v1469 = vsel %vm1437, %v1421, %v1453
        %v1470 = vsel %vm1438, %v1422, %v1454
        %v1471 = vsel %vm1439, %v1423, %v1455
        %v1472 = vsel %vm1140, %v1456, -1e+09
        %v1473 = vsel %vm1141, %v1457, -1e+09
        %v1474 = vsel %vm1142, %v1458, -1e+09
        %v1475 = vsel %vm1143, %v1459, -1e+09
        %v1476 = vsel %vm1144, %v1460, -1e+09
        %v1477 = vsel %vm1145, %v1461, -1e+09
        %v1478 = vsel %vm1146, %v1462, -1e+09
        %v1479 = vsel %vm1147, %v1463, -1e+09
        %v1480 = vsel %vm1148, %v1464, -1e+09
        %v1481 = vsel %vm1149, %v1465, -1e+09
        %v1482 = vsel %vm1150, %v1466, -1e+09
        %v1483 = vsel %vm1151, %v1467, -1e+09
        %v1484 = vsel %vm1152, %v1468, -1e+09
        %v1485 = vsel %vm1153, %v1469, -1e+09
        %v1486 = vsel %vm1154, %v1470, -1e+09
        %v1487 = vsel %vm1155, %v1471, -1e+09
        %1488 = vmax.xlane.f32.xlu0 %v1472
        %v1489 = vpop.xlane.xlu0 %1488
        %1490 = vmax.xlane.f32.xlu0 %v1473
        %v1491 = vpop.xlane.xlu0 %1490
        %1492 = vmax.xlane.f32.xlu0 %v1474
        %v1493 = vpop.xlane.xlu0 %1492
        %1494 = vmax.xlane.f32.xlu0 %v1475
        %v1495 = vpop.xlane.xlu0 %1494
        %1496 = vmax.xlane.f32.xlu0 %v1476
        %v1497 = vpop.xlane.xlu0 %1496
        %1498 = vmax.xlane.f32.xlu0 %v1477
        %v1499 = vpop.xlane.xlu0 %1498
        %1500 = vmax.xlane.f32.xlu0 %v1478
        %v1501 = vpop.xlane.xlu0 %1500
        %1502 = vmax.xlane.f32.xlu0 %v1479
        %v1503 = vpop.xlane.xlu0 %1502
        %1504 = vmax.xlane.f32.xlu0 %v1480
        %v1505 = vpop.xlane.xlu0 %1504
        %1506 = vmax.xlane.f32.xlu0 %v1481
        %v1507 = vpop.xlane.xlu0 %1506
        %1508 = vmax.xlane.f32.xlu0 %v1482
        %v1509 = vpop.xlane.xlu0 %1508
        %1510 = vmax.xlane.f32.xlu0 %v1483
        %v1511 = vpop.xlane.xlu0 %1510
        %1512 = vmax.xlane.f32.xlu0 %v1484
        %v1513 = vpop.xlane.xlu0 %1512
        %1514 = vmax.xlane.f32.xlu0 %v1485
        %v1515 = vpop.xlane.xlu0 %1514
        %1516 = vmax.xlane.f32.xlu0 %v1486
        %v1517 = vpop.xlane.xlu0 %1516
        %1518 = vmax.xlane.f32.xlu0 %v1487
        %v1519 = vpop.xlane.xlu0 %1518
        %v1520 = vsub.f32 %v1472, %v1489
        %v1521 = vsub.f32 %v1473, %v1491
        %v1522 = vsub.f32 %v1474, %v1493
        %v1523 = vsub.f32 %v1475, %v1495
        %v1524 = vsub.f32 %v1476, %v1497
        %v1525 = vsub.f32 %v1477, %v1499
        %v1526 = vsub.f32 %v1478, %v1501
        %v1527 = vsub.f32 %v1479, %v1503
        %v1528 = vsub.f32 %v1480, %v1505
        %v1529 = vsub.f32 %v1481, %v1507
        %v1530 = vsub.f32 %v1482, %v1509
        %v1531 = vsub.f32 %v1483, %v1511
        %v1532 = vsub.f32 %v1484, %v1513
        %v1533 = vsub.f32 %v1485, %v1515
        %v1534 = vsub.f32 %v1486, %v1517
        %v1535 = vsub.f32 %v1487, %v1519
        %v1536 = vmul.f32 %v1520, 1.442695
        %v1537 = vpow.pop %v1536
        %v1538 = vmul.f32 %v1521, 1.442695
        %v1539 = vpow.pop %v1538
        %v1540 = vmul.f32 %v1522, 1.442695
        %v1541 = vpow.pop %v1540
        %v1542 = vmul.f32 %v1523, 1.442695
        %v1543 = vpow.pop %v1542
        %v1544 = vmul.f32 %v1524, 1.442695
        %v1545 = vpow.pop %v1544
        %v1546 = vmul.f32 %v1525, 1.442695
        %v1547 = vpow.pop %v1546
        %v1548 = vmul.f32 %v1526, 1.442695
        %v1549 = vpow.pop %v1548
        %v1550 = vmul.f32 %v1527, 1.442695
        %v1551 = vpow.pop %v1550
        %v1552 = vmul.f32 %v1528, 1.442695
        %v1553 = vpow.pop %v1552
        %v1554 = vmul.f32 %v1529, 1.442695
        %v1555 = vpow.pop %v1554
        %v1556 = vmul.f32 %v1530, 1.442695
        %v1557 = vpow.pop %v1556
        %v1558 = vmul.f32 %v1531, 1.442695
        %v1559 = vpow.pop %v1558
        %v1560 = vmul.f32 %v1532, 1.442695
        %v1561 = vpow.pop %v1560
        %v1562 = vmul.f32 %v1533, 1.442695
        %v1563 = vpow.pop %v1562
        %v1564 = vmul.f32 %v1534, 1.442695
        %v1565 = vpow.pop %v1564
        %v1566 = vmul.f32 %v1535, 1.442695
        %v1567 = vpow.pop %v1566
        %v1568 = vsel %vm1140, %v1537, 0.0
        %v1569 = vsel %vm1141, %v1539, 0.0
        %v1570 = vsel %vm1142, %v1541, 0.0
        %v1571 = vsel %vm1143, %v1543, 0.0
        %v1572 = vsel %vm1144, %v1545, 0.0
        %v1573 = vsel %vm1145, %v1547, 0.0
        %v1574 = vsel %vm1146, %v1549, 0.0
        %v1575 = vsel %vm1147, %v1551, 0.0
        %v1576 = vsel %vm1148, %v1553, 0.0
        %v1577 = vsel %vm1149, %v1555, 0.0
        %v1578 = vsel %vm1150, %v1557, 0.0
        %v1579 = vsel %vm1151, %v1559, 0.0
        %v1580 = vsel %vm1152, %v1561, 0.0
        %v1581 = vsel %vm1153, %v1563, 0.0
        %v1582 = vsel %vm1154, %v1565, 0.0
        %v1583 = vsel %vm1155, %v1567, 0.0
        %1584 = vadd.xlane.f32.xlu0 %v1568
        %v1585 = vpop.xlane.xlu0 %1584
        %1586 = vadd.xlane.f32.xlu0 %v1569
        %v1587 = vpop.xlane.xlu0 %1586
        %1588 = vadd.xlane.f32.xlu0 %v1570
        %v1589 = vpop.xlane.xlu0 %1588
        %1590 = vadd.xlane.f32.xlu0 %v1571
        %v1591 = vpop.xlane.xlu0 %1590
        %1592 = vadd.xlane.f32.xlu0 %v1572
        %v1593 = vpop.xlane.xlu0 %1592
        %1594 = vadd.xlane.f32.xlu0 %v1573
        %v1595 = vpop.xlane.xlu0 %1594
        %1596 = vadd.xlane.f32.xlu0 %v1574
        %v1597 = vpop.xlane.xlu0 %1596
        %1598 = vadd.xlane.f32.xlu0 %v1575
        %v1599 = vpop.xlane.xlu0 %1598
        %1600 = vadd.xlane.f32.xlu0 %v1576
        %v1601 = vpop.xlane.xlu0 %1600
        %1602 = vadd.xlane.f32.xlu0 %v1577
        %v1603 = vpop.xlane.xlu0 %1602
        %1604 = vadd.xlane.f32.xlu0 %v1578
        %v1605 = vpop.xlane.xlu0 %1604
        %1606 = vadd.xlane.f32.xlu0 %v1579
        %v1607 = vpop.xlane.xlu0 %1606
        %1608 = vadd.xlane.f32.xlu0 %v1580
        %v1609 = vpop.xlane.xlu0 %1608
        %1610 = vadd.xlane.f32.xlu0 %v1581
        %v1611 = vpop.xlane.xlu0 %1610
        %1612 = vadd.xlane.f32.xlu0 %v1582
        %v1613 = vpop.xlane.xlu0 %1612
        %1614 = vadd.xlane.f32.xlu0 %v1583
        %v1615 = vpop.xlane.xlu0 %1614
        %v1616 = vrcp.pop %v1585
        %v1617 = vrcp.pop %v1587
        %v1618 = vrcp.pop %v1589
        %v1619 = vrcp.pop %v1591
        %v1620 = vrcp.pop %v1593
        %v1621 = vrcp.pop %v1595
        %v1622 = vrcp.pop %v1597
        %v1623 = vrcp.pop %v1599
        %v1624 = vrcp.pop %v1601
        %v1625 = vrcp.pop %v1603
        %v1626 = vrcp.pop %v1605
        %v1627 = vrcp.pop %v1607
        %v1628 = vrcp.pop %v1609
        %v1629 = vrcp.pop %v1611
        %v1630 = vrcp.pop %v1613
        %v1631 = vrcp.pop %v1615
        %v1632 = vmul.f32 %v1568, %v1616
        %v1633 = vmul.f32 %v1569, %v1617
        %v1634 = vmul.f32 %v1570, %v1618
        %v1635 = vmul.f32 %v1571, %v1619
        %v1636 = vmul.f32 %v1572, %v1620
        %v1637 = vmul.f32 %v1573, %v1621
        %v1638 = vmul.f32 %v1574, %v1622
        %v1639 = vmul.f32 %v1575, %v1623
        %v1640 = vmul.f32 %v1576, %v1624
        %v1641 = vmul.f32 %v1577, %v1625
        %v1642 = vmul.f32 %v1578, %v1626
        %v1643 = vmul.f32 %v1579, %v1627
        %v1644 = vmul.f32 %v1580, %v1628
        %v1645 = vmul.f32 %v1581, %v1629
        %v1646 = vmul.f32 %v1582, %v1630
        %v1647 = vmul.f32 %v1583, %v1631
        %v1648 = vpack.c.bf16 %v1633, %v1632
        %v1649 = vpack.c.bf16 %v1635, %v1634
        %v1650 = vpack.c.bf16 %v1637, %v1636
        %v1651 = vpack.c.bf16 %v1639, %v1638
        %v1652 = vpack.c.bf16 %v1641, %v1640
        %v1653 = vpack.c.bf16 %v1643, %v1642
        %v1654 = vpack.c.bf16 %v1645, %v1644
        %v1655 = vpack.c.bf16 %v1647, %v1646
        %1656 = vset.pattern.permute.xlu0 6
        %1657 = vperm.xlu0 %1656, %v866
        %v1658 = vpop.permute.xlu0 %1657
        %1660 = vset.pattern.permute.xlu0 6
        %1661 = vperm.xlu0 %1660, %v869
        %v1662 = vpop.permute.xlu0 %1661
        %1664 = vset.pattern.permute.xlu0 6
        %1665 = vperm.xlu0 %1664, %v874
        %v1666 = vpop.permute.xlu0 %1665
        %1668 = vset.pattern.permute.xlu0 6
        %1669 = vperm.xlu0 %1668, %v877
        %v1670 = vpop.permute.xlu0 %1669
        %1672 = vset.pattern.permute.xlu0 6
        %1673 = vperm.xlu0 %1672, %v882
        %v1674 = vpop.permute.xlu0 %1673
        %1676 = vset.pattern.permute.xlu0 6
        %1677 = vperm.xlu0 %1676, %v885
        %v1678 = vpop.permute.xlu0 %1677
        %1680 = vset.pattern.permute.xlu0 6
        %1681 = vperm.xlu0 %1680, %v890
        %v1682 = vpop.permute.xlu0 %1681
        %1684 = vset.pattern.permute.xlu0 6
        %1685 = vperm.xlu0 %1684, %v893
        %v1686 = vpop.permute.xlu0 %1685
        %1688 = vset.pattern.permute.xlu0 6
        %1689 = vperm.xlu0 %1688, %v898
        %v1690 = vpop.permute.xlu0 %1689
        %1692 = vset.pattern.permute.xlu0 6
        %1693 = vperm.xlu0 %1692, %v901
        %v1694 = vpop.permute.xlu0 %1693
        %1696 = vset.pattern.permute.xlu0 6
        %1697 = vperm.xlu0 %1696, %v906
        %v1698 = vpop.permute.xlu0 %1697
        %1700 = vset.pattern.permute.xlu0 6
        %1701 = vperm.xlu0 %1700, %v909
        %v1702 = vpop.permute.xlu0 %1701
        %1704 = vset.pattern.permute.xlu0 6
        %1705 = vperm.xlu0 %1704, %v914
        %v1706 = vpop.permute.xlu0 %1705
        %1708 = vset.pattern.permute.xlu0 6
        %1709 = vperm.xlu0 %1708, %v917
        %v1710 = vpop.permute.xlu0 %1709
        %1712 = vset.pattern.permute.xlu0 6
        %1713 = vperm.xlu0 %1712, %v922
        %v1714 = vpop.permute.xlu0 %1713
        %1716 = vset.pattern.permute.xlu0 6
        %1717 = vperm.xlu0 %1716, %v925
        %v1718 = vpop.permute.xlu0 %1717
        %v1720 = vlaneseq
        %v1721 = vshrl.u32 %v1720, 7
        %v1722 = vsub.s32 2, %v1721
        %v1723 = vrot.slane %v944, %v1722
        %v1724 = vadd.f32 %v1658, %v1723
        %v1725 = vadd.f32 %v1662, %v1723
        %v1726 = vadd.f32 %v1666, %v1723
        %v1727 = vadd.f32 %v1670, %v1723
        %v1728 = vadd.f32 %v1674, %v1723
        %v1729 = vadd.f32 %v1678, %v1723
        %v1730 = vadd.f32 %v1682, %v1723
        %v1731 = vadd.f32 %v1686, %v1723
        %v1732 = vadd.f32 %v1690, %v1723
        %v1733 = vadd.f32 %v1694, %v1723
        %v1734 = vadd.f32 %v1698, %v1723
        %v1735 = vadd.f32 %v1702, %v1723
        %v1736 = vadd.f32 %v1706, %v1723
        %v1737 = vadd.f32 %v1710, %v1723
        %v1738 = vadd.f32 %v1714, %v1723
        %v1739 = vadd.f32 %v1718, %v1723
        %vm1740 = vcmp.gt.f32.partialorder %v1724, 0.0
        %vm1741 = vcmp.gt.f32.partialorder %v1725, 0.0
        %vm1742 = vcmp.gt.f32.partialorder %v1726, 0.0
        %vm1743 = vcmp.gt.f32.partialorder %v1727, 0.0
        %vm1744 = vcmp.gt.f32.partialorder %v1728, 0.0
        %vm1745 = vcmp.gt.f32.partialorder %v1729, 0.0
        %vm1746 = vcmp.gt.f32.partialorder %v1730, 0.0
        %vm1747 = vcmp.gt.f32.partialorder %v1731, 0.0
        %vm1748 = vcmp.gt.f32.partialorder %v1732, 0.0
        %vm1749 = vcmp.gt.f32.partialorder %v1733, 0.0
        %vm1750 = vcmp.gt.f32.partialorder %v1734, 0.0
        %vm1751 = vcmp.gt.f32.partialorder %v1735, 0.0
        %vm1752 = vcmp.gt.f32.partialorder %v1736, 0.0
        %vm1753 = vcmp.gt.f32.partialorder %v1737, 0.0
        %vm1754 = vcmp.gt.f32.partialorder %v1738, 0.0
        %vm1755 = vcmp.gt.f32.partialorder %v1739, 0.0
        %v1756 = vmul.f32 %v1724, 0.2
        %v1757 = vmul.f32 %v1725, 0.2
        %v1758 = vmul.f32 %v1726, 0.2
        %v1759 = vmul.f32 %v1727, 0.2
        %v1760 = vmul.f32 %v1728, 0.2
        %v1761 = vmul.f32 %v1729, 0.2
        %v1762 = vmul.f32 %v1730, 0.2
        %v1763 = vmul.f32 %v1731, 0.2
        %v1764 = vmul.f32 %v1732, 0.2
        %v1765 = vmul.f32 %v1733, 0.2
        %v1766 = vmul.f32 %v1734, 0.2
        %v1767 = vmul.f32 %v1735, 0.2
        %v1768 = vmul.f32 %v1736, 0.2
        %v1769 = vmul.f32 %v1737, 0.2
        %v1770 = vmul.f32 %v1738, 0.2
        %v1771 = vmul.f32 %v1739, 0.2
        %v1772 = vsel %vm1740, %v1724, %v1756
        %v1773 = vsel %vm1741, %v1725, %v1757
        %v1774 = vsel %vm1742, %v1726, %v1758
        %v1775 = vsel %vm1743, %v1727, %v1759
        %v1776 = vsel %vm1744, %v1728, %v1760
        %v1777 = vsel %vm1745, %v1729, %v1761
        %v1778 = vsel %vm1746, %v1730, %v1762
        %v1779 = vsel %vm1747, %v1731, %v1763
        %v1780 = vsel %vm1748, %v1732, %v1764
        %v1781 = vsel %vm1749, %v1733, %v1765
        %v1782 = vsel %vm1750, %v1734, %v1766
        %v1783 = vsel %vm1751, %v1735, %v1767
        %v1784 = vsel %vm1752, %v1736, %v1768
        %v1785 = vsel %vm1753, %v1737, %v1769
        %v1786 = vsel %vm1754, %v1738, %v1770
        %v1787 = vsel %vm1755, %v1739, %v1771
        %v1788 = vsel %vm1140, %v1772, -1e+09
        %v1789 = vsel %vm1141, %v1773, -1e+09
        %v1790 = vsel %vm1142, %v1774, -1e+09
        %v1791 = vsel %vm1143, %v1775, -1e+09
        %v1792 = vsel %vm1144, %v1776, -1e+09
        %v1793 = vsel %vm1145, %v1777, -1e+09
        %v1794 = vsel %vm1146, %v1778, -1e+09
        %v1795 = vsel %vm1147, %v1779, -1e+09
        %v1796 = vsel %vm1148, %v1780, -1e+09
        %v1797 = vsel %vm1149, %v1781, -1e+09
        %v1798 = vsel %vm1150, %v1782, -1e+09
        %v1799 = vsel %vm1151, %v1783, -1e+09
        %v1800 = vsel %vm1152, %v1784, -1e+09
        %v1801 = vsel %vm1153, %v1785, -1e+09
        %v1802 = vsel %vm1154, %v1786, -1e+09
        %v1803 = vsel %vm1155, %v1787, -1e+09
        %1804 = vmax.xlane.f32.xlu0 %v1788
        %v1805 = vpop.xlane.xlu0 %1804
        %1806 = vmax.xlane.f32.xlu0 %v1789
        %v1807 = vpop.xlane.xlu0 %1806
        %1808 = vmax.xlane.f32.xlu0 %v1790
        %v1809 = vpop.xlane.xlu0 %1808
        %1810 = vmax.xlane.f32.xlu0 %v1791
        %v1811 = vpop.xlane.xlu0 %1810
        %1812 = vmax.xlane.f32.xlu0 %v1792
        %v1813 = vpop.xlane.xlu0 %1812
        %1814 = vmax.xlane.f32.xlu0 %v1793
        %v1815 = vpop.xlane.xlu0 %1814
        %1816 = vmax.xlane.f32.xlu0 %v1794
        %v1817 = vpop.xlane.xlu0 %1816
        %1818 = vmax.xlane.f32.xlu0 %v1795
        %v1819 = vpop.xlane.xlu0 %1818
        %1820 = vmax.xlane.f32.xlu0 %v1796
        %v1821 = vpop.xlane.xlu0 %1820
        %1822 = vmax.xlane.f32.xlu0 %v1797
        %v1823 = vpop.xlane.xlu0 %1822
        %1824 = vmax.xlane.f32.xlu0 %v1798
        %v1825 = vpop.xlane.xlu0 %1824
        %1826 = vmax.xlane.f32.xlu0 %v1799
        %v1827 = vpop.xlane.xlu0 %1826
        %1828 = vmax.xlane.f32.xlu0 %v1800
        %v1829 = vpop.xlane.xlu0 %1828
        %1830 = vmax.xlane.f32.xlu0 %v1801
        %v1831 = vpop.xlane.xlu0 %1830
        %1832 = vmax.xlane.f32.xlu0 %v1802
        %v1833 = vpop.xlane.xlu0 %1832
        %1834 = vmax.xlane.f32.xlu0 %v1803
        %v1835 = vpop.xlane.xlu0 %1834
        %v1836 = vsub.f32 %v1788, %v1805
        %v1837 = vsub.f32 %v1789, %v1807
        %v1838 = vsub.f32 %v1790, %v1809
        %v1839 = vsub.f32 %v1791, %v1811
        %v1840 = vsub.f32 %v1792, %v1813
        %v1841 = vsub.f32 %v1793, %v1815
        %v1842 = vsub.f32 %v1794, %v1817
        %v1843 = vsub.f32 %v1795, %v1819
        %v1844 = vsub.f32 %v1796, %v1821
        %v1845 = vsub.f32 %v1797, %v1823
        %v1846 = vsub.f32 %v1798, %v1825
        %v1847 = vsub.f32 %v1799, %v1827
        %v1848 = vsub.f32 %v1800, %v1829
        %v1849 = vsub.f32 %v1801, %v1831
        %v1850 = vsub.f32 %v1802, %v1833
        %v1851 = vsub.f32 %v1803, %v1835
        %v1852 = vmul.f32 %v1836, 1.442695
        %v1853 = vpow.pop %v1852
        %v1854 = vmul.f32 %v1837, 1.442695
        %v1855 = vpow.pop %v1854
        %v1856 = vmul.f32 %v1838, 1.442695
        %v1857 = vpow.pop %v1856
        %v1858 = vmul.f32 %v1839, 1.442695
        %v1859 = vpow.pop %v1858
        %v1860 = vmul.f32 %v1840, 1.442695
        %v1861 = vpow.pop %v1860
        %v1862 = vmul.f32 %v1841, 1.442695
        %v1863 = vpow.pop %v1862
        %v1864 = vmul.f32 %v1842, 1.442695
        %v1865 = vpow.pop %v1864
        %v1866 = vmul.f32 %v1843, 1.442695
        %v1867 = vpow.pop %v1866
        %v1868 = vmul.f32 %v1844, 1.442695
        %v1869 = vpow.pop %v1868
        %v1870 = vmul.f32 %v1845, 1.442695
        %v1871 = vpow.pop %v1870
        %v1872 = vmul.f32 %v1846, 1.442695
        %v1873 = vpow.pop %v1872
        %v1874 = vmul.f32 %v1847, 1.442695
        %v1875 = vpow.pop %v1874
        %v1876 = vmul.f32 %v1848, 1.442695
        %v1877 = vpow.pop %v1876
        %v1878 = vmul.f32 %v1849, 1.442695
        %v1879 = vpow.pop %v1878
        %v1880 = vmul.f32 %v1850, 1.442695
        %v1881 = vpow.pop %v1880
        %v1882 = vmul.f32 %v1851, 1.442695
        %v1883 = vpow.pop %v1882
        %v1884 = vsel %vm1140, %v1853, 0.0
        %v1885 = vsel %vm1141, %v1855, 0.0
        %v1886 = vsel %vm1142, %v1857, 0.0
        %v1887 = vsel %vm1143, %v1859, 0.0
        %v1888 = vsel %vm1144, %v1861, 0.0
        %v1889 = vsel %vm1145, %v1863, 0.0
        %v1890 = vsel %vm1146, %v1865, 0.0
        %v1891 = vsel %vm1147, %v1867, 0.0
        %v1892 = vsel %vm1148, %v1869, 0.0
        %v1893 = vsel %vm1149, %v1871, 0.0
        %v1894 = vsel %vm1150, %v1873, 0.0
        %v1895 = vsel %vm1151, %v1875, 0.0
        %v1896 = vsel %vm1152, %v1877, 0.0
        %v1897 = vsel %vm1153, %v1879, 0.0
        %v1898 = vsel %vm1154, %v1881, 0.0
        %v1899 = vsel %vm1155, %v1883, 0.0
        %1900 = vadd.xlane.f32.xlu0 %v1884
        %v1901 = vpop.xlane.xlu0 %1900
        %1902 = vadd.xlane.f32.xlu0 %v1885
        %v1903 = vpop.xlane.xlu0 %1902
        %1904 = vadd.xlane.f32.xlu0 %v1886
        %v1905 = vpop.xlane.xlu0 %1904
        %1906 = vadd.xlane.f32.xlu0 %v1887
        %v1907 = vpop.xlane.xlu0 %1906
        %1908 = vadd.xlane.f32.xlu0 %v1888
        %v1909 = vpop.xlane.xlu0 %1908
        %1910 = vadd.xlane.f32.xlu0 %v1889
        %v1911 = vpop.xlane.xlu0 %1910
        %1912 = vadd.xlane.f32.xlu0 %v1890
        %v1913 = vpop.xlane.xlu0 %1912
        %1914 = vadd.xlane.f32.xlu0 %v1891
        %v1915 = vpop.xlane.xlu0 %1914
        %1916 = vadd.xlane.f32.xlu0 %v1892
        %v1917 = vpop.xlane.xlu0 %1916
        %1918 = vadd.xlane.f32.xlu0 %v1893
        %v1919 = vpop.xlane.xlu0 %1918
        %1920 = vadd.xlane.f32.xlu0 %v1894
        %v1921 = vpop.xlane.xlu0 %1920
        %1922 = vadd.xlane.f32.xlu0 %v1895
        %v1923 = vpop.xlane.xlu0 %1922
        %1924 = vadd.xlane.f32.xlu0 %v1896
        %v1925 = vpop.xlane.xlu0 %1924
        %1926 = vadd.xlane.f32.xlu0 %v1897
        %v1927 = vpop.xlane.xlu0 %1926
        %1928 = vadd.xlane.f32.xlu0 %v1898
        %v1929 = vpop.xlane.xlu0 %1928
        %1930 = vadd.xlane.f32.xlu0 %v1899
        %v1931 = vpop.xlane.xlu0 %1930
        %v1932 = vrcp.pop %v1901
        %v1933 = vrcp.pop %v1903
        %v1934 = vrcp.pop %v1905
        %v1935 = vrcp.pop %v1907
        %v1936 = vrcp.pop %v1909
        %v1937 = vrcp.pop %v1911
        %v1938 = vrcp.pop %v1913
        %v1939 = vrcp.pop %v1915
        %v1940 = vrcp.pop %v1917
        %v1941 = vrcp.pop %v1919
        %v1942 = vrcp.pop %v1921
        %v1943 = vrcp.pop %v1923
        %v1944 = vrcp.pop %v1925
        %v1945 = vrcp.pop %v1927
        %v1946 = vrcp.pop %v1929
        %v1947 = vrcp.pop %v1931
        %v1948 = vmul.f32 %v1884, %v1932
        %v1949 = vmul.f32 %v1885, %v1933
        %v1950 = vmul.f32 %v1886, %v1934
        %v1951 = vmul.f32 %v1887, %v1935
        %v1952 = vmul.f32 %v1888, %v1936
        %v1953 = vmul.f32 %v1889, %v1937
        %v1954 = vmul.f32 %v1890, %v1938
        %v1955 = vmul.f32 %v1891, %v1939
        %v1956 = vmul.f32 %v1892, %v1940
        %v1957 = vmul.f32 %v1893, %v1941
        %v1958 = vmul.f32 %v1894, %v1942
        %v1959 = vmul.f32 %v1895, %v1943
        %v1960 = vmul.f32 %v1896, %v1944
        %v1961 = vmul.f32 %v1897, %v1945
        %v1962 = vmul.f32 %v1898, %v1946
        %v1963 = vmul.f32 %v1899, %v1947
        %v1964 = vpack.c.bf16 %v1949, %v1948
        %v1965 = vpack.c.bf16 %v1951, %v1950
        %v1966 = vpack.c.bf16 %v1953, %v1952
        %v1967 = vpack.c.bf16 %v1955, %v1954
        %v1968 = vpack.c.bf16 %v1957, %v1956
        %v1969 = vpack.c.bf16 %v1959, %v1958
        %v1970 = vpack.c.bf16 %v1961, %v1960
        %v1971 = vpack.c.bf16 %v1963, %v1962
        %1972 = vset.pattern.permute.xlu0 7
        %1973 = vperm.xlu0 %1972, %v866
        %v1974 = vpop.permute.xlu0 %1973
        %1976 = vset.pattern.permute.xlu0 7
        %1977 = vperm.xlu0 %1976, %v869
        %v1978 = vpop.permute.xlu0 %1977
        %1980 = vset.pattern.permute.xlu0 7
        %1981 = vperm.xlu0 %1980, %v874
        %v1982 = vpop.permute.xlu0 %1981
        %1984 = vset.pattern.permute.xlu0 7
        %1985 = vperm.xlu0 %1984, %v877
        %v1986 = vpop.permute.xlu0 %1985
        %1988 = vset.pattern.permute.xlu0 7
        %1989 = vperm.xlu0 %1988, %v882
        %v1990 = vpop.permute.xlu0 %1989
        %1992 = vset.pattern.permute.xlu0 7
        %1993 = vperm.xlu0 %1992, %v885
        %v1994 = vpop.permute.xlu0 %1993
        %1996 = vset.pattern.permute.xlu0 7
        %1997 = vperm.xlu0 %1996, %v890
        %v1998 = vpop.permute.xlu0 %1997
        %2000 = vset.pattern.permute.xlu0 7
        %2001 = vperm.xlu0 %2000, %v893
        %v2002 = vpop.permute.xlu0 %2001
        %2004 = vset.pattern.permute.xlu0 7
        %2005 = vperm.xlu0 %2004, %v898
        %v2006 = vpop.permute.xlu0 %2005
        %2008 = vset.pattern.permute.xlu0 7
        %2009 = vperm.xlu0 %2008, %v901
        %v2010 = vpop.permute.xlu0 %2009
        %2012 = vset.pattern.permute.xlu0 7
        %2013 = vperm.xlu0 %2012, %v906
        %v2014 = vpop.permute.xlu0 %2013
        %2016 = vset.pattern.permute.xlu0 7
        %2017 = vperm.xlu0 %2016, %v909
        %v2018 = vpop.permute.xlu0 %2017
        %2020 = vset.pattern.permute.xlu0 7
        %2021 = vperm.xlu0 %2020, %v914
        %v2022 = vpop.permute.xlu0 %2021
        %2024 = vset.pattern.permute.xlu0 7
        %2025 = vperm.xlu0 %2024, %v917
        %v2026 = vpop.permute.xlu0 %2025
        %2028 = vset.pattern.permute.xlu0 7
        %2029 = vperm.xlu0 %2028, %v922
        %v2030 = vpop.permute.xlu0 %2029
        %2032 = vset.pattern.permute.xlu0 7
        %2033 = vperm.xlu0 %2032, %v925
        %v2034 = vpop.permute.xlu0 %2033
        %v2036 = vlaneseq
        %v2037 = vshrl.u32 %v2036, 7
        %v2038 = vsub.s32 3, %v2037
        %v2039 = vrot.slane %v944, %v2038
        %v2040 = vadd.f32 %v1974, %v2039
        %v2041 = vadd.f32 %v1978, %v2039
        %v2042 = vadd.f32 %v1982, %v2039
        %v2043 = vadd.f32 %v1986, %v2039
        %v2044 = vadd.f32 %v1990, %v2039
        %v2045 = vadd.f32 %v1994, %v2039
        %v2046 = vadd.f32 %v1998, %v2039
        %v2047 = vadd.f32 %v2002, %v2039
        %v2048 = vadd.f32 %v2006, %v2039
        %v2049 = vadd.f32 %v2010, %v2039
        %v2050 = vadd.f32 %v2014, %v2039
        %v2051 = vadd.f32 %v2018, %v2039
        %v2052 = vadd.f32 %v2022, %v2039
        %v2053 = vadd.f32 %v2026, %v2039
        %v2054 = vadd.f32 %v2030, %v2039
        %v2055 = vadd.f32 %v2034, %v2039
        %vm2056 = vcmp.gt.f32.partialorder %v2040, 0.0
        %vm2057 = vcmp.gt.f32.partialorder %v2041, 0.0
        %vm2058 = vcmp.gt.f32.partialorder %v2042, 0.0
        %vm2059 = vcmp.gt.f32.partialorder %v2043, 0.0
        %vm2060 = vcmp.gt.f32.partialorder %v2044, 0.0
        %vm2061 = vcmp.gt.f32.partialorder %v2045, 0.0
        %vm2062 = vcmp.gt.f32.partialorder %v2046, 0.0
        %vm2063 = vcmp.gt.f32.partialorder %v2047, 0.0
        %vm2064 = vcmp.gt.f32.partialorder %v2048, 0.0
        %vm2065 = vcmp.gt.f32.partialorder %v2049, 0.0
        %vm2066 = vcmp.gt.f32.partialorder %v2050, 0.0
        %vm2067 = vcmp.gt.f32.partialorder %v2051, 0.0
        %vm2068 = vcmp.gt.f32.partialorder %v2052, 0.0
        %vm2069 = vcmp.gt.f32.partialorder %v2053, 0.0
        %vm2070 = vcmp.gt.f32.partialorder %v2054, 0.0
        %vm2071 = vcmp.gt.f32.partialorder %v2055, 0.0
        %v2072 = vmul.f32 %v2040, 0.2
        %v2073 = vmul.f32 %v2041, 0.2
        %v2074 = vmul.f32 %v2042, 0.2
        %v2075 = vmul.f32 %v2043, 0.2
        %v2076 = vmul.f32 %v2044, 0.2
        %v2077 = vmul.f32 %v2045, 0.2
        %v2078 = vmul.f32 %v2046, 0.2
        %v2079 = vmul.f32 %v2047, 0.2
        %v2080 = vmul.f32 %v2048, 0.2
        %v2081 = vmul.f32 %v2049, 0.2
        %v2082 = vmul.f32 %v2050, 0.2
        %v2083 = vmul.f32 %v2051, 0.2
        %v2084 = vmul.f32 %v2052, 0.2
        %v2085 = vmul.f32 %v2053, 0.2
        %v2086 = vmul.f32 %v2054, 0.2
        %v2087 = vmul.f32 %v2055, 0.2
        %v2088 = vsel %vm2056, %v2040, %v2072
        %v2089 = vsel %vm2057, %v2041, %v2073
        %v2090 = vsel %vm2058, %v2042, %v2074
        %v2091 = vsel %vm2059, %v2043, %v2075
        %v2092 = vsel %vm2060, %v2044, %v2076
        %v2093 = vsel %vm2061, %v2045, %v2077
        %v2094 = vsel %vm2062, %v2046, %v2078
        %v2095 = vsel %vm2063, %v2047, %v2079
        %v2096 = vsel %vm2064, %v2048, %v2080
        %v2097 = vsel %vm2065, %v2049, %v2081
        %v2098 = vsel %vm2066, %v2050, %v2082
        %v2099 = vsel %vm2067, %v2051, %v2083
        %v2100 = vsel %vm2068, %v2052, %v2084
        %v2101 = vsel %vm2069, %v2053, %v2085
        %v2102 = vsel %vm2070, %v2054, %v2086
        %v2103 = vsel %vm2071, %v2055, %v2087
        %v2104 = vsel %vm1140, %v2088, -1e+09
        %v2105 = vsel %vm1141, %v2089, -1e+09
        %v2106 = vsel %vm1142, %v2090, -1e+09
        %v2107 = vsel %vm1143, %v2091, -1e+09
        %v2108 = vsel %vm1144, %v2092, -1e+09
        %v2109 = vsel %vm1145, %v2093, -1e+09
        %v2110 = vsel %vm1146, %v2094, -1e+09
        %v2111 = vsel %vm1147, %v2095, -1e+09
        %v2112 = vsel %vm1148, %v2096, -1e+09
        %v2113 = vsel %vm1149, %v2097, -1e+09
        %v2114 = vsel %vm1150, %v2098, -1e+09
        %v2115 = vsel %vm1151, %v2099, -1e+09
        %v2116 = vsel %vm1152, %v2100, -1e+09
        %v2117 = vsel %vm1153, %v2101, -1e+09
        %v2118 = vsel %vm1154, %v2102, -1e+09
        %v2119 = vsel %vm1155, %v2103, -1e+09
        %2120 = vmax.xlane.f32.xlu0 %v2104
        %v2121 = vpop.xlane.xlu0 %2120
        %2122 = vmax.xlane.f32.xlu0 %v2105
        %v2123 = vpop.xlane.xlu0 %2122
        %2124 = vmax.xlane.f32.xlu0 %v2106
        %v2125 = vpop.xlane.xlu0 %2124
        %2126 = vmax.xlane.f32.xlu0 %v2107
        %v2127 = vpop.xlane.xlu0 %2126
        %2128 = vmax.xlane.f32.xlu0 %v2108
        %v2129 = vpop.xlane.xlu0 %2128
        %2130 = vmax.xlane.f32.xlu0 %v2109
        %v2131 = vpop.xlane.xlu0 %2130
        %2132 = vmax.xlane.f32.xlu0 %v2110
        %v2133 = vpop.xlane.xlu0 %2132
        %2134 = vmax.xlane.f32.xlu0 %v2111
        %v2135 = vpop.xlane.xlu0 %2134
        %2136 = vmax.xlane.f32.xlu0 %v2112
        %v2137 = vpop.xlane.xlu0 %2136
        %2138 = vmax.xlane.f32.xlu0 %v2113
        %v2139 = vpop.xlane.xlu0 %2138
        %2140 = vmax.xlane.f32.xlu0 %v2114
        %v2141 = vpop.xlane.xlu0 %2140
        %2142 = vmax.xlane.f32.xlu0 %v2115
        %v2143 = vpop.xlane.xlu0 %2142
        %2144 = vmax.xlane.f32.xlu0 %v2116
        %v2145 = vpop.xlane.xlu0 %2144
        %2146 = vmax.xlane.f32.xlu0 %v2117
        %v2147 = vpop.xlane.xlu0 %2146
        %2148 = vmax.xlane.f32.xlu0 %v2118
        %v2149 = vpop.xlane.xlu0 %2148
        %2150 = vmax.xlane.f32.xlu0 %v2119
        %v2151 = vpop.xlane.xlu0 %2150
        %v2152 = vsub.f32 %v2104, %v2121
        %v2153 = vsub.f32 %v2105, %v2123
        %v2154 = vsub.f32 %v2106, %v2125
        %v2155 = vsub.f32 %v2107, %v2127
        %v2156 = vsub.f32 %v2108, %v2129
        %v2157 = vsub.f32 %v2109, %v2131
        %v2158 = vsub.f32 %v2110, %v2133
        %v2159 = vsub.f32 %v2111, %v2135
        %v2160 = vsub.f32 %v2112, %v2137
        %v2161 = vsub.f32 %v2113, %v2139
        %v2162 = vsub.f32 %v2114, %v2141
        %v2163 = vsub.f32 %v2115, %v2143
        %v2164 = vsub.f32 %v2116, %v2145
        %v2165 = vsub.f32 %v2117, %v2147
        %v2166 = vsub.f32 %v2118, %v2149
        %v2167 = vsub.f32 %v2119, %v2151
        %v2168 = vmul.f32 %v2152, 1.442695
        %v2169 = vpow.pop %v2168
        %v2170 = vmul.f32 %v2153, 1.442695
        %v2171 = vpow.pop %v2170
        %v2172 = vmul.f32 %v2154, 1.442695
        %v2173 = vpow.pop %v2172
        %v2174 = vmul.f32 %v2155, 1.442695
        %v2175 = vpow.pop %v2174
        %v2176 = vmul.f32 %v2156, 1.442695
        %v2177 = vpow.pop %v2176
        %v2178 = vmul.f32 %v2157, 1.442695
        %v2179 = vpow.pop %v2178
        %v2180 = vmul.f32 %v2158, 1.442695
        %v2181 = vpow.pop %v2180
        %v2182 = vmul.f32 %v2159, 1.442695
        %v2183 = vpow.pop %v2182
        %v2184 = vmul.f32 %v2160, 1.442695
        %v2185 = vpow.pop %v2184
        %v2186 = vmul.f32 %v2161, 1.442695
        %v2187 = vpow.pop %v2186
        %v2188 = vmul.f32 %v2162, 1.442695
        %v2189 = vpow.pop %v2188
        %v2190 = vmul.f32 %v2163, 1.442695
        %v2191 = vpow.pop %v2190
        %v2192 = vmul.f32 %v2164, 1.442695
        %v2193 = vpow.pop %v2192
        %v2194 = vmul.f32 %v2165, 1.442695
        %v2195 = vpow.pop %v2194
        %v2196 = vmul.f32 %v2166, 1.442695
        %v2197 = vpow.pop %v2196
        %v2198 = vmul.f32 %v2167, 1.442695
        %v2199 = vpow.pop %v2198
        %v2200 = vsel %vm1140, %v2169, 0.0
        %v2201 = vsel %vm1141, %v2171, 0.0
        %v2202 = vsel %vm1142, %v2173, 0.0
        %v2203 = vsel %vm1143, %v2175, 0.0
        %v2204 = vsel %vm1144, %v2177, 0.0
        %v2205 = vsel %vm1145, %v2179, 0.0
        %v2206 = vsel %vm1146, %v2181, 0.0
        %v2207 = vsel %vm1147, %v2183, 0.0
        %v2208 = vsel %vm1148, %v2185, 0.0
        %v2209 = vsel %vm1149, %v2187, 0.0
        %v2210 = vsel %vm1150, %v2189, 0.0
        %v2211 = vsel %vm1151, %v2191, 0.0
        %v2212 = vsel %vm1152, %v2193, 0.0
        %v2213 = vsel %vm1153, %v2195, 0.0
        %v2214 = vsel %vm1154, %v2197, 0.0
        %v2215 = vsel %vm1155, %v2199, 0.0
        %2216 = vadd.xlane.f32.xlu0 %v2200
        %v2217 = vpop.xlane.xlu0 %2216
        %2218 = vadd.xlane.f32.xlu0 %v2201
        %v2219 = vpop.xlane.xlu0 %2218
        %2220 = vadd.xlane.f32.xlu0 %v2202
        %v2221 = vpop.xlane.xlu0 %2220
        %2222 = vadd.xlane.f32.xlu0 %v2203
        %v2223 = vpop.xlane.xlu0 %2222
        %2224 = vadd.xlane.f32.xlu0 %v2204
        %v2225 = vpop.xlane.xlu0 %2224
        %2226 = vadd.xlane.f32.xlu0 %v2205
        %v2227 = vpop.xlane.xlu0 %2226
        %2228 = vadd.xlane.f32.xlu0 %v2206
        %v2229 = vpop.xlane.xlu0 %2228
        %2230 = vadd.xlane.f32.xlu0 %v2207
        %v2231 = vpop.xlane.xlu0 %2230
        %2232 = vadd.xlane.f32.xlu0 %v2208
        %v2233 = vpop.xlane.xlu0 %2232
        %2234 = vadd.xlane.f32.xlu0 %v2209
        %v2235 = vpop.xlane.xlu0 %2234
        %2236 = vadd.xlane.f32.xlu0 %v2210
        %v2237 = vpop.xlane.xlu0 %2236
        %2238 = vadd.xlane.f32.xlu0 %v2211
        %v2239 = vpop.xlane.xlu0 %2238
        %2240 = vadd.xlane.f32.xlu0 %v2212
        %v2241 = vpop.xlane.xlu0 %2240
        %2242 = vadd.xlane.f32.xlu0 %v2213
        %v2243 = vpop.xlane.xlu0 %2242
        %2244 = vadd.xlane.f32.xlu0 %v2214
        %v2245 = vpop.xlane.xlu0 %2244
        %2246 = vadd.xlane.f32.xlu0 %v2215
        %v2247 = vpop.xlane.xlu0 %2246
        %v2248 = vrcp.pop %v2217
        %v2249 = vrcp.pop %v2219
        %v2250 = vrcp.pop %v2221
        %v2251 = vrcp.pop %v2223
        %v2252 = vrcp.pop %v2225
        %v2253 = vrcp.pop %v2227
        %v2254 = vrcp.pop %v2229
        %v2255 = vrcp.pop %v2231
        %v2256 = vrcp.pop %v2233
        %v2257 = vrcp.pop %v2235
        %v2258 = vrcp.pop %v2237
        %v2259 = vrcp.pop %v2239
        %v2260 = vrcp.pop %v2241
        %v2261 = vrcp.pop %v2243
        %v2262 = vrcp.pop %v2245
        %v2263 = vrcp.pop %v2247
        %v2264 = vmul.f32 %v2200, %v2248
        %v2265 = vmul.f32 %v2201, %v2249
        %v2266 = vmul.f32 %v2202, %v2250
        %v2267 = vmul.f32 %v2203, %v2251
        %v2268 = vmul.f32 %v2204, %v2252
        %v2269 = vmul.f32 %v2205, %v2253
        %v2270 = vmul.f32 %v2206, %v2254
        %v2271 = vmul.f32 %v2207, %v2255
        %v2272 = vmul.f32 %v2208, %v2256
        %v2273 = vmul.f32 %v2209, %v2257
        %v2274 = vmul.f32 %v2210, %v2258
        %v2275 = vmul.f32 %v2211, %v2259
        %v2276 = vmul.f32 %v2212, %v2260
        %v2277 = vmul.f32 %v2213, %v2261
        %v2278 = vmul.f32 %v2214, %v2262
        %v2279 = vmul.f32 %v2215, %v2263
        %v2280 = vpack.c.bf16 %v2265, %v2264
        %v2281 = vpack.c.bf16 %v2267, %v2266
        %v2282 = vpack.c.bf16 %v2269, %v2268
        %v2283 = vpack.c.bf16 %v2271, %v2270
        %v2284 = vpack.c.bf16 %v2273, %v2272
        %v2285 = vpack.c.bf16 %v2275, %v2274
        %v2286 = vpack.c.bf16 %v2277, %v2276
        %v2287 = vpack.c.bf16 %v2279, %v2278
        %v2288 = vlaneseq
        %v2289 = vand.u32 %v2288, 127
        %vm2290 = vcmp.ge.s32.totalorder %v2289, 0
        %vm2291 = vcmp.lt.s32.totalorder %v2289, 8
        %vm2292 = vmand %vm2290, %vm2291
        %v2293 = vsel %vm2292, 1, 0
        %vm2294 = vcmp.eq.s32.totalorder %v2293, 1
        %vm2295 = vmpackc.low %vm2294, %vm2294
        %v2296 = vsel %vm2295, 65537, 0
        %v2297 = vlaneseq
        %v2298 = vshrl.u32 %v2297, 7
        %v2299 = vsub.s32 0, %v2298
        %v2300 = vrot.slane %v2296, %v2299
        %vm2301 = vcmp.ne.s16.totalorder %v2300, 0
        %v2302 = vsel %vm2301, %v782, 0
        %v2303 = vsel %vm2301, %v783, 0
        %v2304 = vsel %vm2301, %v784, 0
        %v2305 = vsel %vm2301, %v785, 0
        %v2306 = vsel %vm2301, %v786, 0
        %v2307 = vsel %vm2301, %v787, 0
        %v2308 = vsel %vm2301, %v788, 0
        %v2309 = vsel %vm2301, %v789, 0
        %vm2310 = vcmp.ge.s32.totalorder %v2289, 8
        %vm2311 = vcmp.lt.s32.totalorder %v2289, 16
        %vm2312 = vmand %vm2310, %vm2311
        %v2313 = vsel %vm2312, 1, 0
        %vm2314 = vcmp.eq.s32.totalorder %v2313, 1
        %vm2315 = vmpackc.low %vm2314, %vm2314
        %v2316 = vsel %vm2315, 65537, 0
        %v2317 = vlaneseq
        %v2318 = vshrl.u32 %v2317, 7
        %v2319 = vsub.s32 0, %v2318
        %v2320 = vrot.slane %v2316, %v2319
        %vm2321 = vcmp.ne.s16.totalorder %v2320, 0
        %v2322 = vsel %vm2321, %v782, 0
        %v2323 = vsel %vm2321, %v783, 0
        %v2324 = vsel %vm2321, %v784, 0
        %v2325 = vsel %vm2321, %v785, 0
        %v2326 = vsel %vm2321, %v786, 0
        %v2327 = vsel %vm2321, %v787, 0
        %v2328 = vsel %vm2321, %v788, 0
        %v2329 = vsel %vm2321, %v789, 0
        %vm2330 = vcmp.ge.s32.totalorder %v2289, 16
        %vm2331 = vcmp.lt.s32.totalorder %v2289, 24
        %vm2332 = vmand %vm2330, %vm2331
        %v2333 = vsel %vm2332, 1, 0
        %vm2334 = vcmp.eq.s32.totalorder %v2333, 1
        %vm2335 = vmpackc.low %vm2334, %vm2334
        %v2336 = vsel %vm2335, 65537, 0
        %v2337 = vlaneseq
        %v2338 = vshrl.u32 %v2337, 7
        %v2339 = vsub.s32 0, %v2338
        %v2340 = vrot.slane %v2336, %v2339
        %vm2341 = vcmp.ne.s16.totalorder %v2340, 0
        %v2342 = vsel %vm2341, %v782, 0
        %v2343 = vsel %vm2341, %v783, 0
        %v2344 = vsel %vm2341, %v784, 0
        %v2345 = vsel %vm2341, %v785, 0
        %v2346 = vsel %vm2341, %v786, 0
        %v2347 = vsel %vm2341, %v787, 0
        %v2348 = vsel %vm2341, %v788, 0
        %v2349 = vsel %vm2341, %v789, 0
        %vm2350 = vcmp.ge.s32.totalorder %v2289, 24
        %vm2351 = vcmp.lt.s32.totalorder %v2289, 32
        %vm2352 = vmand %vm2350, %vm2351
        %v2353 = vsel %vm2352, 1, 0
        %vm2354 = vcmp.eq.s32.totalorder %v2353, 1
        %vm2355 = vmpackc.low %vm2354, %vm2354
        %v2356 = vsel %vm2355, 65537, 0
        %v2357 = vlaneseq
        %v2358 = vshrl.u32 %v2357, 7
        %v2359 = vsub.s32 0, %v2358
        %v2360 = vrot.slane %v2356, %v2359
        %vm2361 = vcmp.ne.s16.totalorder %v2360, 0
        %v2362 = vsel %vm2361, %v782, 0
        %v2363 = vsel %vm2361, %v783, 0
        %v2364 = vsel %vm2361, %v784, 0
        %v2365 = vsel %vm2361, %v785, 0
        %v2366 = vsel %vm2361, %v786, 0
        %v2367 = vsel %vm2361, %v787, 0
        %v2368 = vsel %vm2361, %v788, 0
        %v2369 = vsel %vm2361, %v789, 0
        %v2370 = vld [vmem:[%s6] sm:$0x1]
        %v2372 = vlaneseq
        %v2373 = vshrl.u32 %v2372, 7
        %v2374 = vsub.s32 0, %v2373
        %v2375 = vrot.slane %v2370, %v2374
        %2377 = vmatprep.subr.bf16.mxu0 0
        %2378 = vmatpush1.bf16.msra.mxu0 %v2309
        %2379 = vmatprep.subr.bf16.mxu0 0
        %2380 = vmatpush1.bf16.msra.mxu0 %v2308
        %2381 = vmatprep.subr.bf16.mxu0 0
        %2382 = vmatpush1.bf16.msra.mxu0 %v2307
        %2383 = vmatprep.subr.bf16.mxu0 0
        %2384 = vmatpush1.bf16.msra.mxu0 %v2306
        %2385 = vmatprep.subr.bf16.mxu0 0
        %2386 = vmatpush1.bf16.msra.mxu0 %v2305
        %2387 = vmatprep.subr.bf16.mxu0 0
        %2388 = vmatpush1.bf16.msra.mxu0 %v2304
        %2389 = vmatprep.subr.bf16.mxu0 0
        %2390 = vmatpush1.bf16.msra.mxu0 %v2303
        %2391 = vmatprep.subr.bf16.mxu0 0
        %2392 = vmatpush1.bf16.msra.mxu0 %v2302
        %2393 = vmatprep.subr.bf16.mxu0 0
        %2394 = vmatpush2.bf16.msra.mxu0 %v2329
        %2395 = vmatprep.subr.bf16.mxu0 0
        %2396 = vmatpush2.bf16.msra.mxu0 %v2328
        %2397 = vmatprep.subr.bf16.mxu0 0
        %2398 = vmatpush2.bf16.msra.mxu0 %v2327
        %2399 = vmatprep.subr.bf16.mxu0 0
        %2400 = vmatpush2.bf16.msra.mxu0 %v2326
        %2401 = vmatprep.subr.bf16.mxu0 0
        %2402 = vmatpush2.bf16.msra.mxu0 %v2325
        %2403 = vmatprep.subr.bf16.mxu0 0
        %2404 = vmatpush2.bf16.msra.mxu0 %v2324
        %2405 = vmatprep.subr.bf16.mxu0 0
        %2406 = vmatpush2.bf16.msra.mxu0 %v2323
        %2407 = vmatprep.subr.bf16.mxu0 0
        %2408 = vmatpush2.bf16.msra.mxu0 %v2322
        %2409 = vmatprep.mubr.bf16.mxu0 %v1648
        %2410 = vmatmul.mubr.bf16.gmra.mxu0 %v1332
        %v2411 = vpop.f32.mrf.mxu0
        %v2412 = vadd.f32 %v2375, %v2411
        %v2413 = vpop.f32.mrf.mxu0
        %v2414 = vpop.f32.mrf.mxu0
        %v2415 = vadd.f32 %v2375, %v2414
        %v2416 = vpop.f32.mrf.mxu0
        %2417 = vmatprep.mubr.bf16.mxu0 %v1649
        %2418 = vmatmul.mubr.bf16.gmra.mxu0 %v1333
        %v2419 = vpop.f32.mrf.mxu0
        %v2420 = vadd.f32 %v2375, %v2419
        %v2421 = vpop.f32.mrf.mxu0
        %v2422 = vpop.f32.mrf.mxu0
        %v2423 = vadd.f32 %v2375, %v2422
        %v2424 = vpop.f32.mrf.mxu0
        %2425 = vmatprep.mubr.bf16.mxu0 %v1650
        %2426 = vmatmul.mubr.bf16.gmra.mxu0 %v1334
        %v2427 = vpop.f32.mrf.mxu0
        %v2428 = vadd.f32 %v2375, %v2427
        %v2429 = vpop.f32.mrf.mxu0
        %v2430 = vpop.f32.mrf.mxu0
        %v2431 = vadd.f32 %v2375, %v2430
        %v2432 = vpop.f32.mrf.mxu0
        %2433 = vmatprep.mubr.bf16.mxu0 %v1651
        %2434 = vmatmul.mubr.bf16.gmra.mxu0 %v1335
        %v2435 = vpop.f32.mrf.mxu0
        %v2436 = vadd.f32 %v2375, %v2435
        %v2437 = vpop.f32.mrf.mxu0
        %v2438 = vpop.f32.mrf.mxu0
        %v2439 = vadd.f32 %v2375, %v2438
        %v2440 = vpop.f32.mrf.mxu0
        %2441 = vmatprep.mubr.bf16.mxu0 %v1652
        %2442 = vmatmul.mubr.bf16.gmra.mxu0 %v1336
        %v2443 = vpop.f32.mrf.mxu0
        %v2444 = vadd.f32 %v2375, %v2443
        %v2445 = vpop.f32.mrf.mxu0
        %v2446 = vpop.f32.mrf.mxu0
        %v2447 = vadd.f32 %v2375, %v2446
        %v2448 = vpop.f32.mrf.mxu0
        %2449 = vmatprep.mubr.bf16.mxu0 %v1653
        %2450 = vmatmul.mubr.bf16.gmra.mxu0 %v1337
        %v2451 = vpop.f32.mrf.mxu0
        %v2452 = vadd.f32 %v2375, %v2451
        %v2453 = vpop.f32.mrf.mxu0
        %v2454 = vpop.f32.mrf.mxu0
        %v2455 = vadd.f32 %v2375, %v2454
        %v2456 = vpop.f32.mrf.mxu0
        %2457 = vmatprep.mubr.bf16.mxu0 %v1654
        %2458 = vmatmul.mubr.bf16.gmra.mxu0 %v1338
        %v2459 = vpop.f32.mrf.mxu0
        %v2460 = vadd.f32 %v2375, %v2459
        %v2461 = vpop.f32.mrf.mxu0
        %v2462 = vpop.f32.mrf.mxu0
        %v2463 = vadd.f32 %v2375, %v2462
        %v2464 = vpop.f32.mrf.mxu0
        %2465 = vmatprep.mubr.bf16.mxu0 %v1655
        %2466 = vmatmul.mubr.bf16.gmra.mxu0 %v1339
        %v2467 = vpop.f32.mrf.mxu0
        %v2468 = vadd.f32 %v2375, %v2467
        %v2469 = vpop.f32.mrf.mxu0
        %v2470 = vpop.f32.mrf.mxu0
        %v2471 = vadd.f32 %v2375, %v2470
        %v2472 = vpop.f32.mrf.mxu0
        %2473 = vdwg.mxu0
        %2474 = vmatprep.subr.bf16.mxu0 0
        %2475 = vmatpush1.bf16.msra.mxu0 %v2349
        %2476 = vmatprep.subr.bf16.mxu0 0
        %2477 = vmatpush1.bf16.msra.mxu0 %v2348
        %2478 = vmatprep.subr.bf16.mxu0 0
        %2479 = vmatpush1.bf16.msra.mxu0 %v2347
        %2480 = vmatprep.subr.bf16.mxu0 0
        %2481 = vmatpush1.bf16.msra.mxu0 %v2346
        %2482 = vmatprep.subr.bf16.mxu0 0
        %2483 = vmatpush1.bf16.msra.mxu0 %v2345
        %2484 = vmatprep.subr.bf16.mxu0 0
        %2485 = vmatpush1.bf16.msra.mxu0 %v2344
        %2486 = vmatprep.subr.bf16.mxu0 0
        %2487 = vmatpush1.bf16.msra.mxu0 %v2343
        %2488 = vmatprep.subr.bf16.mxu0 0
        %2489 = vmatpush1.bf16.msra.mxu0 %v2342
        %2490 = vmatprep.subr.bf16.mxu0 0
        %2491 = vmatpush2.bf16.msra.mxu0 %v2369
        %2492 = vmatprep.subr.bf16.mxu0 0
        %2493 = vmatpush2.bf16.msra.mxu0 %v2368
        %2494 = vmatprep.subr.bf16.mxu0 0
        %2495 = vmatpush2.bf16.msra.mxu0 %v2367
        %2496 = vmatprep.subr.bf16.mxu0 0
        %2497 = vmatpush2.bf16.msra.mxu0 %v2366
        %2498 = vmatprep.subr.bf16.mxu0 0
        %2499 = vmatpush2.bf16.msra.mxu0 %v2365
        %2500 = vmatprep.subr.bf16.mxu0 0
        %2501 = vmatpush2.bf16.msra.mxu0 %v2364
        %2502 = vmatprep.subr.bf16.mxu0 0
        %2503 = vmatpush2.bf16.msra.mxu0 %v2363
        %2504 = vmatprep.subr.bf16.mxu0 0
        %2505 = vmatpush2.bf16.msra.mxu0 %v2362
        %2506 = vmatprep.mubr.bf16.mxu0 %v2280
        %2507 = vmatmul.mubr.bf16.gmra.mxu0 %v1964
        %v2508 = vpop.f32.mrf.mxu0
        %v2509 = vadd.f32 %v2412, %v2508
        %v2510 = vpop.f32.mrf.mxu0
        %v2511 = vpop.f32.mrf.mxu0
        %v2512 = vadd.f32 %v2415, %v2511
        %v2513 = vpop.f32.mrf.mxu0
        %2514 = vmatprep.mubr.bf16.mxu0 %v2281
        %2515 = vmatmul.mubr.bf16.gmra.mxu0 %v1965
        %v2516 = vpop.f32.mrf.mxu0
        %v2517 = vadd.f32 %v2420, %v2516
        %v2518 = vpop.f32.mrf.mxu0
        %v2519 = vpop.f32.mrf.mxu0
        %v2520 = vadd.f32 %v2423, %v2519
        %v2521 = vpop.f32.mrf.mxu0
        %2522 = vmatprep.mubr.bf16.mxu0 %v2282
        %2523 = vmatmul.mubr.bf16.gmra.mxu0 %v1966
        %v2524 = vpop.f32.mrf.mxu0
        %v2525 = vadd.f32 %v2428, %v2524
        %v2526 = vpop.f32.mrf.mxu0
        %v2527 = vpop.f32.mrf.mxu0
        %v2528 = vadd.f32 %v2431, %v2527
        %v2529 = vpop.f32.mrf.mxu0
        %2530 = vmatprep.mubr.bf16.mxu0 %v2283
        %2531 = vmatmul.mubr.bf16.gmra.mxu0 %v1967
        %v2532 = vpop.f32.mrf.mxu0
        %v2533 = vadd.f32 %v2436, %v2532
        %v2534 = vpop.f32.mrf.mxu0
        %v2535 = vpop.f32.mrf.mxu0
        %v2536 = vadd.f32 %v2439, %v2535
        %v2537 = vpop.f32.mrf.mxu0
        %2538 = vmatprep.mubr.bf16.mxu0 %v2284
        %2539 = vmatmul.mubr.bf16.gmra.mxu0 %v1968
        %v2540 = vpop.f32.mrf.mxu0
        %v2541 = vadd.f32 %v2444, %v2540
        %v2542 = vpop.f32.mrf.mxu0
        %v2543 = vpop.f32.mrf.mxu0
        %v2544 = vadd.f32 %v2447, %v2543
        %v2545 = vpop.f32.mrf.mxu0
        %2546 = vmatprep.mubr.bf16.mxu0 %v2285
        %2547 = vmatmul.mubr.bf16.gmra.mxu0 %v1969
        %v2548 = vpop.f32.mrf.mxu0
        %v2549 = vadd.f32 %v2452, %v2548
        %v2550 = vpop.f32.mrf.mxu0
        %v2551 = vpop.f32.mrf.mxu0
        %v2552 = vadd.f32 %v2455, %v2551
        %v2553 = vpop.f32.mrf.mxu0
        %2554 = vmatprep.mubr.bf16.mxu0 %v2286
        %2555 = vmatmul.mubr.bf16.gmra.mxu0 %v1970
        %v2556 = vpop.f32.mrf.mxu0
        %v2557 = vadd.f32 %v2460, %v2556
        %v2558 = vpop.f32.mrf.mxu0
        %v2559 = vpop.f32.mrf.mxu0
        %v2560 = vadd.f32 %v2463, %v2559
        %v2561 = vpop.f32.mrf.mxu0
        %2562 = vmatprep.mubr.bf16.mxu0 %v2287
        %2563 = vmatmul.mubr.bf16.gmra.mxu0 %v1971
        %v2564 = vpop.f32.mrf.mxu0
        %v2565 = vadd.f32 %v2468, %v2564
        %v2566 = vpop.f32.mrf.mxu0
        %v2567 = vpop.f32.mrf.mxu0
        %v2568 = vadd.f32 %v2471, %v2567
        %v2569 = vpop.f32.mrf.mxu0
        %2570 = vdwg.mxu0
        %v2571 = vld [vmem:[%s7] sm:$0x1]
        %v2572 = vld [vmem:[%s8] sm:$0x1]
        %2573 = vmatprep.subr.mxu0 0.0
        %2574 = vmatpush1.msra.mxu0 %v2568
        %2575 = vmatprep.subr.mxu0 0.0
        %2576 = vmatpush1.msra.mxu0 %v2565
        %2577 = vmatprep.subr.mxu0 0.0
        %2578 = vmatpush1.msra.mxu0 %v2560
        %2579 = vmatprep.subr.mxu0 0.0
        %2580 = vmatpush1.msra.mxu0 %v2557
        %2581 = vmatprep.subr.mxu0 0.0
        %2582 = vmatpush1.msra.mxu0 %v2552
        %2583 = vmatprep.subr.mxu0 0.0
        %2584 = vmatpush1.msra.mxu0 %v2549
        %2585 = vmatprep.subr.mxu0 0.0
        %2586 = vmatpush1.msra.mxu0 %v2544
        %2587 = vmatprep.subr.mxu0 0.0
        %2588 = vmatpush1.msra.mxu0 %v2541
        %2589 = vmatprep.subr.mxu0 0.0
        %2590 = vmatpush1.msra.mxu0 %v2536
        %2591 = vmatprep.subr.mxu0 0.0
        %2592 = vmatpush1.msra.mxu0 %v2533
        %2593 = vmatprep.subr.mxu0 0.0
        %2594 = vmatpush1.msra.mxu0 %v2528
        %2595 = vmatprep.subr.mxu0 0.0
        %2596 = vmatpush1.msra.mxu0 %v2525
        %2597 = vmatprep.subr.mxu0 0.0
        %2598 = vmatpush1.msra.mxu0 %v2520
        %2599 = vmatprep.subr.mxu0 0.0
        %2600 = vmatpush1.msra.mxu0 %v2517
        %2601 = vmatprep.subr.mxu0 0.0
        %2602 = vmatpush1.msra.mxu0 %v2512
        %2603 = vmatprep.subr.mxu0 0.0
        %2604 = vmatpush1.msra.mxu0 %v2509
        %2605 = vmatprep.subr.mxu0 0.0
        %2606 = vmatpush2.msra.mxu0 0.0
        %2607 = vmatprep.subr.mxu0 0.0
        %2608 = vmatpush2.msra.mxu0 0.0
        %2609 = vmatprep.subr.mxu0 0.0
        %2610 = vmatpush2.msra.mxu0 0.0
        %2611 = vmatprep.subr.mxu0 0.0
        %2612 = vmatpush2.msra.mxu0 0.0
        %2613 = vmatprep.subr.mxu0 0.0
        %2614 = vmatpush2.msra.mxu0 0.0
        %2615 = vmatprep.subr.mxu0 0.0
        %2616 = vmatpush2.msra.mxu0 0.0
        %2617 = vmatprep.subr.mxu0 0.0
        %2618 = vmatpush2.msra.mxu0 0.0
        %2619 = vmatprep.subr.mxu0 0.0
        %2620 = vmatpush2.msra.mxu0 0.0
        %2621 = vmatprep.subr.mxu0 0.0
        %2622 = vmatpush2.msra.mxu0 0.0
        %2623 = vmatprep.subr.mxu0 0.0
        %2624 = vmatpush2.msra.mxu0 0.0
        %2625 = vmatprep.subr.mxu0 0.0
        %2626 = vmatpush2.msra.mxu0 0.0
        %2627 = vmatprep.subr.mxu0 0.0
        %2628 = vmatpush2.msra.mxu0 0.0
        %2629 = vmatprep.subr.mxu0 0.0
        %2630 = vmatpush2.msra.mxu0 0.0
        %2631 = vmatprep.subr.mxu0 0.0
        %2632 = vmatpush2.msra.mxu0 0.0
        %2633 = vmatprep.subr.mxu0 0.0
        %2634 = vmatpush2.msra.mxu0 0.0
        %2635 = vmatprep.subr.mxu0 0.0
        %2636 = vmatpush2.msra.mxu0 0.0
        %2637 = vmatprep.mubr.f32.mxu0 0.0
        %2638 = vmatmul.mubr.f32.gmra.mxu0 %v596
        %v2639 = vpop.f32.mrf.mxu0
        %v2640 = vadd.f32 0.0, %v2639
        %v2641 = vpop.f32.mrf.mxu0
        %2642 = vmatprep.mubr.f32.mxu0 0.0
        %2643 = vmatmul.mubr.f32.gmra.mxu0 %v597
        %v2644 = vpop.f32.mrf.mxu0
        %v2645 = vadd.f32 0.0, %v2644
        %v2646 = vpop.f32.mrf.mxu0
        %2647 = vmatprep.mubr.f32.mxu0 0.0
        %2648 = vmatmul.mubr.f32.gmra.mxu0 %v598
        %v2649 = vpop.f32.mrf.mxu0
        %v2650 = vadd.f32 0.0, %v2649
        %v2651 = vpop.f32.mrf.mxu0
        %2652 = vmatprep.mubr.f32.mxu0 0.0
        %2653 = vmatmul.mubr.f32.gmra.mxu0 %v599
        %v2654 = vpop.f32.mrf.mxu0
        %v2655 = vadd.f32 0.0, %v2654
        %v2656 = vpop.f32.mrf.mxu0
        %2657 = vmatprep.mubr.f32.mxu0 0.0
        %2658 = vmatmul.mubr.f32.gmra.mxu0 %v600
        %v2659 = vpop.f32.mrf.mxu0
        %v2660 = vadd.f32 0.0, %v2659
        %v2661 = vpop.f32.mrf.mxu0
        %2662 = vmatprep.mubr.f32.mxu0 0.0
        %2663 = vmatmul.mubr.f32.gmra.mxu0 %v601
        %v2664 = vpop.f32.mrf.mxu0
        %v2665 = vadd.f32 0.0, %v2664
        %v2666 = vpop.f32.mrf.mxu0
        %2667 = vmatprep.mubr.f32.mxu0 0.0
        %2668 = vmatmul.mubr.f32.gmra.mxu0 %v602
        %v2669 = vpop.f32.mrf.mxu0
        %v2670 = vadd.f32 0.0, %v2669
        %v2671 = vpop.f32.mrf.mxu0
        %2672 = vmatprep.mubr.f32.mxu0 0.0
        %2673 = vmatmul.mubr.f32.gmra.mxu0 %v603
        %v2674 = vpop.f32.mrf.mxu0
        %v2675 = vadd.f32 0.0, %v2674
        %v2676 = vpop.f32.mrf.mxu0
        %2677 = vmatprep.mubr.f32.mxu0 0.0
        %2678 = vmatmul.mubr.f32.gmra.mxu0 %v604
        %v2679 = vpop.f32.mrf.mxu0
        %v2680 = vadd.f32 0.0, %v2679
        %v2681 = vpop.f32.mrf.mxu0
        %2682 = vmatprep.mubr.f32.mxu0 0.0
        %2683 = vmatmul.mubr.f32.gmra.mxu0 %v605
        %v2684 = vpop.f32.mrf.mxu0
        %v2685 = vadd.f32 0.0, %v2684
        %v2686 = vpop.f32.mrf.mxu0
        %2687 = vmatprep.mubr.f32.mxu0 0.0
        %2688 = vmatmul.mubr.f32.gmra.mxu0 %v606
        %v2689 = vpop.f32.mrf.mxu0
        %v2690 = vadd.f32 0.0, %v2689
        %v2691 = vpop.f32.mrf.mxu0
        %2692 = vmatprep.mubr.f32.mxu0 0.0
        %2693 = vmatmul.mubr.f32.gmra.mxu0 %v607
        %v2694 = vpop.f32.mrf.mxu0
        %v2695 = vadd.f32 0.0, %v2694
        %v2696 = vpop.f32.mrf.mxu0
        %2697 = vmatprep.mubr.f32.mxu0 0.0
        %2698 = vmatmul.mubr.f32.gmra.mxu0 %v608
        %v2699 = vpop.f32.mrf.mxu0
        %v2700 = vadd.f32 0.0, %v2699
        %v2701 = vpop.f32.mrf.mxu0
        %2702 = vmatprep.mubr.f32.mxu0 0.0
        %2703 = vmatmul.mubr.f32.gmra.mxu0 %v609
        %v2704 = vpop.f32.mrf.mxu0
        %v2705 = vadd.f32 0.0, %v2704
        %v2706 = vpop.f32.mrf.mxu0
        %2707 = vmatprep.mubr.f32.mxu0 0.0
        %2708 = vmatmul.mubr.f32.gmra.mxu0 %v610
        %v2709 = vpop.f32.mrf.mxu0
        %v2710 = vadd.f32 0.0, %v2709
        %v2711 = vpop.f32.mrf.mxu0
        %2712 = vmatprep.mubr.f32.mxu0 0.0
        %2713 = vmatmul.mubr.f32.gmra.mxu0 %v611
        %v2714 = vpop.f32.mrf.mxu0
        %v2715 = vadd.f32 0.0, %v2714
        %v2716 = vpop.f32.mrf.mxu0
        %2717 = vdwg.mxu0
        %v2718 = vsub.f32 %v2509, %v2640
        %v2719 = vsub.f32 %v2512, %v2645
        %v2720 = vsub.f32 %v2517, %v2650
        %v2721 = vsub.f32 %v2520, %v2655
        %v2722 = vsub.f32 %v2525, %v2660
        %v2723 = vsub.f32 %v2528, %v2665
        %v2724 = vsub.f32 %v2533, %v2670
        %v2725 = vsub.f32 %v2536, %v2675
        %v2726 = vsub.f32 %v2541, %v2680
        %v2727 = vsub.f32 %v2544, %v2685
        %v2728 = vsub.f32 %v2549, %v2690
        %v2729 = vsub.f32 %v2552, %v2695
        %v2730 = vsub.f32 %v2557, %v2700
        %v2731 = vsub.f32 %v2560, %v2705
        %v2732 = vsub.f32 %v2565, %v2710
        %v2733 = vsub.f32 %v2568, %v2715
        %v2734 = vmul.f32 %v2718, %v2718
        %v2735 = vmul.f32 %v2719, %v2719
        %v2736 = vmul.f32 %v2720, %v2720
        %v2737 = vmul.f32 %v2721, %v2721
        %v2738 = vmul.f32 %v2722, %v2722
        %v2739 = vmul.f32 %v2723, %v2723
        %v2740 = vmul.f32 %v2724, %v2724
        %v2741 = vmul.f32 %v2725, %v2725
        %v2742 = vmul.f32 %v2726, %v2726
        %v2743 = vmul.f32 %v2727, %v2727
        %v2744 = vmul.f32 %v2728, %v2728
        %v2745 = vmul.f32 %v2729, %v2729
        %v2746 = vmul.f32 %v2730, %v2730
        %v2747 = vmul.f32 %v2731, %v2731
        %v2748 = vmul.f32 %v2732, %v2732
        %v2749 = vmul.f32 %v2733, %v2733
        %2750 = vmatprep.subr.mxu0 0.0
        %2751 = vmatpush1.msra.mxu0 %v2749
        %2752 = vmatprep.subr.mxu0 0.0
        %2753 = vmatpush1.msra.mxu0 %v2748
        %2754 = vmatprep.subr.mxu0 0.0
        %2755 = vmatpush1.msra.mxu0 %v2747
        %2756 = vmatprep.subr.mxu0 0.0
        %2757 = vmatpush1.msra.mxu0 %v2746
        %2758 = vmatprep.subr.mxu0 0.0
        %2759 = vmatpush1.msra.mxu0 %v2745
        %2760 = vmatprep.subr.mxu0 0.0
        %2761 = vmatpush1.msra.mxu0 %v2744
        %2762 = vmatprep.subr.mxu0 0.0
        %2763 = vmatpush1.msra.mxu0 %v2743
        %2764 = vmatprep.subr.mxu0 0.0
        %2765 = vmatpush1.msra.mxu0 %v2742
        %2766 = vmatprep.subr.mxu0 0.0
        %2767 = vmatpush1.msra.mxu0 %v2741
        %2768 = vmatprep.subr.mxu0 0.0
        %2769 = vmatpush1.msra.mxu0 %v2740
        %2770 = vmatprep.subr.mxu0 0.0
        %2771 = vmatpush1.msra.mxu0 %v2739
        %2772 = vmatprep.subr.mxu0 0.0
        %2773 = vmatpush1.msra.mxu0 %v2738
        %2774 = vmatprep.subr.mxu0 0.0
        %2775 = vmatpush1.msra.mxu0 %v2737
        %2776 = vmatprep.subr.mxu0 0.0
        %2777 = vmatpush1.msra.mxu0 %v2736
        %2778 = vmatprep.subr.mxu0 0.0
        %2779 = vmatpush1.msra.mxu0 %v2735
        %2780 = vmatprep.subr.mxu0 0.0
        %2781 = vmatpush1.msra.mxu0 %v2734
        %2782 = vmatprep.subr.mxu0 0.0
        %2783 = vmatpush2.msra.mxu0 0.0
        %2784 = vmatprep.subr.mxu0 0.0
        %2785 = vmatpush2.msra.mxu0 0.0
        %2786 = vmatprep.subr.mxu0 0.0
        %2787 = vmatpush2.msra.mxu0 0.0
        %2788 = vmatprep.subr.mxu0 0.0
        %2789 = vmatpush2.msra.mxu0 0.0
        %2790 = vmatprep.subr.mxu0 0.0
        %2791 = vmatpush2.msra.mxu0 0.0
        %2792 = vmatprep.subr.mxu0 0.0
        %2793 = vmatpush2.msra.mxu0 0.0
        %2794 = vmatprep.subr.mxu0 0.0
        %2795 = vmatpush2.msra.mxu0 0.0
        %2796 = vmatprep.subr.mxu0 0.0
        %2797 = vmatpush2.msra.mxu0 0.0
        %2798 = vmatprep.subr.mxu0 0.0
        %2799 = vmatpush2.msra.mxu0 0.0
        %2800 = vmatprep.subr.mxu0 0.0
        %2801 = vmatpush2.msra.mxu0 0.0
        %2802 = vmatprep.subr.mxu0 0.0
        %2803 = vmatpush2.msra.mxu0 0.0
        %2804 = vmatprep.subr.mxu0 0.0
        %2805 = vmatpush2.msra.mxu0 0.0
        %2806 = vmatprep.subr.mxu0 0.0
        %2807 = vmatpush2.msra.mxu0 0.0
        %2808 = vmatprep.subr.mxu0 0.0
        %2809 = vmatpush2.msra.mxu0 0.0
        %2810 = vmatprep.subr.mxu0 0.0
        %2811 = vmatpush2.msra.mxu0 0.0
        %2812 = vmatprep.subr.mxu0 0.0
        %2813 = vmatpush2.msra.mxu0 0.0
        %2814 = vmatprep.mubr.f32.mxu0 0.0
        %2815 = vmatmul.mubr.f32.gmra.mxu0 %v596
        %v2816 = vpop.f32.mrf.mxu0
        %v2817 = vadd.f32 1e-05, %v2816
        %v2818 = vpop.f32.mrf.mxu0
        %2819 = vmatprep.mubr.f32.mxu0 0.0
        %2820 = vmatmul.mubr.f32.gmra.mxu0 %v597
        %v2821 = vpop.f32.mrf.mxu0
        %v2822 = vadd.f32 1e-05, %v2821
        %v2823 = vpop.f32.mrf.mxu0
        %2824 = vmatprep.mubr.f32.mxu0 0.0
        %2825 = vmatmul.mubr.f32.gmra.mxu0 %v598
        %v2826 = vpop.f32.mrf.mxu0
        %v2827 = vadd.f32 1e-05, %v2826
        %v2828 = vpop.f32.mrf.mxu0
        %2829 = vmatprep.mubr.f32.mxu0 0.0
        %2830 = vmatmul.mubr.f32.gmra.mxu0 %v599
        %v2831 = vpop.f32.mrf.mxu0
        %v2832 = vadd.f32 1e-05, %v2831
        %v2833 = vpop.f32.mrf.mxu0
        %2834 = vmatprep.mubr.f32.mxu0 0.0
        %2835 = vmatmul.mubr.f32.gmra.mxu0 %v600
        %v2836 = vpop.f32.mrf.mxu0
        %v2837 = vadd.f32 1e-05, %v2836
        %v2838 = vpop.f32.mrf.mxu0
        %2839 = vmatprep.mubr.f32.mxu0 0.0
        %2840 = vmatmul.mubr.f32.gmra.mxu0 %v601
        %v2841 = vpop.f32.mrf.mxu0
        %v2842 = vadd.f32 1e-05, %v2841
        %v2843 = vpop.f32.mrf.mxu0
        %2844 = vmatprep.mubr.f32.mxu0 0.0
        %2845 = vmatmul.mubr.f32.gmra.mxu0 %v602
        %v2846 = vpop.f32.mrf.mxu0
        %v2847 = vadd.f32 1e-05, %v2846
        %v2848 = vpop.f32.mrf.mxu0
        %2849 = vmatprep.mubr.f32.mxu0 0.0
        %2850 = vmatmul.mubr.f32.gmra.mxu0 %v603
        %v2851 = vpop.f32.mrf.mxu0
        %v2852 = vadd.f32 1e-05, %v2851
        %v2853 = vpop.f32.mrf.mxu0
        %2854 = vmatprep.mubr.f32.mxu0 0.0
        %2855 = vmatmul.mubr.f32.gmra.mxu0 %v604
        %v2856 = vpop.f32.mrf.mxu0
        %v2857 = vadd.f32 1e-05, %v2856
        %v2858 = vpop.f32.mrf.mxu0
        %2859 = vmatprep.mubr.f32.mxu0 0.0
        %2860 = vmatmul.mubr.f32.gmra.mxu0 %v605
        %v2861 = vpop.f32.mrf.mxu0
        %v2862 = vadd.f32 1e-05, %v2861
        %v2863 = vpop.f32.mrf.mxu0
        %2864 = vmatprep.mubr.f32.mxu0 0.0
        %2865 = vmatmul.mubr.f32.gmra.mxu0 %v606
        %v2866 = vpop.f32.mrf.mxu0
        %v2867 = vadd.f32 1e-05, %v2866
        %v2868 = vpop.f32.mrf.mxu0
        %2869 = vmatprep.mubr.f32.mxu0 0.0
        %2870 = vmatmul.mubr.f32.gmra.mxu0 %v607
        %v2871 = vpop.f32.mrf.mxu0
        %v2872 = vadd.f32 1e-05, %v2871
        %v2873 = vpop.f32.mrf.mxu0
        %2874 = vmatprep.mubr.f32.mxu0 0.0
        %2875 = vmatmul.mubr.f32.gmra.mxu0 %v608
        %v2876 = vpop.f32.mrf.mxu0
        %v2877 = vadd.f32 1e-05, %v2876
        %v2878 = vpop.f32.mrf.mxu0
        %2879 = vmatprep.mubr.f32.mxu0 0.0
        %2880 = vmatmul.mubr.f32.gmra.mxu0 %v609
        %v2881 = vpop.f32.mrf.mxu0
        %v2882 = vadd.f32 1e-05, %v2881
        %v2883 = vpop.f32.mrf.mxu0
        %2884 = vmatprep.mubr.f32.mxu0 0.0
        %2885 = vmatmul.mubr.f32.gmra.mxu0 %v610
        %v2886 = vpop.f32.mrf.mxu0
        %v2887 = vadd.f32 1e-05, %v2886
        %v2888 = vpop.f32.mrf.mxu0
        %2889 = vmatprep.mubr.f32.mxu0 0.0
        %2890 = vmatmul.mubr.f32.gmra.mxu0 %v611
        %v2891 = vpop.f32.mrf.mxu0
        %v2892 = vadd.f32 1e-05, %v2891
        %v2893 = vpop.f32.mrf.mxu0
        %2894 = vdwg.mxu0
        %v2895 = vrsqrt.pop %v2817
        %v2896 = vrsqrt.pop %v2822
        %v2897 = vrsqrt.pop %v2827
        %v2898 = vrsqrt.pop %v2832
        %v2899 = vrsqrt.pop %v2837
        %v2900 = vrsqrt.pop %v2842
        %v2901 = vrsqrt.pop %v2847
        %v2902 = vrsqrt.pop %v2852
        %v2903 = vrsqrt.pop %v2857
        %v2904 = vrsqrt.pop %v2862
        %v2905 = vrsqrt.pop %v2867
        %v2906 = vrsqrt.pop %v2872
        %v2907 = vrsqrt.pop %v2877
        %v2908 = vrsqrt.pop %v2882
        %v2909 = vrsqrt.pop %v2887
        %v2910 = vrsqrt.pop %v2892
        %v2911 = vmul.f32 %v2718, %v2895
        %v2912 = vmul.f32 %v2719, %v2896
        %v2913 = vmul.f32 %v2720, %v2897
        %v2914 = vmul.f32 %v2721, %v2898
        %v2915 = vmul.f32 %v2722, %v2899
        %v2916 = vmul.f32 %v2723, %v2900
        %v2917 = vmul.f32 %v2724, %v2901
        %v2918 = vmul.f32 %v2725, %v2902
        %v2919 = vmul.f32 %v2726, %v2903
        %v2920 = vmul.f32 %v2727, %v2904
        %v2921 = vmul.f32 %v2728, %v2905
        %v2922 = vmul.f32 %v2729, %v2906
        %v2923 = vmul.f32 %v2730, %v2907
        %v2924 = vmul.f32 %v2731, %v2908
        %v2925 = vmul.f32 %v2732, %v2909
        %v2926 = vmul.f32 %v2733, %v2910
        %v2928 = vlaneseq
        %v2929 = vshrl.u32 %v2928, 7
        %v2930 = vsub.s32 0, %v2929
        %v2931 = vrot.slane %v2571, %v2930
        %v2933 = vmul.f32 %v2911, %v2931
        %v2934 = vmul.f32 %v2912, %v2931
        %v2935 = vmul.f32 %v2913, %v2931
        %v2936 = vmul.f32 %v2914, %v2931
        %v2937 = vmul.f32 %v2915, %v2931
        %v2938 = vmul.f32 %v2916, %v2931
        %v2939 = vmul.f32 %v2917, %v2931
        %v2940 = vmul.f32 %v2918, %v2931
        %v2941 = vmul.f32 %v2919, %v2931
        %v2942 = vmul.f32 %v2920, %v2931
        %v2943 = vmul.f32 %v2921, %v2931
        %v2944 = vmul.f32 %v2922, %v2931
        %v2945 = vmul.f32 %v2923, %v2931
        %v2946 = vmul.f32 %v2924, %v2931
        %v2947 = vmul.f32 %v2925, %v2931
        %v2948 = vmul.f32 %v2926, %v2931
        %v2950 = vlaneseq
        %v2951 = vshrl.u32 %v2950, 7
        %v2952 = vsub.s32 0, %v2951
        %v2953 = vrot.slane %v2572, %v2952
        %v2955 = vadd.f32 %v2933, %v2953
        %v2956 = vadd.f32 %v2934, %v2953
        %v2957 = vadd.f32 %v2935, %v2953
        %v2958 = vadd.f32 %v2936, %v2953
        %v2959 = vadd.f32 %v2937, %v2953
        %v2960 = vadd.f32 %v2938, %v2953
        %v2961 = vadd.f32 %v2939, %v2953
        %v2962 = vadd.f32 %v2940, %v2953
        %v2963 = vadd.f32 %v2941, %v2953
        %v2964 = vadd.f32 %v2942, %v2953
        %v2965 = vadd.f32 %v2943, %v2953
        %v2966 = vadd.f32 %v2944, %v2953
        %v2967 = vadd.f32 %v2945, %v2953
        %v2968 = vadd.f32 %v2946, %v2953
        %v2969 = vadd.f32 %v2947, %v2953
        %v2970 = vadd.f32 %v2948, %v2953
        %vm2971 = vcmp.gt.f32.partialorder %v2955, 0.0
        %vm2972 = vcmp.gt.f32.partialorder %v2956, 0.0
        %vm2973 = vcmp.gt.f32.partialorder %v2957, 0.0
        %vm2974 = vcmp.gt.f32.partialorder %v2958, 0.0
        %vm2975 = vcmp.gt.f32.partialorder %v2959, 0.0
        %vm2976 = vcmp.gt.f32.partialorder %v2960, 0.0
        %vm2977 = vcmp.gt.f32.partialorder %v2961, 0.0
        %vm2978 = vcmp.gt.f32.partialorder %v2962, 0.0
        %vm2979 = vcmp.gt.f32.partialorder %v2963, 0.0
        %vm2980 = vcmp.gt.f32.partialorder %v2964, 0.0
        %vm2981 = vcmp.gt.f32.partialorder %v2965, 0.0
        %vm2982 = vcmp.gt.f32.partialorder %v2966, 0.0
        %vm2983 = vcmp.gt.f32.partialorder %v2967, 0.0
        %vm2984 = vcmp.gt.f32.partialorder %v2968, 0.0
        %vm2985 = vcmp.gt.f32.partialorder %v2969, 0.0
        %vm2986 = vcmp.gt.f32.partialorder %v2970, 0.0
        %v2987 = vmin.f32 %v2955, 0.0
        %v2988 = vmin.f32 %v2956, 0.0
        %v2989 = vmin.f32 %v2957, 0.0
        %v2990 = vmin.f32 %v2958, 0.0
        %v2991 = vmin.f32 %v2959, 0.0
        %v2992 = vmin.f32 %v2960, 0.0
        %v2993 = vmin.f32 %v2961, 0.0
        %v2994 = vmin.f32 %v2962, 0.0
        %v2995 = vmin.f32 %v2963, 0.0
        %v2996 = vmin.f32 %v2964, 0.0
        %v2997 = vmin.f32 %v2965, 0.0
        %v2998 = vmin.f32 %v2966, 0.0
        %v2999 = vmin.f32 %v2967, 0.0
        %v3000 = vmin.f32 %v2968, 0.0
        %v3001 = vmin.f32 %v2969, 0.0
        %v3002 = vmin.f32 %v2970, 0.0
        %v3003 = vmul.f32 %v2987, 1.442695
        %v3004 = vpow.pop %v3003
        %v3005 = vmul.f32 %v2988, 1.442695
        %v3006 = vpow.pop %v3005
        %v3007 = vmul.f32 %v2989, 1.442695
        %v3008 = vpow.pop %v3007
        %v3009 = vmul.f32 %v2990, 1.442695
        %v3010 = vpow.pop %v3009
        %v3011 = vmul.f32 %v2991, 1.442695
        %v3012 = vpow.pop %v3011
        %v3013 = vmul.f32 %v2992, 1.442695
        %v3014 = vpow.pop %v3013
        %v3015 = vmul.f32 %v2993, 1.442695
        %v3016 = vpow.pop %v3015
        %v3017 = vmul.f32 %v2994, 1.442695
        %v3018 = vpow.pop %v3017
        %v3019 = vmul.f32 %v2995, 1.442695
        %v3020 = vpow.pop %v3019
        %v3021 = vmul.f32 %v2996, 1.442695
        %v3022 = vpow.pop %v3021
        %v3023 = vmul.f32 %v2997, 1.442695
        %v3024 = vpow.pop %v3023
        %v3025 = vmul.f32 %v2998, 1.442695
        %v3026 = vpow.pop %v3025
        %v3027 = vmul.f32 %v2999, 1.442695
        %v3028 = vpow.pop %v3027
        %v3029 = vmul.f32 %v3000, 1.442695
        %v3030 = vpow.pop %v3029
        %v3031 = vmul.f32 %v3001, 1.442695
        %v3032 = vpow.pop %v3031
        %v3033 = vmul.f32 %v3002, 1.442695
        %v3034 = vpow.pop %v3033
        %v3035 = vsub.f32 %v3004, 1.0
        %v3036 = vsub.f32 %v3006, 1.0
        %v3037 = vsub.f32 %v3008, 1.0
        %v3038 = vsub.f32 %v3010, 1.0
        %v3039 = vsub.f32 %v3012, 1.0
        %v3040 = vsub.f32 %v3014, 1.0
        %v3041 = vsub.f32 %v3016, 1.0
        %v3042 = vsub.f32 %v3018, 1.0
        %v3043 = vsub.f32 %v3020, 1.0
        %v3044 = vsub.f32 %v3022, 1.0
        %v3045 = vsub.f32 %v3024, 1.0
        %v3046 = vsub.f32 %v3026, 1.0
        %v3047 = vsub.f32 %v3028, 1.0
        %v3048 = vsub.f32 %v3030, 1.0
        %v3049 = vsub.f32 %v3032, 1.0
        %v3050 = vsub.f32 %v3034, 1.0
        %v3051 = vsel %vm2971, %v2955, %v3035
        %v3052 = vsel %vm2972, %v2956, %v3036
        %v3053 = vsel %vm2973, %v2957, %v3037
        %v3054 = vsel %vm2974, %v2958, %v3038
        %v3055 = vsel %vm2975, %v2959, %v3039
        %v3056 = vsel %vm2976, %v2960, %v3040
        %v3057 = vsel %vm2977, %v2961, %v3041
        %v3058 = vsel %vm2978, %v2962, %v3042
        %v3059 = vsel %vm2979, %v2963, %v3043
        %v3060 = vsel %vm2980, %v2964, %v3044
        %v3061 = vsel %vm2981, %v2965, %v3045
        %v3062 = vsel %vm2982, %v2966, %v3046
        %v3063 = vsel %vm2983, %v2967, %v3047
        %v3064 = vsel %vm2984, %v2968, %v3048
        %v3065 = vsel %vm2985, %v2969, %v3049
        %v3066 = vsel %vm2986, %v2970, %v3050
        %v3067 = vld [vmem:[%s474] sm:$0xf]
        %v3068 = vld [vmem:[%s474 + $0x4] sm:$0xf]
        %v3069 = vld [vmem:[%s474 + $0x8] sm:$0xf]
        %v3070 = vld [vmem:[%s474 + $0xc] sm:$0xf]
        %v3071 = vld [vmem:[%s474 + $0x10] sm:$0xf]
        %v3072 = vld [vmem:[%s474 + $0x14] sm:$0xf]
        %v3073 = vld [vmem:[%s474 + $0x18] sm:$0xf]
        %v3074 = vld [vmem:[%s474 + $0x1c] sm:$0xf]
        %v3075 = vld [vmem:[%s474 + $0x20] sm:$0xf]
        %v3076 = vld [vmem:[%s474 + $0x24] sm:$0xf]
        %v3077 = vld [vmem:[%s474 + $0x28] sm:$0xf]
        %v3078 = vld [vmem:[%s474 + $0x2c] sm:$0xf]
        %v3079 = vld [vmem:[%s474 + $0x30] sm:$0xf]
        %v3080 = vld [vmem:[%s474 + $0x34] sm:$0xf]
        %v3081 = vld [vmem:[%s474 + $0x38] sm:$0xf]
        %v3082 = vld [vmem:[%s474 + $0x3c] sm:$0xf]
        %v3083 = vpack.c.bf16 %v3052, %v3051
        %v3084 = vpack.c.bf16 %v3054, %v3053
        %v3085 = vpack.c.bf16 %v3056, %v3055
        %v3086 = vpack.c.bf16 %v3058, %v3057
        %v3087 = vpack.c.bf16 %v3060, %v3059
        %v3088 = vpack.c.bf16 %v3062, %v3061
        %v3089 = vpack.c.bf16 %v3064, %v3063
        %v3090 = vpack.c.bf16 %v3066, %v3065
        %v3107 = vunpack.c.l.b16 %v3067
        %v3108 = vunpack.c.l.b16 %v3068
        %v3109 = vunpack.c.l.b16 %v3069
        %v3110 = vunpack.c.l.b16 %v3070
        %v3111 = vunpack.c.l.b16 %v3071
        %v3112 = vunpack.c.l.b16 %v3072
        %v3113 = vunpack.c.l.b16 %v3073
        %v3114 = vunpack.c.l.b16 %v3074
        %v3115 = vunpack.c.l.b16 %v3075
        %v3116 = vunpack.c.l.b16 %v3076
        %v3117 = vunpack.c.l.b16 %v3077
        %v3118 = vunpack.c.l.b16 %v3078
        %v3119 = vunpack.c.l.b16 %v3079
        %v3120 = vunpack.c.l.b16 %v3080
        %v3121 = vunpack.c.l.b16 %v3081
        %v3122 = vunpack.c.l.b16 %v3082
        %v3123 = vpack.c.b16 %v3108, %v3107
        %v3124 = vpack.c.b16 %v3110, %v3109
        %v3125 = vpack.c.b16 %v3112, %v3111
        %v3126 = vpack.c.b16 %v3114, %v3113
        %v3127 = vpack.c.b16 %v3116, %v3115
        %v3128 = vpack.c.b16 %v3118, %v3117
        %v3129 = vpack.c.b16 %v3120, %v3119
        %v3130 = vpack.c.b16 %v3122, %v3121
        %3139 = vmatprep.subr.bf16.mxu0 0
        %3140 = vmatpush1.bf16.msra.mxu0 %v3090
        %3141 = vmatprep.subr.bf16.mxu0 0
        %3142 = vmatpush1.bf16.msra.mxu0 %v3089
        %3143 = vmatprep.subr.bf16.mxu0 0
        %3144 = vmatpush1.bf16.msra.mxu0 %v3088
        %3145 = vmatprep.subr.bf16.mxu0 0
        %3146 = vmatpush1.bf16.msra.mxu0 %v3087
        %3147 = vmatprep.subr.bf16.mxu0 0
        %3148 = vmatpush1.bf16.msra.mxu0 %v3086
        %3149 = vmatprep.subr.bf16.mxu0 0
        %3150 = vmatpush1.bf16.msra.mxu0 %v3085
        %3151 = vmatprep.subr.bf16.mxu0 0
        %3152 = vmatpush1.bf16.msra.mxu0 %v3084
        %3153 = vmatprep.subr.bf16.mxu0 0
        %3154 = vmatpush1.bf16.msra.mxu0 %v3083
        %3155 = vmatprep.subr.bf16.mxu0 0
        %3156 = vmatpush2.bf16.msra.mxu0 0
        %3157 = vmatprep.subr.bf16.mxu0 0
        %3158 = vmatpush2.bf16.msra.mxu0 0
        %3159 = vmatprep.subr.bf16.mxu0 0
        %3160 = vmatpush2.bf16.msra.mxu0 0
        %3161 = vmatprep.subr.bf16.mxu0 0
        %3162 = vmatpush2.bf16.msra.mxu0 0
        %3163 = vmatprep.subr.bf16.mxu0 0
        %3164 = vmatpush2.bf16.msra.mxu0 0
        %3165 = vmatprep.subr.bf16.mxu0 0
        %3166 = vmatpush2.bf16.msra.mxu0 0
        %3167 = vmatprep.subr.bf16.mxu0 0
        %3168 = vmatpush2.bf16.msra.mxu0 0
        %3169 = vmatprep.subr.bf16.mxu0 0
        %3170 = vmatpush2.bf16.msra.mxu0 0
        %3171 = vmatprep.mubr.bf16.mxu0 0
        %3172 = vmatmul.mubr.bf16.gmra.mxu0 %v3123
        %v3173 = vpop.f32.mrf.mxu0
        %v3174 = vadd.f32 0.0, %v3173
        %v3175 = vpop.f32.mrf.mxu0
        %v3176 = vpop.f32.mrf.mxu0
        %v3177 = vadd.f32 0.0, %v3176
        %v3178 = vpop.f32.mrf.mxu0
        %3179 = vmatprep.mubr.bf16.mxu0 0
        %3180 = vmatmul.mubr.bf16.gmra.mxu0 %v3124
        %v3181 = vpop.f32.mrf.mxu0
        %v3182 = vadd.f32 0.0, %v3181
        %v3183 = vpop.f32.mrf.mxu0
        %v3184 = vpop.f32.mrf.mxu0
        %v3185 = vadd.f32 0.0, %v3184
        %v3186 = vpop.f32.mrf.mxu0
        %3187 = vmatprep.mubr.bf16.mxu0 0
        %3188 = vmatmul.mubr.bf16.gmra.mxu0 %v3125
        %v3189 = vpop.f32.mrf.mxu0
        %v3190 = vadd.f32 0.0, %v3189
        %v3191 = vpop.f32.mrf.mxu0
        %v3192 = vpop.f32.mrf.mxu0
        %v3193 = vadd.f32 0.0, %v3192
        %v3194 = vpop.f32.mrf.mxu0
        %3195 = vmatprep.mubr.bf16.mxu0 0
        %3196 = vmatmul.mubr.bf16.gmra.mxu0 %v3126
        %v3197 = vpop.f32.mrf.mxu0
        %v3198 = vadd.f32 0.0, %v3197
        %v3199 = vpop.f32.mrf.mxu0
        %v3200 = vpop.f32.mrf.mxu0
        %v3201 = vadd.f32 0.0, %v3200
        %v3202 = vpop.f32.mrf.mxu0
        %3203 = vmatprep.mubr.bf16.mxu0 0
        %3204 = vmatmul.mubr.bf16.gmra.mxu0 %v3127
        %v3205 = vpop.f32.mrf.mxu0
        %v3206 = vadd.f32 0.0, %v3205
        %v3207 = vpop.f32.mrf.mxu0
        %v3208 = vpop.f32.mrf.mxu0
        %v3209 = vadd.f32 0.0, %v3208
        %v3210 = vpop.f32.mrf.mxu0
        %3211 = vmatprep.mubr.bf16.mxu0 0
        %3212 = vmatmul.mubr.bf16.gmra.mxu0 %v3128
        %v3213 = vpop.f32.mrf.mxu0
        %v3214 = vadd.f32 0.0, %v3213
        %v3215 = vpop.f32.mrf.mxu0
        %v3216 = vpop.f32.mrf.mxu0
        %v3217 = vadd.f32 0.0, %v3216
        %v3218 = vpop.f32.mrf.mxu0
        %3219 = vmatprep.mubr.bf16.mxu0 0
        %3220 = vmatmul.mubr.bf16.gmra.mxu0 %v3129
        %v3221 = vpop.f32.mrf.mxu0
        %v3222 = vadd.f32 0.0, %v3221
        %v3223 = vpop.f32.mrf.mxu0
        %v3224 = vpop.f32.mrf.mxu0
        %v3225 = vadd.f32 0.0, %v3224
        %v3226 = vpop.f32.mrf.mxu0
        %3227 = vmatprep.mubr.bf16.mxu0 0
        %3228 = vmatmul.mubr.bf16.gmra.mxu0 %v3130
        %v3229 = vpop.f32.mrf.mxu0
        %v3230 = vadd.f32 0.0, %v3229
        %v3231 = vpop.f32.mrf.mxu0
        %v3232 = vpop.f32.mrf.mxu0
        %v3233 = vadd.f32 0.0, %v3232
        %v3234 = vpop.f32.mrf.mxu0
        %3235 = vdwg.mxu0
        %s3236 = sld [smem:[#allocation2]]
        %s3237 = sadd.f32 %s3236, 1.0
        %v3238 = vstv %s3237
        %v3239 = vmul.f32 %v3238, %v3051
        %v3240 = vmul.f32 %v3238, %v3052
        %v3241 = vmul.f32 %v3238, %v3053
        %v3242 = vmul.f32 %v3238, %v3054
        %v3243 = vmul.f32 %v3238, %v3055
        %v3244 = vmul.f32 %v3238, %v3056
        %v3245 = vmul.f32 %v3238, %v3057
        %v3246 = vmul.f32 %v3238, %v3058
        %v3247 = vmul.f32 %v3238, %v3059
        %v3248 = vmul.f32 %v3238, %v3060
        %v3249 = vmul.f32 %v3238, %v3061
        %v3250 = vmul.f32 %v3238, %v3062
        %v3251 = vmul.f32 %v3238, %v3063
        %v3252 = vmul.f32 %v3238, %v3064
        %v3253 = vmul.f32 %v3238, %v3065
        %v3254 = vmul.f32 %v3238, %v3066
        %v3255 = vadd.f32 %v3239, %v3174
        %v3256 = vadd.f32 %v3240, %v3177
        %v3257 = vadd.f32 %v3241, %v3182
        %v3258 = vadd.f32 %v3242, %v3185
        %v3259 = vadd.f32 %v3243, %v3190
        %v3260 = vadd.f32 %v3244, %v3193
        %v3261 = vadd.f32 %v3245, %v3198
        %v3262 = vadd.f32 %v3246, %v3201
        %v3263 = vadd.f32 %v3247, %v3206
        %v3264 = vadd.f32 %v3248, %v3209
        %v3265 = vadd.f32 %v3249, %v3214
        %v3266 = vadd.f32 %v3250, %v3217
        %v3267 = vadd.f32 %v3251, %v3222
        %v3268 = vadd.f32 %v3252, %v3225
        %v3269 = vadd.f32 %v3253, %v3230
        %v3270 = vadd.f32 %v3254, %v3233
        %v3271 = vpack.c.bf16 %v3256, %v3255
        %v3272 = vpack.c.bf16 %v3258, %v3257
        %v3273 = vpack.c.bf16 %v3260, %v3259
        %v3274 = vpack.c.bf16 %v3262, %v3261
        %v3275 = vpack.c.bf16 %v3264, %v3263
        %v3276 = vpack.c.bf16 %v3266, %v3265
        %v3277 = vpack.c.bf16 %v3268, %v3267
        %v3278 = vpack.c.bf16 %v3270, %v3269
        %v3279 = vld [vmem:[%s9] sm:$0xf]
        %v3280 = vld [vmem:[%s9 + $0x4] sm:$0xf]
        %v3281 = vld [vmem:[%s9 + $0x8] sm:$0xf]
        %v3282 = vld [vmem:[%s9 + $0xc] sm:$0xf]
        %v3283 = vld [vmem:[%s10] sm:$0x1]
        %v3285 = vlaneseq
        %v3286 = vshrl.u32 %v3285, 7
        %v3287 = vsub.s32 0, %v3286
        %v3288 = vrot.slane %v3283, %v3287
        %v3294 = vunpack.c.l.b16 %v3279
        %v3295 = vunpack.c.l.b16 %v3280
        %v3296 = vunpack.c.l.b16 %v3281
        %v3297 = vunpack.c.l.b16 %v3282
        %v3298 = vpack.c.b16 %v3295, %v3294
        %v3299 = vpack.c.b16 %v3297, %v3296
        %v3303 = vsel %vm806, %v3271, 0
        %v3306 = vsel %vm806, %v3272, 0
        %v3309 = vsel %vm806, %v3273, 0
        %v3312 = vsel %vm806, %v3274, 0
        %v3315 = vsel %vm806, %v3275, 0
        %v3318 = vsel %vm806, %v3276, 0
        %v3321 = vsel %vm806, %v3277, 0
        %v3324 = vsel %vm806, %v3278, 0
        %3326 = vmatprep.subr.bf16.mxu0 0
        %3327 = vmatpush1.bf16.msra.mxu0 0
        %3328 = vmatprep.subr.bf16.mxu0 0
        %3329 = vmatpush1.bf16.msra.mxu0 0
        %3330 = vmatprep.subr.bf16.mxu0 0
        %3331 = vmatpush1.bf16.msra.mxu0 0
        %3332 = vmatprep.subr.bf16.mxu0 0
        %3333 = vmatpush1.bf16.msra.mxu0 0
        %3334 = vmatprep.subr.bf16.mxu0 0
        %3335 = vmatpush1.bf16.msra.mxu0 0
        %3336 = vmatprep.subr.bf16.mxu0 0
        %3337 = vmatpush1.bf16.msra.mxu0 0
        %3338 = vmatprep.subr.bf16.mxu0 0
        %3339 = vmatpush1.bf16.msra.mxu0 %v3299
        %3340 = vmatprep.subr.bf16.mxu0 0
        %3341 = vmatpush1.bf16.msra.mxu0 %v3298
        %3342 = vmatprep.subr.bf16.mxu0 0
        %3343 = vmatpush2.bf16.msra.mxu0 0
        %3344 = vmatprep.subr.bf16.mxu0 0
        %3345 = vmatpush2.bf16.msra.mxu0 0
        %3346 = vmatprep.subr.bf16.mxu0 0
        %3347 = vmatpush2.bf16.msra.mxu0 0
        %3348 = vmatprep.subr.bf16.mxu0 0
        %3349 = vmatpush2.bf16.msra.mxu0 0
        %3350 = vmatprep.subr.bf16.mxu0 0
        %3351 = vmatpush2.bf16.msra.mxu0 0
        %3352 = vmatprep.subr.bf16.mxu0 0
        %3353 = vmatpush2.bf16.msra.mxu0 0
        %3354 = vmatprep.subr.bf16.mxu0 0
        %3355 = vmatpush2.bf16.msra.mxu0 0
        %3356 = vmatprep.subr.bf16.mxu0 0
        %3357 = vmatpush2.bf16.msra.mxu0 0
        %3358 = vmatprep.mubr.bf16.mxu0 0
        %3359 = vmatmul.mubr.bf16.gmra.mxu0 %v3303
        %v3360 = vpop.f32.mrf.mxu0
        %v3361 = vadd.f32 %v3288, %v3360
        %v3362 = vpop.f32.mrf.mxu0
        %v3363 = vpop.f32.mrf.mxu0
        %v3364 = vadd.f32 %v3288, %v3363
        %v3365 = vpop.f32.mrf.mxu0
        %3366 = vmatprep.mubr.bf16.mxu0 0
        %3367 = vmatmul.mubr.bf16.gmra.mxu0 %v3306
        %v3368 = vpop.f32.mrf.mxu0
        %v3369 = vadd.f32 %v3288, %v3368
        %v3370 = vpop.f32.mrf.mxu0
        %v3371 = vpop.f32.mrf.mxu0
        %v3372 = vadd.f32 %v3288, %v3371
        %v3373 = vpop.f32.mrf.mxu0
        %3374 = vmatprep.mubr.bf16.mxu0 0
        %3375 = vmatmul.mubr.bf16.gmra.mxu0 %v3309
        %v3376 = vpop.f32.mrf.mxu0
        %v3377 = vadd.f32 %v3288, %v3376
        %v3378 = vpop.f32.mrf.mxu0
        %v3379 = vpop.f32.mrf.mxu0
        %v3380 = vadd.f32 %v3288, %v3379
        %v3381 = vpop.f32.mrf.mxu0
        %3382 = vmatprep.mubr.bf16.mxu0 0
        %3383 = vmatmul.mubr.bf16.gmra.mxu0 %v3312
        %v3384 = vpop.f32.mrf.mxu0
        %v3385 = vadd.f32 %v3288, %v3384
        %v3386 = vpop.f32.mrf.mxu0
        %v3387 = vpop.f32.mrf.mxu0
        %v3388 = vadd.f32 %v3288, %v3387
        %v3389 = vpop.f32.mrf.mxu0
        %3390 = vmatprep.mubr.bf16.mxu0 0
        %3391 = vmatmul.mubr.bf16.gmra.mxu0 %v3315
        %v3392 = vpop.f32.mrf.mxu0
        %v3393 = vadd.f32 %v3288, %v3392
        %v3394 = vpop.f32.mrf.mxu0
        %v3395 = vpop.f32.mrf.mxu0
        %v3396 = vadd.f32 %v3288, %v3395
        %v3397 = vpop.f32.mrf.mxu0
        %3398 = vmatprep.mubr.bf16.mxu0 0
        %3399 = vmatmul.mubr.bf16.gmra.mxu0 %v3318
        %v3400 = vpop.f32.mrf.mxu0
        %v3401 = vadd.f32 %v3288, %v3400
        %v3402 = vpop.f32.mrf.mxu0
        %v3403 = vpop.f32.mrf.mxu0
        %v3404 = vadd.f32 %v3288, %v3403
        %v3405 = vpop.f32.mrf.mxu0
        %3406 = vmatprep.mubr.bf16.mxu0 0
        %3407 = vmatmul.mubr.bf16.gmra.mxu0 %v3321
        %v3408 = vpop.f32.mrf.mxu0
        %v3409 = vadd.f32 %v3288, %v3408
        %v3410 = vpop.f32.mrf.mxu0
        %v3411 = vpop.f32.mrf.mxu0
        %v3412 = vadd.f32 %v3288, %v3411
        %v3413 = vpop.f32.mrf.mxu0
        %3414 = vmatprep.mubr.bf16.mxu0 0
        %3415 = vmatmul.mubr.bf16.gmra.mxu0 %v3324
        %v3416 = vpop.f32.mrf.mxu0
        %v3417 = vadd.f32 %v3288, %v3416
        %v3418 = vpop.f32.mrf.mxu0
        %v3419 = vpop.f32.mrf.mxu0
        %v3420 = vadd.f32 %v3288, %v3419
        %v3421 = vpop.f32.mrf.mxu0
        %3422 = vdwg.mxu0
        %v3423 = vld [vmem:[%s11] sm:$0x1]
        %v3424 = vld [vmem:[%s12] sm:$0x1]
        %3425 = vmatprep.subr.mxu0 0.0
        %3426 = vmatpush1.msra.mxu0 %v3420
        %3427 = vmatprep.subr.mxu0 0.0
        %3428 = vmatpush1.msra.mxu0 %v3417
        %3429 = vmatprep.subr.mxu0 0.0
        %3430 = vmatpush1.msra.mxu0 %v3412
        %3431 = vmatprep.subr.mxu0 0.0
        %3432 = vmatpush1.msra.mxu0 %v3409
        %3433 = vmatprep.subr.mxu0 0.0
        %3434 = vmatpush1.msra.mxu0 %v3404
        %3435 = vmatprep.subr.mxu0 0.0
        %3436 = vmatpush1.msra.mxu0 %v3401
        %3437 = vmatprep.subr.mxu0 0.0
        %3438 = vmatpush1.msra.mxu0 %v3396
        %3439 = vmatprep.subr.mxu0 0.0
        %3440 = vmatpush1.msra.mxu0 %v3393
        %3441 = vmatprep.subr.mxu0 0.0
        %3442 = vmatpush1.msra.mxu0 %v3388
        %3443 = vmatprep.subr.mxu0 0.0
        %3444 = vmatpush1.msra.mxu0 %v3385
        %3445 = vmatprep.subr.mxu0 0.0
        %3446 = vmatpush1.msra.mxu0 %v3380
        %3447 = vmatprep.subr.mxu0 0.0
        %3448 = vmatpush1.msra.mxu0 %v3377
        %3449 = vmatprep.subr.mxu0 0.0
        %3450 = vmatpush1.msra.mxu0 %v3372
        %3451 = vmatprep.subr.mxu0 0.0
        %3452 = vmatpush1.msra.mxu0 %v3369
        %3453 = vmatprep.subr.mxu0 0.0
        %3454 = vmatpush1.msra.mxu0 %v3364
        %3455 = vmatprep.subr.mxu0 0.0
        %3456 = vmatpush1.msra.mxu0 %v3361
        %3457 = vmatprep.subr.mxu0 0.0
        %3458 = vmatpush2.msra.mxu0 0.0
        %3459 = vmatprep.subr.mxu0 0.0
        %3460 = vmatpush2.msra.mxu0 0.0
        %3461 = vmatprep.subr.mxu0 0.0
        %3462 = vmatpush2.msra.mxu0 0.0
        %3463 = vmatprep.subr.mxu0 0.0
        %3464 = vmatpush2.msra.mxu0 0.0
        %3465 = vmatprep.subr.mxu0 0.0
        %3466 = vmatpush2.msra.mxu0 0.0
        %3467 = vmatprep.subr.mxu0 0.0
        %3468 = vmatpush2.msra.mxu0 0.0
        %3469 = vmatprep.subr.mxu0 0.0
        %3470 = vmatpush2.msra.mxu0 0.0
        %3471 = vmatprep.subr.mxu0 0.0
        %3472 = vmatpush2.msra.mxu0 0.0
        %3473 = vmatprep.subr.mxu0 0.0
        %3474 = vmatpush2.msra.mxu0 0.0
        %3475 = vmatprep.subr.mxu0 0.0
        %3476 = vmatpush2.msra.mxu0 0.0
        %3477 = vmatprep.subr.mxu0 0.0
        %3478 = vmatpush2.msra.mxu0 0.0
        %3479 = vmatprep.subr.mxu0 0.0
        %3480 = vmatpush2.msra.mxu0 0.0
        %3481 = vmatprep.subr.mxu0 0.0
        %3482 = vmatpush2.msra.mxu0 0.0
        %3483 = vmatprep.subr.mxu0 0.0
        %3484 = vmatpush2.msra.mxu0 0.0
        %3485 = vmatprep.subr.mxu0 0.0
        %3486 = vmatpush2.msra.mxu0 0.0
        %3487 = vmatprep.subr.mxu0 0.0
        %3488 = vmatpush2.msra.mxu0 0.0
        %3489 = vmatprep.mubr.f32.mxu0 0.0
        %3490 = vmatmul.mubr.f32.gmra.mxu0 %v596
        %v3491 = vpop.f32.mrf.mxu0
        %v3492 = vadd.f32 0.0, %v3491
        %v3493 = vpop.f32.mrf.mxu0
        %3494 = vmatprep.mubr.f32.mxu0 0.0
        %3495 = vmatmul.mubr.f32.gmra.mxu0 %v597
        %v3496 = vpop.f32.mrf.mxu0
        %v3497 = vadd.f32 0.0, %v3496
        %v3498 = vpop.f32.mrf.mxu0
        %3499 = vmatprep.mubr.f32.mxu0 0.0
        %3500 = vmatmul.mubr.f32.gmra.mxu0 %v598
        %v3501 = vpop.f32.mrf.mxu0
        %v3502 = vadd.f32 0.0, %v3501
        %v3503 = vpop.f32.mrf.mxu0
        %3504 = vmatprep.mubr.f32.mxu0 0.0
        %3505 = vmatmul.mubr.f32.gmra.mxu0 %v599
        %v3506 = vpop.f32.mrf.mxu0
        %v3507 = vadd.f32 0.0, %v3506
        %v3508 = vpop.f32.mrf.mxu0
        %3509 = vmatprep.mubr.f32.mxu0 0.0
        %3510 = vmatmul.mubr.f32.gmra.mxu0 %v600
        %v3511 = vpop.f32.mrf.mxu0
        %v3512 = vadd.f32 0.0, %v3511
        %v3513 = vpop.f32.mrf.mxu0
        %3514 = vmatprep.mubr.f32.mxu0 0.0
        %3515 = vmatmul.mubr.f32.gmra.mxu0 %v601
        %v3516 = vpop.f32.mrf.mxu0
        %v3517 = vadd.f32 0.0, %v3516
        %v3518 = vpop.f32.mrf.mxu0
        %3519 = vmatprep.mubr.f32.mxu0 0.0
        %3520 = vmatmul.mubr.f32.gmra.mxu0 %v602
        %v3521 = vpop.f32.mrf.mxu0
        %v3522 = vadd.f32 0.0, %v3521
        %v3523 = vpop.f32.mrf.mxu0
        %3524 = vmatprep.mubr.f32.mxu0 0.0
        %3525 = vmatmul.mubr.f32.gmra.mxu0 %v603
        %v3526 = vpop.f32.mrf.mxu0
        %v3527 = vadd.f32 0.0, %v3526
        %v3528 = vpop.f32.mrf.mxu0
        %3529 = vmatprep.mubr.f32.mxu0 0.0
        %3530 = vmatmul.mubr.f32.gmra.mxu0 %v604
        %v3531 = vpop.f32.mrf.mxu0
        %v3532 = vadd.f32 0.0, %v3531
        %v3533 = vpop.f32.mrf.mxu0
        %3534 = vmatprep.mubr.f32.mxu0 0.0
        %3535 = vmatmul.mubr.f32.gmra.mxu0 %v605
        %v3536 = vpop.f32.mrf.mxu0
        %v3537 = vadd.f32 0.0, %v3536
        %v3538 = vpop.f32.mrf.mxu0
        %3539 = vmatprep.mubr.f32.mxu0 0.0
        %3540 = vmatmul.mubr.f32.gmra.mxu0 %v606
        %v3541 = vpop.f32.mrf.mxu0
        %v3542 = vadd.f32 0.0, %v3541
        %v3543 = vpop.f32.mrf.mxu0
        %3544 = vmatprep.mubr.f32.mxu0 0.0
        %3545 = vmatmul.mubr.f32.gmra.mxu0 %v607
        %v3546 = vpop.f32.mrf.mxu0
        %v3547 = vadd.f32 0.0, %v3546
        %v3548 = vpop.f32.mrf.mxu0
        %3549 = vmatprep.mubr.f32.mxu0 0.0
        %3550 = vmatmul.mubr.f32.gmra.mxu0 %v608
        %v3551 = vpop.f32.mrf.mxu0
        %v3552 = vadd.f32 0.0, %v3551
        %v3553 = vpop.f32.mrf.mxu0
        %3554 = vmatprep.mubr.f32.mxu0 0.0
        %3555 = vmatmul.mubr.f32.gmra.mxu0 %v609
        %v3556 = vpop.f32.mrf.mxu0
        %v3557 = vadd.f32 0.0, %v3556
        %v3558 = vpop.f32.mrf.mxu0
        %3559 = vmatprep.mubr.f32.mxu0 0.0
        %3560 = vmatmul.mubr.f32.gmra.mxu0 %v610
        %v3561 = vpop.f32.mrf.mxu0
        %v3562 = vadd.f32 0.0, %v3561
        %v3563 = vpop.f32.mrf.mxu0
        %3564 = vmatprep.mubr.f32.mxu0 0.0
        %3565 = vmatmul.mubr.f32.gmra.mxu0 %v611
        %v3566 = vpop.f32.mrf.mxu0
        %v3567 = vadd.f32 0.0, %v3566
        %v3568 = vpop.f32.mrf.mxu0
        %3569 = vdwg.mxu0
        %v3570 = vsub.f32 %v3361, %v3492
        %v3571 = vsub.f32 %v3364, %v3497
        %v3572 = vsub.f32 %v3369, %v3502
        %v3573 = vsub.f32 %v3372, %v3507
        %v3574 = vsub.f32 %v3377, %v3512
        %v3575 = vsub.f32 %v3380, %v3517
        %v3576 = vsub.f32 %v3385, %v3522
        %v3577 = vsub.f32 %v3388, %v3527
        %v3578 = vsub.f32 %v3393, %v3532
        %v3579 = vsub.f32 %v3396, %v3537
        %v3580 = vsub.f32 %v3401, %v3542
        %v3581 = vsub.f32 %v3404, %v3547
        %v3582 = vsub.f32 %v3409, %v3552
        %v3583 = vsub.f32 %v3412, %v3557
        %v3584 = vsub.f32 %v3417, %v3562
        %v3585 = vsub.f32 %v3420, %v3567
        %v3586 = vmul.f32 %v3570, %v3570
        %v3587 = vmul.f32 %v3571, %v3571
        %v3588 = vmul.f32 %v3572, %v3572
        %v3589 = vmul.f32 %v3573, %v3573
        %v3590 = vmul.f32 %v3574, %v3574
        %v3591 = vmul.f32 %v3575, %v3575
        %v3592 = vmul.f32 %v3576, %v3576
        %v3593 = vmul.f32 %v3577, %v3577
        %v3594 = vmul.f32 %v3578, %v3578
        %v3595 = vmul.f32 %v3579, %v3579
        %v3596 = vmul.f32 %v3580, %v3580
        %v3597 = vmul.f32 %v3581, %v3581
        %v3598 = vmul.f32 %v3582, %v3582
        %v3599 = vmul.f32 %v3583, %v3583
        %v3600 = vmul.f32 %v3584, %v3584
        %v3601 = vmul.f32 %v3585, %v3585
        %3602 = vmatprep.subr.mxu0 0.0
        %3603 = vmatpush1.msra.mxu0 %v3601
        %3604 = vmatprep.subr.mxu0 0.0
        %3605 = vmatpush1.msra.mxu0 %v3600
        %3606 = vmatprep.subr.mxu0 0.0
        %3607 = vmatpush1.msra.mxu0 %v3599
        %3608 = vmatprep.subr.mxu0 0.0
        %3609 = vmatpush1.msra.mxu0 %v3598
        %3610 = vmatprep.subr.mxu0 0.0
        %3611 = vmatpush1.msra.mxu0 %v3597
        %3612 = vmatprep.subr.mxu0 0.0
        %3613 = vmatpush1.msra.mxu0 %v3596
        %3614 = vmatprep.subr.mxu0 0.0
        %3615 = vmatpush1.msra.mxu0 %v3595
        %3616 = vmatprep.subr.mxu0 0.0
        %3617 = vmatpush1.msra.mxu0 %v3594
        %3618 = vmatprep.subr.mxu0 0.0
        %3619 = vmatpush1.msra.mxu0 %v3593
        %3620 = vmatprep.subr.mxu0 0.0
        %3621 = vmatpush1.msra.mxu0 %v3592
        %3622 = vmatprep.subr.mxu0 0.0
        %3623 = vmatpush1.msra.mxu0 %v3591
        %3624 = vmatprep.subr.mxu0 0.0
        %3625 = vmatpush1.msra.mxu0 %v3590
        %3626 = vmatprep.subr.mxu0 0.0
        %3627 = vmatpush1.msra.mxu0 %v3589
        %3628 = vmatprep.subr.mxu0 0.0
        %3629 = vmatpush1.msra.mxu0 %v3588
        %3630 = vmatprep.subr.mxu0 0.0
        %3631 = vmatpush1.msra.mxu0 %v3587
        %3632 = vmatprep.subr.mxu0 0.0
        %3633 = vmatpush1.msra.mxu0 %v3586
        %3634 = vmatprep.subr.mxu0 0.0
        %3635 = vmatpush2.msra.mxu0 0.0
        %3636 = vmatprep.subr.mxu0 0.0
        %3637 = vmatpush2.msra.mxu0 0.0
        %3638 = vmatprep.subr.mxu0 0.0
        %3639 = vmatpush2.msra.mxu0 0.0
        %3640 = vmatprep.subr.mxu0 0.0
        %3641 = vmatpush2.msra.mxu0 0.0
        %3642 = vmatprep.subr.mxu0 0.0
        %3643 = vmatpush2.msra.mxu0 0.0
        %3644 = vmatprep.subr.mxu0 0.0
        %3645 = vmatpush2.msra.mxu0 0.0
        %3646 = vmatprep.subr.mxu0 0.0
        %3647 = vmatpush2.msra.mxu0 0.0
        %3648 = vmatprep.subr.mxu0 0.0
        %3649 = vmatpush2.msra.mxu0 0.0
        %3650 = vmatprep.subr.mxu0 0.0
        %3651 = vmatpush2.msra.mxu0 0.0
        %3652 = vmatprep.subr.mxu0 0.0
        %3653 = vmatpush2.msra.mxu0 0.0
        %3654 = vmatprep.subr.mxu0 0.0
        %3655 = vmatpush2.msra.mxu0 0.0
        %3656 = vmatprep.subr.mxu0 0.0
        %3657 = vmatpush2.msra.mxu0 0.0
        %3658 = vmatprep.subr.mxu0 0.0
        %3659 = vmatpush2.msra.mxu0 0.0
        %3660 = vmatprep.subr.mxu0 0.0
        %3661 = vmatpush2.msra.mxu0 0.0
        %3662 = vmatprep.subr.mxu0 0.0
        %3663 = vmatpush2.msra.mxu0 0.0
        %3664 = vmatprep.subr.mxu0 0.0
        %3665 = vmatpush2.msra.mxu0 0.0
        %3666 = vmatprep.mubr.f32.mxu0 0.0
        %3667 = vmatmul.mubr.f32.gmra.mxu0 %v596
        %v3668 = vpop.f32.mrf.mxu0
        %v3669 = vadd.f32 1e-05, %v3668
        %v3670 = vpop.f32.mrf.mxu0
        %3671 = vmatprep.mubr.f32.mxu0 0.0
        %3672 = vmatmul.mubr.f32.gmra.mxu0 %v597
        %v3673 = vpop.f32.mrf.mxu0
        %v3674 = vadd.f32 1e-05, %v3673
        %v3675 = vpop.f32.mrf.mxu0
        %3676 = vmatprep.mubr.f32.mxu0 0.0
        %3677 = vmatmul.mubr.f32.gmra.mxu0 %v598
        %v3678 = vpop.f32.mrf.mxu0
        %v3679 = vadd.f32 1e-05, %v3678
        %v3680 = vpop.f32.mrf.mxu0
        %3681 = vmatprep.mubr.f32.mxu0 0.0
        %3682 = vmatmul.mubr.f32.gmra.mxu0 %v599
        %v3683 = vpop.f32.mrf.mxu0
        %v3684 = vadd.f32 1e-05, %v3683
        %v3685 = vpop.f32.mrf.mxu0
        %3686 = vmatprep.mubr.f32.mxu0 0.0
        %3687 = vmatmul.mubr.f32.gmra.mxu0 %v600
        %v3688 = vpop.f32.mrf.mxu0
        %v3689 = vadd.f32 1e-05, %v3688
        %v3690 = vpop.f32.mrf.mxu0
        %3691 = vmatprep.mubr.f32.mxu0 0.0
        %3692 = vmatmul.mubr.f32.gmra.mxu0 %v601
        %v3693 = vpop.f32.mrf.mxu0
        %v3694 = vadd.f32 1e-05, %v3693
        %v3695 = vpop.f32.mrf.mxu0
        %3696 = vmatprep.mubr.f32.mxu0 0.0
        %3697 = vmatmul.mubr.f32.gmra.mxu0 %v602
        %v3698 = vpop.f32.mrf.mxu0
        %v3699 = vadd.f32 1e-05, %v3698
        %v3700 = vpop.f32.mrf.mxu0
        %3701 = vmatprep.mubr.f32.mxu0 0.0
        %3702 = vmatmul.mubr.f32.gmra.mxu0 %v603
        %v3703 = vpop.f32.mrf.mxu0
        %v3704 = vadd.f32 1e-05, %v3703
        %v3705 = vpop.f32.mrf.mxu0
        %3706 = vmatprep.mubr.f32.mxu0 0.0
        %3707 = vmatmul.mubr.f32.gmra.mxu0 %v604
        %v3708 = vpop.f32.mrf.mxu0
        %v3709 = vadd.f32 1e-05, %v3708
        %v3710 = vpop.f32.mrf.mxu0
        %3711 = vmatprep.mubr.f32.mxu0 0.0
        %3712 = vmatmul.mubr.f32.gmra.mxu0 %v605
        %v3713 = vpop.f32.mrf.mxu0
        %v3714 = vadd.f32 1e-05, %v3713
        %v3715 = vpop.f32.mrf.mxu0
        %3716 = vmatprep.mubr.f32.mxu0 0.0
        %3717 = vmatmul.mubr.f32.gmra.mxu0 %v606
        %v3718 = vpop.f32.mrf.mxu0
        %v3719 = vadd.f32 1e-05, %v3718
        %v3720 = vpop.f32.mrf.mxu0
        %3721 = vmatprep.mubr.f32.mxu0 0.0
        %3722 = vmatmul.mubr.f32.gmra.mxu0 %v607
        %v3723 = vpop.f32.mrf.mxu0
        %v3724 = vadd.f32 1e-05, %v3723
        %v3725 = vpop.f32.mrf.mxu0
        %3726 = vmatprep.mubr.f32.mxu0 0.0
        %3727 = vmatmul.mubr.f32.gmra.mxu0 %v608
        %v3728 = vpop.f32.mrf.mxu0
        %v3729 = vadd.f32 1e-05, %v3728
        %v3730 = vpop.f32.mrf.mxu0
        %3731 = vmatprep.mubr.f32.mxu0 0.0
        %3732 = vmatmul.mubr.f32.gmra.mxu0 %v609
        %v3733 = vpop.f32.mrf.mxu0
        %v3734 = vadd.f32 1e-05, %v3733
        %v3735 = vpop.f32.mrf.mxu0
        %3736 = vmatprep.mubr.f32.mxu0 0.0
        %3737 = vmatmul.mubr.f32.gmra.mxu0 %v610
        %v3738 = vpop.f32.mrf.mxu0
        %v3739 = vadd.f32 1e-05, %v3738
        %v3740 = vpop.f32.mrf.mxu0
        %3741 = vmatprep.mubr.f32.mxu0 0.0
        %3742 = vmatmul.mubr.f32.gmra.mxu0 %v611
        %v3743 = vpop.f32.mrf.mxu0
        %v3744 = vadd.f32 1e-05, %v3743
        %v3745 = vpop.f32.mrf.mxu0
        %3746 = vdwg.mxu0
        %v3747 = vrsqrt.pop %v3669
        %v3748 = vrsqrt.pop %v3674
        %v3749 = vrsqrt.pop %v3679
        %v3750 = vrsqrt.pop %v3684
        %v3751 = vrsqrt.pop %v3689
        %v3752 = vrsqrt.pop %v3694
        %v3753 = vrsqrt.pop %v3699
        %v3754 = vrsqrt.pop %v3704
        %v3755 = vrsqrt.pop %v3709
        %v3756 = vrsqrt.pop %v3714
        %v3757 = vrsqrt.pop %v3719
        %v3758 = vrsqrt.pop %v3724
        %v3759 = vrsqrt.pop %v3729
        %v3760 = vrsqrt.pop %v3734
        %v3761 = vrsqrt.pop %v3739
        %v3762 = vrsqrt.pop %v3744
        %v3763 = vmul.f32 %v3570, %v3747
        %v3764 = vmul.f32 %v3571, %v3748
        %v3765 = vmul.f32 %v3572, %v3749
        %v3766 = vmul.f32 %v3573, %v3750
        %v3767 = vmul.f32 %v3574, %v3751
        %v3768 = vmul.f32 %v3575, %v3752
        %v3769 = vmul.f32 %v3576, %v3753
        %v3770 = vmul.f32 %v3577, %v3754
        %v3771 = vmul.f32 %v3578, %v3755
        %v3772 = vmul.f32 %v3579, %v3756
        %v3773 = vmul.f32 %v3580, %v3757
        %v3774 = vmul.f32 %v3581, %v3758
        %v3775 = vmul.f32 %v3582, %v3759
        %v3776 = vmul.f32 %v3583, %v3760
        %v3777 = vmul.f32 %v3584, %v3761
        %v3778 = vmul.f32 %v3585, %v3762
        %v3780 = vlaneseq
        %v3781 = vshrl.u32 %v3780, 7
        %v3782 = vsub.s32 0, %v3781
        %v3783 = vrot.slane %v3423, %v3782
        %v3785 = vmul.f32 %v3763, %v3783
        %v3786 = vmul.f32 %v3764, %v3783
        %v3787 = vmul.f32 %v3765, %v3783
        %v3788 = vmul.f32 %v3766, %v3783
        %v3789 = vmul.f32 %v3767, %v3783
        %v3790 = vmul.f32 %v3768, %v3783
        %v3791 = vmul.f32 %v3769, %v3783
        %v3792 = vmul.f32 %v3770, %v3783
        %v3793 = vmul.f32 %v3771, %v3783
        %v3794 = vmul.f32 %v3772, %v3783
        %v3795 = vmul.f32 %v3773, %v3783
        %v3796 = vmul.f32 %v3774, %v3783
        %v3797 = vmul.f32 %v3775, %v3783
        %v3798 = vmul.f32 %v3776, %v3783
        %v3799 = vmul.f32 %v3777, %v3783
        %v3800 = vmul.f32 %v3778, %v3783
        %v3802 = vlaneseq
        %v3803 = vshrl.u32 %v3802, 7
        %v3804 = vsub.s32 0, %v3803
        %v3805 = vrot.slane %v3424, %v3804
        %v3807 = vadd.f32 %v3785, %v3805
        %v3808 = vadd.f32 %v3786, %v3805
        %v3809 = vadd.f32 %v3787, %v3805
        %v3810 = vadd.f32 %v3788, %v3805
        %v3811 = vadd.f32 %v3789, %v3805
        %v3812 = vadd.f32 %v3790, %v3805
        %v3813 = vadd.f32 %v3791, %v3805
        %v3814 = vadd.f32 %v3792, %v3805
        %v3815 = vadd.f32 %v3793, %v3805
        %v3816 = vadd.f32 %v3794, %v3805
        %v3817 = vadd.f32 %v3795, %v3805
        %v3818 = vadd.f32 %v3796, %v3805
        %v3819 = vadd.f32 %v3797, %v3805
        %v3820 = vadd.f32 %v3798, %v3805
        %v3821 = vadd.f32 %v3799, %v3805
        %v3822 = vadd.f32 %v3800, %v3805
        %vm3823 = vcmp.gt.f32.partialorder %v3807, 0.0
        %vm3824 = vcmp.gt.f32.partialorder %v3808, 0.0
        %vm3825 = vcmp.gt.f32.partialorder %v3809, 0.0
        %vm3826 = vcmp.gt.f32.partialorder %v3810, 0.0
        %vm3827 = vcmp.gt.f32.partialorder %v3811, 0.0
        %vm3828 = vcmp.gt.f32.partialorder %v3812, 0.0
        %vm3829 = vcmp.gt.f32.partialorder %v3813, 0.0
        %vm3830 = vcmp.gt.f32.partialorder %v3814, 0.0
        %vm3831 = vcmp.gt.f32.partialorder %v3815, 0.0
        %vm3832 = vcmp.gt.f32.partialorder %v3816, 0.0
        %vm3833 = vcmp.gt.f32.partialorder %v3817, 0.0
        %vm3834 = vcmp.gt.f32.partialorder %v3818, 0.0
        %vm3835 = vcmp.gt.f32.partialorder %v3819, 0.0
        %vm3836 = vcmp.gt.f32.partialorder %v3820, 0.0
        %vm3837 = vcmp.gt.f32.partialorder %v3821, 0.0
        %vm3838 = vcmp.gt.f32.partialorder %v3822, 0.0
        %v3839 = vmin.f32 %v3807, 0.0
        %v3840 = vmin.f32 %v3808, 0.0
        %v3841 = vmin.f32 %v3809, 0.0
        %v3842 = vmin.f32 %v3810, 0.0
        %v3843 = vmin.f32 %v3811, 0.0
        %v3844 = vmin.f32 %v3812, 0.0
        %v3845 = vmin.f32 %v3813, 0.0
        %v3846 = vmin.f32 %v3814, 0.0
        %v3847 = vmin.f32 %v3815, 0.0
        %v3848 = vmin.f32 %v3816, 0.0
        %v3849 = vmin.f32 %v3817, 0.0
        %v3850 = vmin.f32 %v3818, 0.0
        %v3851 = vmin.f32 %v3819, 0.0
        %v3852 = vmin.f32 %v3820, 0.0
        %v3853 = vmin.f32 %v3821, 0.0
        %v3854 = vmin.f32 %v3822, 0.0
        %v3855 = vmul.f32 %v3839, 1.442695
        %v3856 = vpow.pop %v3855
        %v3857 = vmul.f32 %v3840, 1.442695
        %v3858 = vpow.pop %v3857
        %v3859 = vmul.f32 %v3841, 1.442695
        %v3860 = vpow.pop %v3859
        %v3861 = vmul.f32 %v3842, 1.442695
        %v3862 = vpow.pop %v3861
        %v3863 = vmul.f32 %v3843, 1.442695
        %v3864 = vpow.pop %v3863
        %v3865 = vmul.f32 %v3844, 1.442695
        %v3866 = vpow.pop %v3865
        %v3867 = vmul.f32 %v3845, 1.442695
        %v3868 = vpow.pop %v3867
        %v3869 = vmul.f32 %v3846, 1.442695
        %v3870 = vpow.pop %v3869
        %v3871 = vmul.f32 %v3847, 1.442695
        %v3872 = vpow.pop %v3871
        %v3873 = vmul.f32 %v3848, 1.442695
        %v3874 = vpow.pop %v3873
        %v3875 = vmul.f32 %v3849, 1.442695
        %v3876 = vpow.pop %v3875
        %v3877 = vmul.f32 %v3850, 1.442695
        %v3878 = vpow.pop %v3877
        %v3879 = vmul.f32 %v3851, 1.442695
        %v3880 = vpow.pop %v3879
        %v3881 = vmul.f32 %v3852, 1.442695
        %v3882 = vpow.pop %v3881
        %v3883 = vmul.f32 %v3853, 1.442695
        %v3884 = vpow.pop %v3883
        %v3885 = vmul.f32 %v3854, 1.442695
        %v3886 = vpow.pop %v3885
        %v3887 = vsub.f32 %v3856, 1.0
        %v3888 = vsub.f32 %v3858, 1.0
        %v3889 = vsub.f32 %v3860, 1.0
        %v3890 = vsub.f32 %v3862, 1.0
        %v3891 = vsub.f32 %v3864, 1.0
        %v3892 = vsub.f32 %v3866, 1.0
        %v3893 = vsub.f32 %v3868, 1.0
        %v3894 = vsub.f32 %v3870, 1.0
        %v3895 = vsub.f32 %v3872, 1.0
        %v3896 = vsub.f32 %v3874, 1.0
        %v3897 = vsub.f32 %v3876, 1.0
        %v3898 = vsub.f32 %v3878, 1.0
        %v3899 = vsub.f32 %v3880, 1.0
        %v3900 = vsub.f32 %v3882, 1.0
        %v3901 = vsub.f32 %v3884, 1.0
        %v3902 = vsub.f32 %v3886, 1.0
        %v3903 = vsel %vm3823, %v3807, %v3887
        %v3904 = vsel %vm3824, %v3808, %v3888
        %v3905 = vsel %vm3825, %v3809, %v3889
        %v3906 = vsel %vm3826, %v3810, %v3890
        %v3907 = vsel %vm3827, %v3811, %v3891
        %v3908 = vsel %vm3828, %v3812, %v3892
        %v3909 = vsel %vm3829, %v3813, %v3893
        %v3910 = vsel %vm3830, %v3814, %v3894
        %v3911 = vsel %vm3831, %v3815, %v3895
        %v3912 = vsel %vm3832, %v3816, %v3896
        %v3913 = vsel %vm3833, %v3817, %v3897
        %v3914 = vsel %vm3834, %v3818, %v3898
        %v3915 = vsel %vm3835, %v3819, %v3899
        %v3916 = vsel %vm3836, %v3820, %v3900
        %v3917 = vsel %vm3837, %v3821, %v3901
        %v3918 = vsel %vm3838, %v3822, %v3902
        %3919 = vst [vmem:[%s532] sm:$0xff] %v3903
        %3920 = vst [vmem:[%s532 + $0x8] sm:$0xff] %v3904
        %3921 = vst [vmem:[%s532 + $0x10] sm:$0xff] %v3905
        %3922 = vst [vmem:[%s532 + $0x18] sm:$0xff] %v3906
        %3923 = vst [vmem:[%s532 + $0x20] sm:$0xff] %v3907
        %3924 = vst [vmem:[%s532 + $0x28] sm:$0xff] %v3908
        %3925 = vst [vmem:[%s532 + $0x30] sm:$0xff] %v3909
        %3926 = vst [vmem:[%s532 + $0x38] sm:$0xff] %v3910
        %3927 = vst [vmem:[%s532 + $0x40] sm:$0xff] %v3911
        %3928 = vst [vmem:[%s532 + $0x48] sm:$0xff] %v3912
        %3929 = vst [vmem:[%s532 + $0x50] sm:$0xff] %v3913
        %3930 = vst [vmem:[%s532 + $0x58] sm:$0xff] %v3914
        %3931 = vst [vmem:[%s532 + $0x60] sm:$0xff] %v3915
        %3932 = vst [vmem:[%s532 + $0x68] sm:$0xff] %v3916
        %3933 = vst [vmem:[%s532 + $0x70] sm:$0xff] %v3917
        %3934 = vst [vmem:[%s532 + $0x78] sm:$0xff] %v3918
        %s3935 = sand.u32 %s350, 1
        %s3936 = scalar_lea.sflag [#allocation5], %s3935
        %s3937 = sand.u32 %s350, 1
        %s3938 = smul.addr %s3937, 128
        %s3939 = scalar_lea.vmem [#allocation8], %s3938
        // Predicated region
        $region85: #{tpu_custom_call.1} parent=75 // pred_check
          %p3940 = pneg %p360
        $region86: #{tpu_custom_call.1} parent=75 // pred_check_branch
          %3942 = sbr.rel (%p3940) target = $region88
        $region87: #{tpu_custom_call.1} parent=75 // pred_region
          %s3943 = smul.u32 16, %s33
          %s3945 = ssub.s32 2048, 2048
          %3946 = vsyncadd %s3936, %s3945
          %s3947 = smul.addr %s3943, 128
          %s3948 = scalar_lea.hbm %s14, %s3947
          %s3949 = sshll.u32 %s3939, 4
          %s3950 = int_to_ptr.vmem [resolvable:$true] %s3949
          %3955 = dma.vmem_to_hbm [thread:$0]  %s3950, 2048, %s3948, %s3936, 128, 128, 8
        $region88: #{tpu_custom_call.1} parent=75 // pred_fallthru
          _
      $region76: #{tpu_custom_call.1} parent=5 // pred_fallthru
        _
      %p3956 = scmp.le.s32.totalorder 2, %s28
      // Predicated region
      $region89: #{tpu_custom_call.1} parent=5 // pred_check
        %p3957 = pneg %p3956
      $region90: #{tpu_custom_call.1} parent=5 // pred_check_branch
        %3959 = sbr.rel (%p3957) target = $region92
      $region91: #{tpu_custom_call.1} parent=5 // pred_region
        %s3960 = ssub.s32 %s28, 2
        // Predicated region
        $region93: #{tpu_custom_call.1} parent=91 // pred_check
          %p3961 = pneg %p366
        $region94: #{tpu_custom_call.1} parent=91 // pred_check_branch
          %3963 = sbr.rel (%p3961) target = $region96
        $region95: #{tpu_custom_call.1} parent=91 // pred_region
          %s3964 = sand.u32 %s351, 1
          %s3965 = scalar_lea.sflag [#allocation5], %s3964
          %s3966 = sand.u32 %s351, 1
          %s3967 = smul.addr %s3966, 128
          %s3968 = scalar_lea.vmem [#allocation8], %s3967
          %3969 = dma.done %s3965, 2048
        $region96: #{tpu_custom_call.1} parent=91 // pred_fallthru
          _
      $region92: #{tpu_custom_call.1} parent=5 // pred_fallthru
        _
    $region6: #{tpu_custom_call.1} parent=1 // loop_footer
      %s32 = sadd.s32 1, %s28
    $region7: #{tpu_custom_call.1} parent=1 // loop_footer_branch
      %27 = sbr.rel target = $region3
    $region8: #{tpu_custom_call.1} parent=1 // loop_exit
      _
    %3970 = vsyncpa [#allocation4], 1
    %s3971 = scalar_lea.sflag [#allocation4], 1
    %3972 = vsyncpa %s3971, 1
    %3973 = vsyncpa [#allocation7], 1
    %3974 = vsyncpa [#allocation5], 1
    %s3975 = scalar_lea.sflag [#allocation5], 1
    %3976 = vsyncpa %s3975, 1

</llo_original>
